<compile_context>
chip_gen: v7x
topology: tpu7x:2x2x1
jax: 0.10.0
libtpu: 0.0.40
codegen_flags: <defaults>
</compile_context>

<pallas_src>
import functools
import jax
import jax.numpy as jnp
from jax import lax
from jax.experimental import pallas as pl
from jax.experimental.pallas import tpu as pltpu

# ----------------- synthetic small config (VisionTransformer branch) -----------------
B = 2            # batch
IMG = 16         # image_resolution
PATCH = 8        # vision_patch_size
WIDTH = 32       # vision_width
LAYERS = 2       # vision_layers (int -> VisionTransformer backbone)
HEADS = 4        # heads (picked directly for the small synthetic width)
EMBED = 16       # embed_dim (output_dim of visual projection)

GRID = IMG // PATCH
NPATCH = GRID * GRID
SEQ = NPATCH + 1
CPP = 3 * PATCH * PATCH
HEAD_DIM = WIDTH // HEADS
MLP = 4 * WIDTH
LN_EPS = 1e-5
ATTN_SCALE = 1.0 / (HEAD_DIM ** 0.5)
NEG_INF = -1e30


def _layernorm(x, g, b, eps=LN_EPS):
    mu = jnp.mean(x, axis=-1, keepdims=True)
    var = jnp.mean(jnp.square(x - mu), axis=-1, keepdims=True)
    return (x - mu) * lax.rsqrt(var + eps) * g + b


def _matmul_t(x, w):
    # x @ w.T, w stored [out, in] like torch.nn.Linear
    return lax.dot_general(x, w, (((1,), (1,)), ((), ())),
                           preferred_element_type=jnp.float32)


# --------------------------------- the Pallas kernel ---------------------------------
def vit_kernel(patches_ref, conv_w_ref, cls_ref, pos_ref, mask_ref,
               ln_pre_g_ref, ln_pre_b_ref,
               ln1_g_ref, ln1_b_ref,
               qw_ref, qb_ref, kw_ref, kb_ref, vw_ref, vb_ref,
               attn_out_w_ref, attn_out_b_ref,
               ln2_g_ref, ln2_b_ref,
               fc_w_ref, fc_b_ref,
               cproj_w_ref, cproj_b_ref,
               ln_post_g_ref, ln_post_b_ref,
               proj_ref,
               out_ref,
               *, bsz):
    # patch embedding == Conv2d(3, WIDTH, kernel=stride=PATCH, bias=False)
    # for ALL images at once: [B*NPATCH, CPP] @ [CPP, WIDTH]
    patch_emb = jnp.dot(patches_ref[...], conv_w_ref[...],
                        preferred_element_type=jnp.float32)          # [B*N, W]

    # per-image [cls; patches] assembled in registers (no scratch round-trip)
    pieces = []
    for b in range(bsz):
        pieces.append(cls_ref[...])                                  # [1, W]
        pieces.append(patch_emb[b * NPATCH:(b + 1) * NPATCH, :])     # [N, W]
    x = jnp.concatenate(pieces, axis=0) + pos_ref[...]               # [B*S, W]
    x = _layernorm(x, ln_pre_g_ref[...], ln_pre_b_ref[...])

    neg_mask = mask_ref[...]                                         # [B*S, B*S]

    for l in range(LAYERS):
        # ---------------- multi-head self attention ----------------
        y = _layernorm(x, ln1_g_ref[l], ln1_b_ref[l])
        # 1/sqrt(head_dim) is baked into q weights/bias host-side
        q = _matmul_t(y, qw_ref[l]) + qb_ref[l]                      # [B*S, W]
        k = _matmul_t(y, kw_ref[l]) + kb_ref[l]                      # [B*S, W]
        v = _matmul_t(y, vw_ref[l]) + vb_ref[l]                      # [B*S, W]

        head_outs = []
        for h in range(HEADS):
            sl = slice(h * HEAD_DIM, (h + 1) * HEAD_DIM)
            qh, kh, vh = q[:, sl], k[:, sl], v[:, sl]
            s = lax.dot_general(qh, kh, (((1,), (1,)), ((), ())),
                                preferred_element_type=jnp.float32)  # [B*S, B*S]
            s = s + neg_mask                     # block-diagonal: no cross-image attn
            s = s - jnp.max(s, axis=-1, keepdims=True)
            p = jnp.exp(s)
            p = p * pl.reciprocal(jnp.sum(p, axis=-1, keepdims=True), approx=True)
            head_outs.append(jnp.dot(p, vh, preferred_element_type=jnp.float32))
        attn = jnp.concatenate(head_outs, axis=-1)                   # [B*S, W]
        attn = _matmul_t(attn, attn_out_w_ref[l]) + attn_out_b_ref[l]
        x = x + attn

        # ---------------- MLP with QuickGELU ----------------
        y = _layernorm(x, ln2_g_ref[l], ln2_b_ref[l])
        h1 = _matmul_t(y, fc_w_ref[l]) + fc_b_ref[l]                  # [B*S, 4W]
        h1 = h1 * jax.nn.sigmoid(1.702 * h1)                          # QuickGELU
        h2 = _matmul_t(h1, cproj_w_ref[l]) + cproj_b_ref[l]           # [B*S, W]
        x = x + h2

    # ln_post on the class token of each image, then projection to embed_dim
    cls_rows = jnp.concatenate([x[b * SEQ:b * SEQ + 1, :] for b in range(bsz)],
                               axis=0)                                # [B, W]
    cls_rows = _layernorm(cls_rows, ln_post_g_ref[...], ln_post_b_ref[...])
    out_ref[...] = jnp.dot(cls_rows, proj_ref[...],
                           preferred_element_type=jnp.float32)        # [B, EMBED]


# --------------------------------- parameters ---------------------------------
def init_params(key):
    ks = jax.random.split(key, 16)
    nrm = lambda k, shape, s=0.02: (s * jax.random.normal(k, shape)).astype(jnp.float32)
    p = {}
    # Conv2d(3, WIDTH, PATCH, stride=PATCH, bias=False) flattened to a matmul weight
    conv_w = nrm(ks[0], (WIDTH, 3, PATCH, PATCH))
    p["conv_w"] = conv_w.reshape(WIDTH, CPP).T            # [CPP, WIDTH]
    p["cls"] = nrm(ks[1], (1, WIDTH))
    p["pos"] = nrm(ks[2], (SEQ, WIDTH))
    p["ln_pre_g"] = jnp.ones((1, WIDTH), jnp.float32)
    p["ln_pre_b"] = jnp.zeros((1, WIDTH), jnp.float32)
    p["ln1_g"] = jnp.ones((LAYERS, 1, WIDTH), jnp.float32)
    p["ln1_b"] = jnp.zeros((LAYERS, 1, WIDTH), jnp.float32)
    p["attn_in_w"] = nrm(ks[3], (LAYERS, 3 * WIDTH, WIDTH))
    p["attn_in_b"] = nrm(ks[4], (LAYERS, 1, 3 * WIDTH))
    p["attn_out_w"] = nrm(ks[5], (LAYERS, WIDTH, WIDTH))
    p["attn_out_b"] = nrm(ks[6], (LAYERS, 1, WIDTH))
    p["ln2_g"] = jnp.ones((LAYERS, 1, WIDTH), jnp.float32)
    p["ln2_b"] = jnp.zeros((LAYERS, 1, WIDTH), jnp.float32)
    p["fc_w"] = nrm(ks[7], (LAYERS, MLP, WIDTH))
    p["fc_b"] = nrm(ks[8], (LAYERS, 1, MLP))
    p["cproj_w"] = nrm(ks[9], (LAYERS, WIDTH, MLP))
    p["cproj_b"] = nrm(ks[10], (LAYERS, 1, WIDTH))
    p["ln_post_g"] = jnp.ones((1, WIDTH), jnp.float32)
    p["ln_post_b"] = jnp.zeros((1, WIDTH), jnp.float32)
    p["proj"] = nrm(ks[11], (WIDTH, EMBED))
    return p


def _full_spec(a):
    zeros = (0,) * a.ndim
    return pl.BlockSpec(a.shape, lambda i, z=zeros: z)


# --------------------------------- wrapper ---------------------------------
def cnclip_encode_image(x_nchw, params):
    """x_nchw: [B, 3, IMG, IMG] float32 (PyTorch NCHW). Returns [B, EMBED]."""
    bsz = x_nchw.shape[0]
    # glue: extract non-overlapping PATCHxPATCH patches -> [B*NPATCH, 3*P*P]
    patches = x_nchw.reshape(bsz, 3, GRID, PATCH, GRID, PATCH)
    patches = patches.transpose(0, 2, 4, 1, 3, 5).reshape(bsz * NPATCH, CPP)

    # positional embedding tiled per image -> [B*SEQ, WIDTH]
    pos_tiled = jnp.tile(params["pos"], (bsz, 1))

    # block-diagonal additive attention mask (0 within image, -1e30 across images)
    img_id = jnp.arange(bsz * SEQ) // SEQ
    neg_mask = jnp.where(img_id[:, None] == img_id[None, :],
                         0.0, NEG_INF).astype(jnp.float32)

    # split the fused in_proj into lane-dense q/k/v operands, bake the attention
    # scale into q (weights stored [out, in] like torch.nn.Linear)
    qw = params["attn_in_w"][:, 0 * WIDTH:1 * WIDTH, :] * ATTN_SCALE
    kw = params["attn_in_w"][:, 1 * WIDTH:2 * WIDTH, :]
    vw = params["attn_in_w"][:, 2 * WIDTH:3 * WIDTH, :]
    qb = params["attn_in_b"][:, :, 0 * WIDTH:1 * WIDTH] * ATTN_SCALE
    kb = params["attn_in_b"][:, :, 1 * WIDTH:2 * WIDTH]
    vb = params["attn_in_b"][:, :, 2 * WIDTH:3 * WIDTH]

    inputs = [patches, params["conv_w"], params["cls"], pos_tiled, neg_mask,
              params["ln_pre_g"], params["ln_pre_b"],
              params["ln1_g"], params["ln1_b"],
              qw, qb, kw, kb, vw, vb,
              params["attn_out_w"], params["attn_out_b"],
              params["ln2_g"], params["ln2_b"],
              params["fc_w"], params["fc_b"],
              params["cproj_w"], params["cproj_b"],
              params["ln_post_g"], params["ln_post_b"],
              params["proj"]]
    in_specs = [_full_spec(a) for a in inputs]

    out = pl.pallas_call(
        functools.partial(vit_kernel, bsz=bsz),
        out_shape=jax.ShapeDtypeStruct((bsz, EMBED), jnp.float32),
        grid_spec=pltpu.PrefetchScalarGridSpec(
            num_scalar_prefetch=0,
            grid=(1,),                       # whole batch in one step (no per-image overhead)
            in_specs=in_specs,
            out_specs=pl.BlockSpec((bsz, EMBED), lambda i: (0, 0)),
        ),
        compiler_params=pltpu.CompilerParams(
            dimension_semantics=("arbitrary",)),
    )(*inputs)
    return out


# --------------------------------- pure-JAX reference ---------------------------------
def reference_encode_image(x_nchw, p):
    bsz = x_nchw.shape[0]
    patches = x_nchw.reshape(bsz, 3, GRID, PATCH, GRID, PATCH)
    patches = patches.transpose(0, 2, 4, 1, 3, 5).reshape(bsz, NPATCH, CPP)
    t = jnp.einsum("bnc,cw->bnw", patches, p["conv_w"])
    cls = jnp.broadcast_to(p["cls"][None], (bsz, 1, WIDTH))
    t = jnp.concatenate([cls, t], axis=1) + p["pos"][None]
    t = _layernorm(t, p["ln_pre_g"][0], p["ln_pre_b"][0])
    scale = 1.0 / (HEAD_DIM ** 0.5)
    for l in range(LAYERS):
        y = _layernorm(t, p["ln1_g"][l, 0], p["ln1_b"][l, 0])
        qkv = jnp.einsum("bsw,ow->bso", y, p["attn_in_w"][l]) + p["attn_in_b"][l, 0]
        q, k, v = jnp.split(qkv, 3, axis=-1)
        q = q.reshape(bsz, SEQ, HEADS, HEAD_DIM).transpose(0, 2, 1, 3)
        k = k.reshape(bsz, SEQ, HEADS, HEAD_DIM).transpose(0, 2, 1, 3)
        v = v.reshape(bsz, SEQ, HEADS, HEAD_DIM).transpose(0, 2, 1, 3)
        s = jnp.einsum("bhqd,bhkd->bhqk", q, k) * scale
        a = jax.nn.softmax(s, axis=-1)
        o = jnp.einsum("bhqk,bhkd->bhqd", a, v).transpose(0, 2, 1, 3).reshape(bsz, SEQ, WIDTH)
        o = jnp.einsum("bsw,ow->bso", o, p["attn_out_w"][l]) + p["attn_out_b"][l, 0]
        t = t + o
        y = _layernorm(t, p["ln2_g"][l, 0], p["ln2_b"][l, 0])
        h = jnp.einsum("bsw,ow->bso", y, p["fc_w"][l]) + p["fc_b"][l, 0]
        h = h * jax.nn.sigmoid(1.702 * h)
        h = jnp.einsum("bsm,om->bso", h, p["cproj_w"][l]) + p["cproj_b"][l, 0]
        t = t + h
    cls_t = _layernorm(t[:, 0, :], p["ln_post_g"][0], p["ln_post_b"][0])
    return cls_t @ p["proj"]


if __name__ == "__main__":
    key = jax.random.PRNGKey(0)
    k_img, k_par = jax.random.split(key)
    x = jax.random.normal(k_img, (B, 3, IMG, IMG), dtype=jnp.float32)
    params = init_params(k_par)

    feats = cnclip_encode_image(x, params)
    feats = jax.block_until_ready(feats)

    ref = reference_encode_image(x, params)
    ref = jax.block_until_ready(ref)

    assert feats.shape == (B, EMBED)
    max_err = float(jnp.max(jnp.abs(feats - ref)))
    assert max_err < 1e-3, f"mismatch vs reference: {max_err}"
    print("KERNEL_OK")
</pallas_src>

<mosaic_0001>
module attributes {stable_mosaic.version = 11 : i64} {
  func.func @vit_kernel(%arg0: i32, %arg1: memref<8x192xf32, #tpu.memory_space<vmem>>, %arg2: memref<192x32xf32, #tpu.memory_space<vmem>>, %arg3: memref<1x32xf32, #tpu.memory_space<vmem>>, %arg4: memref<10x32xf32, #tpu.memory_space<vmem>>, %arg5: memref<10x10xf32, #tpu.memory_space<vmem>>, %arg6: memref<1x32xf32, #tpu.memory_space<vmem>>, %arg7: memref<1x32xf32, #tpu.memory_space<vmem>>, %arg8: memref<2x1x32xf32, #tpu.memory_space<vmem>>, %arg9: memref<2x1x32xf32, #tpu.memory_space<vmem>>, %arg10: memref<2x32x32xf32, #tpu.memory_space<vmem>>, %arg11: memref<2x1x32xf32, #tpu.memory_space<vmem>>, %arg12: memref<2x32x32xf32, #tpu.memory_space<vmem>>, %arg13: memref<2x1x32xf32, #tpu.memory_space<vmem>>, %arg14: memref<2x32x32xf32, #tpu.memory_space<vmem>>, %arg15: memref<2x1x32xf32, #tpu.memory_space<vmem>>, %arg16: memref<2x32x32xf32, #tpu.memory_space<vmem>>, %arg17: memref<2x1x32xf32, #tpu.memory_space<vmem>>, %arg18: memref<2x1x32xf32, #tpu.memory_space<vmem>>, %arg19: memref<2x1x32xf32, #tpu.memory_space<vmem>>, %arg20: memref<2x128x32xf32, #tpu.memory_space<vmem>>, %arg21: memref<2x1x128xf32, #tpu.memory_space<vmem>>, %arg22: memref<2x32x128xf32, #tpu.memory_space<vmem>>, %arg23: memref<2x1x32xf32, #tpu.memory_space<vmem>>, %arg24: memref<1x32xf32, #tpu.memory_space<vmem>>, %arg25: memref<1x32xf32, #tpu.memory_space<vmem>>, %arg26: memref<32x16xf32, #tpu.memory_space<vmem>>, %arg27: memref<2x16xf32, #tpu.memory_space<vmem>>) attributes {dimension_semantics = [#tpu.dimension_semantics<arbitrary>], iteration_bounds = array<i64: 1>, scalar_prefetch = 0 : i64, scratch_operands = 0 : i64, tpu.core_type = #tpu.core_type<tc>, window_params = [{pipeline_mode = #tpu.pipeline_mode<synchronous>, transform_indices = @transform_0, window_bounds = array<i64: 8, 192>}, {pipeline_mode = #tpu.pipeline_mode<synchronous>, transform_indices = @transform_1, window_bounds = array<i64: 192, 32>}, {pipeline_mode = #tpu.pipeline_mode<synchronous>, transform_indices = @transform_2, window_bounds = array<i64: 1, 32>}, {pipeline_mode = #tpu.pipeline_mode<synchronous>, transform_indices = @transform_3, window_bounds = array<i64: 10, 32>}, {pipeline_mode = #tpu.pipeline_mode<synchronous>, transform_indices = @transform_4, window_bounds = array<i64: 10, 10>}, {pipeline_mode = #tpu.pipeline_mode<synchronous>, transform_indices = @transform_5, window_bounds = array<i64: 1, 32>}, {pipeline_mode = #tpu.pipeline_mode<synchronous>, transform_indices = @transform_6, window_bounds = array<i64: 1, 32>}, {pipeline_mode = #tpu.pipeline_mode<synchronous>, transform_indices = @transform_7, window_bounds = array<i64: 2, 1, 32>}, {pipeline_mode = #tpu.pipeline_mode<synchronous>, transform_indices = @transform_8, window_bounds = array<i64: 2, 1, 32>}, {pipeline_mode = #tpu.pipeline_mode<synchronous>, transform_indices = @transform_9, window_bounds = array<i64: 2, 32, 32>}, {pipeline_mode = #tpu.pipeline_mode<synchronous>, transform_indices = @transform_10, window_bounds = array<i64: 2, 1, 32>}, {pipeline_mode = #tpu.pipeline_mode<synchronous>, transform_indices = @transform_11, window_bounds = array<i64: 2, 32, 32>}, {pipeline_mode = #tpu.pipeline_mode<synchronous>, transform_indices = @transform_12, window_bounds = array<i64: 2, 1, 32>}, {pipeline_mode = #tpu.pipeline_mode<synchronous>, transform_indices = @transform_13, window_bounds = array<i64: 2, 32, 32>}, {pipeline_mode = #tpu.pipeline_mode<synchronous>, transform_indices = @transform_14, window_bounds = array<i64: 2, 1, 32>}, {pipeline_mode = #tpu.pipeline_mode<synchronous>, transform_indices = @transform_15, window_bounds = array<i64: 2, 32, 32>}, {pipeline_mode = #tpu.pipeline_mode<synchronous>, transform_indices = @transform_16, window_bounds = array<i64: 2, 1, 32>}, {pipeline_mode = #tpu.pipeline_mode<synchronous>, transform_indices = @transform_17, window_bounds = array<i64: 2, 1, 32>}, {pipeline_mode = #tpu.pipeline_mode<synchronous>, transform_indices = @transform_18, window_bounds = array<i64: 2, 1, 32>}, {pipeline_mode = #tpu.pipeline_mode<synchronous>, transform_indices = @transform_19, window_bounds = array<i64: 2, 128, 32>}, {pipeline_mode = #tpu.pipeline_mode<synchronous>, transform_indices = @transform_20, window_bounds = array<i64: 2, 1, 128>}, {pipeline_mode = #tpu.pipeline_mode<synchronous>, transform_indices = @transform_21, window_bounds = array<i64: 2, 32, 128>}, {pipeline_mode = #tpu.pipeline_mode<synchronous>, transform_indices = @transform_22, window_bounds = array<i64: 2, 1, 32>}, {pipeline_mode = #tpu.pipeline_mode<synchronous>, transform_indices = @transform_23, window_bounds = array<i64: 1, 32>}, {pipeline_mode = #tpu.pipeline_mode<synchronous>, transform_indices = @transform_24, window_bounds = array<i64: 1, 32>}, {pipeline_mode = #tpu.pipeline_mode<synchronous>, transform_indices = @transform_25, window_bounds = array<i64: 32, 16>}, {pipeline_mode = #tpu.pipeline_mode<synchronous>, transform_indices = @transform_26, window_bounds = array<i64: 2, 16>}]} {
    %c0 = arith.constant 0 : index
    %c0_0 = arith.constant 0 : index
    %0 = vector.load %arg1[%c0, %c0_0] : memref<8x192xf32, #tpu.memory_space<vmem>>, vector<8x192xf32>
    %c0_1 = arith.constant 0 : index
    %c0_2 = arith.constant 0 : index
    %1 = vector.load %arg2[%c0_1, %c0_2] : memref<192x32xf32, #tpu.memory_space<vmem>>, vector<192x32xf32>
    %cst = arith.constant dense<0.000000e+00> : vector<8x32xf32>
    %2 = tpu.matmul %0, %1, %cst {dimension_numbers = #tpu.dot_dimension_numbers<[1], [0], [0], [1], [0, 0, 1, 1], [], []>} : vector<8x192xf32>, vector<192x32xf32>, vector<8x32xf32> -> vector<8x32xf32>
    %c0_3 = arith.constant 0 : index
    %c0_4 = arith.constant 0 : index
    %3 = vector.load %arg3[%c0_3, %c0_4] : memref<1x32xf32, #tpu.memory_space<vmem>>, vector<1x32xf32>
    %4 = vector.extract_strided_slice %2 {offsets = [0, 0], sizes = [4, 32], strides = [1, 1]} : vector<8x32xf32> to vector<4x32xf32>
    %c0_5 = arith.constant 0 : index
    %c0_6 = arith.constant 0 : index
    %5 = vector.load %arg3[%c0_5, %c0_6] : memref<1x32xf32, #tpu.memory_space<vmem>>, vector<1x32xf32>
    %6 = vector.extract_strided_slice %2 {offsets = [4, 0], sizes = [4, 32], strides = [1, 1]} : vector<8x32xf32> to vector<4x32xf32>
    %7 = tpu.concatenate %3, %4, %5, %6 in 0 : vector<1x32xf32>, vector<4x32xf32>, vector<1x32xf32>, vector<4x32xf32> -> vector<10x32xf32>
    %c0_7 = arith.constant 0 : index
    %c0_8 = arith.constant 0 : index
    %8 = vector.load %arg4[%c0_7, %c0_8] : memref<10x32xf32, #tpu.memory_space<vmem>>, vector<10x32xf32>
    %9 = arith.addf %7, %8 : vector<10x32xf32>
    %c0_9 = arith.constant 0 : index
    %c0_10 = arith.constant 0 : index
    %10 = vector.load %arg6[%c0_9, %c0_10] : memref<1x32xf32, #tpu.memory_space<vmem>>, vector<1x32xf32>
    %c0_11 = arith.constant 0 : index
    %c0_12 = arith.constant 0 : index
    %11 = vector.load %arg7[%c0_11, %c0_12] : memref<1x32xf32, #tpu.memory_space<vmem>>, vector<1x32xf32>
    %cst_13 = arith.constant dense<0.000000e+00> : vector<10xf32>
    %12 = vector.multi_reduction <add>, %9, %cst_13 [1] : vector<10x32xf32> to vector<10xf32>
    %13 = vector.shape_cast %12 : vector<10xf32> to vector<10x1xf32>
    %cst_14 = arith.constant 3.200000e+01 : f32
    %14 = vector.broadcast %cst_14 : f32 to vector<10x1xf32>
    %15 = arith.divf %13, %14 : vector<10x1xf32>
    %16 = vector.broadcast %15 : vector<10x1xf32> to vector<10x32xf32>
    %17 = arith.subf %9, %16 : vector<10x32xf32>
    %18 = arith.mulf %17, %17 : vector<10x32xf32>
    %cst_15 = arith.constant dense<0.000000e+00> : vector<10xf32>
    %19 = vector.multi_reduction <add>, %18, %cst_15 [1] : vector<10x32xf32> to vector<10xf32>
    %20 = vector.shape_cast %19 : vector<10xf32> to vector<10x1xf32>
    %cst_16 = arith.constant 3.200000e+01 : f32
    %21 = vector.broadcast %cst_16 : f32 to vector<10x1xf32>
    %22 = arith.divf %20, %21 : vector<10x1xf32>
    %23 = vector.broadcast %15 : vector<10x1xf32> to vector<10x32xf32>
    %24 = arith.subf %9, %23 : vector<10x32xf32>
    %cst_17 = arith.constant 9.99999974E-6 : f32
    %25 = vector.broadcast %cst_17 : f32 to vector<10x1xf32>
    %26 = arith.addf %22, %25 : vector<10x1xf32>
    %27 = math.rsqrt %26 : vector<10x1xf32>
    %28 = vector.broadcast %27 : vector<10x1xf32> to vector<10x32xf32>
    %29 = arith.mulf %24, %28 : vector<10x32xf32>
    %30 = vector.broadcast %10 : vector<1x32xf32> to vector<10x32xf32>
    %31 = arith.mulf %29, %30 : vector<10x32xf32>
    %32 = vector.broadcast %11 : vector<1x32xf32> to vector<10x32xf32>
    %33 = arith.addf %31, %32 : vector<10x32xf32>
    %c0_18 = arith.constant 0 : index
    %c0_19 = arith.constant 0 : index
    %34 = vector.load %arg5[%c0_18, %c0_19] : memref<10x10xf32, #tpu.memory_space<vmem>>, vector<10x10xf32>
    %c0_20 = arith.constant 0 : index
    %c0_21 = arith.constant 0 : index
    %c0_22 = arith.constant 0 : index
    %35 = vector.load %arg8[%c0_20, %c0_21, %c0_22] : memref<2x1x32xf32, #tpu.memory_space<vmem>>, vector<1x1x32xf32>
    %36 = vector.shape_cast %35 : vector<1x1x32xf32> to vector<1x32xf32>
    %c0_23 = arith.constant 0 : index
    %c0_24 = arith.constant 0 : index
    %c0_25 = arith.constant 0 : index
    %37 = vector.load %arg9[%c0_23, %c0_24, %c0_25] : memref<2x1x32xf32, #tpu.memory_space<vmem>>, vector<1x1x32xf32>
    %38 = vector.shape_cast %37 : vector<1x1x32xf32> to vector<1x32xf32>
    %cst_26 = arith.constant dense<0.000000e+00> : vector<10xf32>
    %39 = vector.multi_reduction <add>, %33, %cst_26 [1] : vector<10x32xf32> to vector<10xf32>
    %40 = vector.shape_cast %39 : vector<10xf32> to vector<10x1xf32>
    %cst_27 = arith.constant 3.200000e+01 : f32
    %41 = vector.broadcast %cst_27 : f32 to vector<10x1xf32>
    %42 = arith.divf %40, %41 : vector<10x1xf32>
    %43 = vector.broadcast %42 : vector<10x1xf32> to vector<10x32xf32>
    %44 = arith.subf %33, %43 : vector<10x32xf32>
    %45 = arith.mulf %44, %44 : vector<10x32xf32>
    %cst_28 = arith.constant dense<0.000000e+00> : vector<10xf32>
    %46 = vector.multi_reduction <add>, %45, %cst_28 [1] : vector<10x32xf32> to vector<10xf32>
    %47 = vector.shape_cast %46 : vector<10xf32> to vector<10x1xf32>
    %cst_29 = arith.constant 3.200000e+01 : f32
    %48 = vector.broadcast %cst_29 : f32 to vector<10x1xf32>
    %49 = arith.divf %47, %48 : vector<10x1xf32>
    %50 = vector.broadcast %42 : vector<10x1xf32> to vector<10x32xf32>
    %51 = arith.subf %33, %50 : vector<10x32xf32>
    %cst_30 = arith.constant 9.99999974E-6 : f32
    %52 = vector.broadcast %cst_30 : f32 to vector<10x1xf32>
    %53 = arith.addf %49, %52 : vector<10x1xf32>
    %54 = math.rsqrt %53 : vector<10x1xf32>
    %55 = vector.broadcast %54 : vector<10x1xf32> to vector<10x32xf32>
    %56 = arith.mulf %51, %55 : vector<10x32xf32>
    %57 = vector.broadcast %36 : vector<1x32xf32> to vector<10x32xf32>
    %58 = arith.mulf %56, %57 : vector<10x32xf32>
    %59 = vector.broadcast %38 : vector<1x32xf32> to vector<10x32xf32>
    %60 = arith.addf %58, %59 : vector<10x32xf32>
    %c0_31 = arith.constant 0 : index
    %c0_32 = arith.constant 0 : index
    %c0_33 = arith.constant 0 : index
    %61 = vector.load %arg10[%c0_31, %c0_32, %c0_33] : memref<2x32x32xf32, #tpu.memory_space<vmem>>, vector<1x32x32xf32>
    %62 = vector.shape_cast %61 : vector<1x32x32xf32> to vector<32x32xf32>
    %cst_34 = arith.constant dense<0.000000e+00> : vector<10x32xf32>
    %63 = tpu.matmul %60, %62, %cst_34 {dimension_numbers = #tpu.dot_dimension_numbers<[1], [1], [0], [0], [0, 0, 1, 0], [], []>} : vector<10x32xf32>, vector<32x32xf32>, vector<10x32xf32> -> vector<10x32xf32>
    %c0_35 = arith.constant 0 : index
    %c0_36 = arith.constant 0 : index
    %c0_37 = arith.constant 0 : index
    %64 = vector.load %arg11[%c0_35, %c0_36, %c0_37] : memref<2x1x32xf32, #tpu.memory_space<vmem>>, vector<1x1x32xf32>
    %65 = vector.shape_cast %64 : vector<1x1x32xf32> to vector<1x32xf32>
    %66 = vector.broadcast %65 : vector<1x32xf32> to vector<10x32xf32>
    %67 = arith.addf %63, %66 : vector<10x32xf32>
    %c0_38 = arith.constant 0 : index
    %c0_39 = arith.constant 0 : index
    %c0_40 = arith.constant 0 : index
    %68 = vector.load %arg12[%c0_38, %c0_39, %c0_40] : memref<2x32x32xf32, #tpu.memory_space<vmem>>, vector<1x32x32xf32>
    %69 = vector.shape_cast %68 : vector<1x32x32xf32> to vector<32x32xf32>
    %cst_41 = arith.constant dense<0.000000e+00> : vector<10x32xf32>
    %70 = tpu.matmul %60, %69, %cst_41 {dimension_numbers = #tpu.dot_dimension_numbers<[1], [1], [0], [0], [0, 0, 1, 0], [], []>} : vector<10x32xf32>, vector<32x32xf32>, vector<10x32xf32> -> vector<10x32xf32>
    %c0_42 = arith.constant 0 : index
    %c0_43 = arith.constant 0 : index
    %c0_44 = arith.constant 0 : index
    %71 = vector.load %arg13[%c0_42, %c0_43, %c0_44] : memref<2x1x32xf32, #tpu.memory_space<vmem>>, vector<1x1x32xf32>
    %72 = vector.shape_cast %71 : vector<1x1x32xf32> to vector<1x32xf32>
    %73 = vector.broadcast %72 : vector<1x32xf32> to vector<10x32xf32>
    %74 = arith.addf %70, %73 : vector<10x32xf32>
    %c0_45 = arith.constant 0 : index
    %c0_46 = arith.constant 0 : index
    %c0_47 = arith.constant 0 : index
    %75 = vector.load %arg14[%c0_45, %c0_46, %c0_47] : memref<2x32x32xf32, #tpu.memory_space<vmem>>, vector<1x32x32xf32>
    %76 = vector.shape_cast %75 : vector<1x32x32xf32> to vector<32x32xf32>
    %cst_48 = arith.constant dense<0.000000e+00> : vector<10x32xf32>
    %77 = tpu.matmul %60, %76, %cst_48 {dimension_numbers = #tpu.dot_dimension_numbers<[1], [1], [0], [0], [0, 0, 1, 0], [], []>} : vector<10x32xf32>, vector<32x32xf32>, vector<10x32xf32> -> vector<10x32xf32>
    %c0_49 = arith.constant 0 : index
    %c0_50 = arith.constant 0 : index
    %c0_51 = arith.constant 0 : index
    %78 = vector.load %arg15[%c0_49, %c0_50, %c0_51] : memref<2x1x32xf32, #tpu.memory_space<vmem>>, vector<1x1x32xf32>
    %79 = vector.shape_cast %78 : vector<1x1x32xf32> to vector<1x32xf32>
    %80 = vector.broadcast %79 : vector<1x32xf32> to vector<10x32xf32>
    %81 = arith.addf %77, %80 : vector<10x32xf32>
    %82 = vector.extract_strided_slice %67 {offsets = [0, 0], sizes = [10, 8], strides = [1, 1]} : vector<10x32xf32> to vector<10x8xf32>
    %83 = vector.extract_strided_slice %74 {offsets = [0, 0], sizes = [10, 8], strides = [1, 1]} : vector<10x32xf32> to vector<10x8xf32>
    %84 = vector.extract_strided_slice %81 {offsets = [0, 0], sizes = [10, 8], strides = [1, 1]} : vector<10x32xf32> to vector<10x8xf32>
    %cst_52 = arith.constant dense<0.000000e+00> : vector<10x10xf32>
    %85 = tpu.matmul %82, %83, %cst_52 {dimension_numbers = #tpu.dot_dimension_numbers<[1], [1], [0], [0], [0, 0, 1, 0], [], []>} : vector<10x8xf32>, vector<10x8xf32>, vector<10x10xf32> -> vector<10x10xf32>
    %86 = arith.addf %85, %34 : vector<10x10xf32>
    %cst_53 = arith.constant dense<0xFF800000> : vector<10xf32>
    %87 = vector.multi_reduction <maximumf>, %86, %cst_53 [1] : vector<10x10xf32> to vector<10xf32>
    %88 = vector.shape_cast %87 : vector<10xf32> to vector<10x1xf32>
    %89 = vector.broadcast %88 : vector<10x1xf32> to vector<10x10xf32>
    %90 = arith.subf %86, %89 : vector<10x10xf32>
    %91 = math.exp %90 : vector<10x10xf32>
    %cst_54 = arith.constant dense<0.000000e+00> : vector<10xf32>
    %92 = vector.multi_reduction <add>, %91, %cst_54 [1] : vector<10x10xf32> to vector<10xf32>
    %93 = vector.shape_cast %92 : vector<10xf32> to vector<10x1xf32>
    %94 = tpu.reciprocal %93 {approx = true} : vector<10x1xf32> -> vector<10x1xf32>
    %95 = vector.broadcast %94 : vector<10x1xf32> to vector<10x10xf32>
    %96 = arith.mulf %91, %95 : vector<10x10xf32>
    %cst_55 = arith.constant dense<0.000000e+00> : vector<10x8xf32>
    %97 = tpu.matmul %96, %84, %cst_55 {dimension_numbers = #tpu.dot_dimension_numbers<[1], [0], [0], [1], [0, 0, 1, 1], [], []>} : vector<10x10xf32>, vector<10x8xf32>, vector<10x8xf32> -> vector<10x8xf32>
    %98 = vector.extract_strided_slice %67 {offsets = [0, 8], sizes = [10, 8], strides = [1, 1]} : vector<10x32xf32> to vector<10x8xf32>
    %99 = vector.extract_strided_slice %74 {offsets = [0, 8], sizes = [10, 8], strides = [1, 1]} : vector<10x32xf32> to vector<10x8xf32>
    %100 = vector.extract_strided_slice %81 {offsets = [0, 8], sizes = [10, 8], strides = [1, 1]} : vector<10x32xf32> to vector<10x8xf32>
    %cst_56 = arith.constant dense<0.000000e+00> : vector<10x10xf32>
    %101 = tpu.matmul %98, %99, %cst_56 {dimension_numbers = #tpu.dot_dimension_numbers<[1], [1], [0], [0], [0, 0, 1, 0], [], []>} : vector<10x8xf32>, vector<10x8xf32>, vector<10x10xf32> -> vector<10x10xf32>
    %102 = arith.addf %101, %34 : vector<10x10xf32>
    %cst_57 = arith.constant dense<0xFF800000> : vector<10xf32>
    %103 = vector.multi_reduction <maximumf>, %102, %cst_57 [1] : vector<10x10xf32> to vector<10xf32>
    %104 = vector.shape_cast %103 : vector<10xf32> to vector<10x1xf32>
    %105 = vector.broadcast %104 : vector<10x1xf32> to vector<10x10xf32>
    %106 = arith.subf %102, %105 : vector<10x10xf32>
    %107 = math.exp %106 : vector<10x10xf32>
    %cst_58 = arith.constant dense<0.000000e+00> : vector<10xf32>
    %108 = vector.multi_reduction <add>, %107, %cst_58 [1] : vector<10x10xf32> to vector<10xf32>
    %109 = vector.shape_cast %108 : vector<10xf32> to vector<10x1xf32>
    %110 = tpu.reciprocal %109 {approx = true} : vector<10x1xf32> -> vector<10x1xf32>
    %111 = vector.broadcast %110 : vector<10x1xf32> to vector<10x10xf32>
    %112 = arith.mulf %107, %111 : vector<10x10xf32>
    %cst_59 = arith.constant dense<0.000000e+00> : vector<10x8xf32>
    %113 = tpu.matmul %112, %100, %cst_59 {dimension_numbers = #tpu.dot_dimension_numbers<[1], [0], [0], [1], [0, 0, 1, 1], [], []>} : vector<10x10xf32>, vector<10x8xf32>, vector<10x8xf32> -> vector<10x8xf32>
    %114 = vector.extract_strided_slice %67 {offsets = [0, 16], sizes = [10, 8], strides = [1, 1]} : vector<10x32xf32> to vector<10x8xf32>
    %115 = vector.extract_strided_slice %74 {offsets = [0, 16], sizes = [10, 8], strides = [1, 1]} : vector<10x32xf32> to vector<10x8xf32>
    %116 = vector.extract_strided_slice %81 {offsets = [0, 16], sizes = [10, 8], strides = [1, 1]} : vector<10x32xf32> to vector<10x8xf32>
    %cst_60 = arith.constant dense<0.000000e+00> : vector<10x10xf32>
    %117 = tpu.matmul %114, %115, %cst_60 {dimension_numbers = #tpu.dot_dimension_numbers<[1], [1], [0], [0], [0, 0, 1, 0], [], []>} : vector<10x8xf32>, vector<10x8xf32>, vector<10x10xf32> -> vector<10x10xf32>
    %118 = arith.addf %117, %34 : vector<10x10xf32>
    %cst_61 = arith.constant dense<0xFF800000> : vector<10xf32>
    %119 = vector.multi_reduction <maximumf>, %118, %cst_61 [1] : vector<10x10xf32> to vector<10xf32>
    %120 = vector.shape_cast %119 : vector<10xf32> to vector<10x1xf32>
    %121 = vector.broadcast %120 : vector<10x1xf32> to vector<10x10xf32>
    %122 = arith.subf %118, %121 : vector<10x10xf32>
    %123 = math.exp %122 : vector<10x10xf32>
    %cst_62 = arith.constant dense<0.000000e+00> : vector<10xf32>
    %124 = vector.multi_reduction <add>, %123, %cst_62 [1] : vector<10x10xf32> to vector<10xf32>
    %125 = vector.shape_cast %124 : vector<10xf32> to vector<10x1xf32>
    %126 = tpu.reciprocal %125 {approx = true} : vector<10x1xf32> -> vector<10x1xf32>
    %127 = vector.broadcast %126 : vector<10x1xf32> to vector<10x10xf32>
    %128 = arith.mulf %123, %127 : vector<10x10xf32>
    %cst_63 = arith.constant dense<0.000000e+00> : vector<10x8xf32>
    %129 = tpu.matmul %128, %116, %cst_63 {dimension_numbers = #tpu.dot_dimension_numbers<[1], [0], [0], [1], [0, 0, 1, 1], [], []>} : vector<10x10xf32>, vector<10x8xf32>, vector<10x8xf32> -> vector<10x8xf32>
    %130 = vector.extract_strided_slice %67 {offsets = [0, 24], sizes = [10, 8], strides = [1, 1]} : vector<10x32xf32> to vector<10x8xf32>
    %131 = vector.extract_strided_slice %74 {offsets = [0, 24], sizes = [10, 8], strides = [1, 1]} : vector<10x32xf32> to vector<10x8xf32>
    %132 = vector.extract_strided_slice %81 {offsets = [0, 24], sizes = [10, 8], strides = [1, 1]} : vector<10x32xf32> to vector<10x8xf32>
    %cst_64 = arith.constant dense<0.000000e+00> : vector<10x10xf32>
    %133 = tpu.matmul %130, %131, %cst_64 {dimension_numbers = #tpu.dot_dimension_numbers<[1], [1], [0], [0], [0, 0, 1, 0], [], []>} : vector<10x8xf32>, vector<10x8xf32>, vector<10x10xf32> -> vector<10x10xf32>
    %134 = arith.addf %133, %34 : vector<10x10xf32>
    %cst_65 = arith.constant dense<0xFF800000> : vector<10xf32>
    %135 = vector.multi_reduction <maximumf>, %134, %cst_65 [1] : vector<10x10xf32> to vector<10xf32>
    %136 = vector.shape_cast %135 : vector<10xf32> to vector<10x1xf32>
    %137 = vector.broadcast %136 : vector<10x1xf32> to vector<10x10xf32>
    %138 = arith.subf %134, %137 : vector<10x10xf32>
    %139 = math.exp %138 : vector<10x10xf32>
    %cst_66 = arith.constant dense<0.000000e+00> : vector<10xf32>
    %140 = vector.multi_reduction <add>, %139, %cst_66 [1] : vector<10x10xf32> to vector<10xf32>
    %141 = vector.shape_cast %140 : vector<10xf32> to vector<10x1xf32>
    %142 = tpu.reciprocal %141 {approx = true} : vector<10x1xf32> -> vector<10x1xf32>
    %143 = vector.broadcast %142 : vector<10x1xf32> to vector<10x10xf32>
    %144 = arith.mulf %139, %143 : vector<10x10xf32>
    %cst_67 = arith.constant dense<0.000000e+00> : vector<10x8xf32>
    %145 = tpu.matmul %144, %132, %cst_67 {dimension_numbers = #tpu.dot_dimension_numbers<[1], [0], [0], [1], [0, 0, 1, 1], [], []>} : vector<10x10xf32>, vector<10x8xf32>, vector<10x8xf32> -> vector<10x8xf32>
    %146 = tpu.concatenate %97, %113, %129, %145 in 1 : vector<10x8xf32>, vector<10x8xf32>, vector<10x8xf32>, vector<10x8xf32> -> vector<10x32xf32>
    %c0_68 = arith.constant 0 : index
    %c0_69 = arith.constant 0 : index
    %c0_70 = arith.constant 0 : index
    %147 = vector.load %arg16[%c0_68, %c0_69, %c0_70] : memref<2x32x32xf32, #tpu.memory_space<vmem>>, vector<1x32x32xf32>
    %148 = vector.shape_cast %147 : vector<1x32x32xf32> to vector<32x32xf32>
    %cst_71 = arith.constant dense<0.000000e+00> : vector<10x32xf32>
    %149 = tpu.matmul %146, %148, %cst_71 {dimension_numbers = #tpu.dot_dimension_numbers<[1], [1], [0], [0], [0, 0, 1, 0], [], []>} : vector<10x32xf32>, vector<32x32xf32>, vector<10x32xf32> -> vector<10x32xf32>
    %c0_72 = arith.constant 0 : index
    %c0_73 = arith.constant 0 : index
    %c0_74 = arith.constant 0 : index
    %150 = vector.load %arg17[%c0_72, %c0_73, %c0_74] : memref<2x1x32xf32, #tpu.memory_space<vmem>>, vector<1x1x32xf32>
    %151 = vector.shape_cast %150 : vector<1x1x32xf32> to vector<1x32xf32>
    %152 = vector.broadcast %151 : vector<1x32xf32> to vector<10x32xf32>
    %153 = arith.addf %149, %152 : vector<10x32xf32>
    %154 = arith.addf %33, %153 : vector<10x32xf32>
    %c0_75 = arith.constant 0 : index
    %c0_76 = arith.constant 0 : index
    %c0_77 = arith.constant 0 : index
    %155 = vector.load %arg18[%c0_75, %c0_76, %c0_77] : memref<2x1x32xf32, #tpu.memory_space<vmem>>, vector<1x1x32xf32>
    %156 = vector.shape_cast %155 : vector<1x1x32xf32> to vector<1x32xf32>
    %c0_78 = arith.constant 0 : index
    %c0_79 = arith.constant 0 : index
    %c0_80 = arith.constant 0 : index
    %157 = vector.load %arg19[%c0_78, %c0_79, %c0_80] : memref<2x1x32xf32, #tpu.memory_space<vmem>>, vector<1x1x32xf32>
    %158 = vector.shape_cast %157 : vector<1x1x32xf32> to vector<1x32xf32>
    %cst_81 = arith.constant dense<0.000000e+00> : vector<10xf32>
    %159 = vector.multi_reduction <add>, %154, %cst_81 [1] : vector<10x32xf32> to vector<10xf32>
    %160 = vector.shape_cast %159 : vector<10xf32> to vector<10x1xf32>
    %cst_82 = arith.constant 3.200000e+01 : f32
    %161 = vector.broadcast %cst_82 : f32 to vector<10x1xf32>
    %162 = arith.divf %160, %161 : vector<10x1xf32>
    %163 = vector.broadcast %162 : vector<10x1xf32> to vector<10x32xf32>
    %164 = arith.subf %154, %163 : vector<10x32xf32>
    %165 = arith.mulf %164, %164 : vector<10x32xf32>
    %cst_83 = arith.constant dense<0.000000e+00> : vector<10xf32>
    %166 = vector.multi_reduction <add>, %165, %cst_83 [1] : vector<10x32xf32> to vector<10xf32>
    %167 = vector.shape_cast %166 : vector<10xf32> to vector<10x1xf32>
    %cst_84 = arith.constant 3.200000e+01 : f32
    %168 = vector.broadcast %cst_84 : f32 to vector<10x1xf32>
    %169 = arith.divf %167, %168 : vector<10x1xf32>
    %170 = vector.broadcast %162 : vector<10x1xf32> to vector<10x32xf32>
    %171 = arith.subf %154, %170 : vector<10x32xf32>
    %cst_85 = arith.constant 9.99999974E-6 : f32
    %172 = vector.broadcast %cst_85 : f32 to vector<10x1xf32>
    %173 = arith.addf %169, %172 : vector<10x1xf32>
    %174 = math.rsqrt %173 : vector<10x1xf32>
    %175 = vector.broadcast %174 : vector<10x1xf32> to vector<10x32xf32>
    %176 = arith.mulf %171, %175 : vector<10x32xf32>
    %177 = vector.broadcast %156 : vector<1x32xf32> to vector<10x32xf32>
    %178 = arith.mulf %176, %177 : vector<10x32xf32>
    %179 = vector.broadcast %158 : vector<1x32xf32> to vector<10x32xf32>
    %180 = arith.addf %178, %179 : vector<10x32xf32>
    %c0_86 = arith.constant 0 : index
    %c0_87 = arith.constant 0 : index
    %c0_88 = arith.constant 0 : index
    %181 = vector.load %arg20[%c0_86, %c0_87, %c0_88] : memref<2x128x32xf32, #tpu.memory_space<vmem>>, vector<1x128x32xf32>
    %182 = vector.shape_cast %181 : vector<1x128x32xf32> to vector<128x32xf32>
    %cst_89 = arith.constant dense<0.000000e+00> : vector<10x128xf32>
    %183 = tpu.matmul %180, %182, %cst_89 {dimension_numbers = #tpu.dot_dimension_numbers<[1], [1], [0], [0], [0, 0, 1, 0], [], []>} : vector<10x32xf32>, vector<128x32xf32>, vector<10x128xf32> -> vector<10x128xf32>
    %c0_90 = arith.constant 0 : index
    %c0_91 = arith.constant 0 : index
    %c0_92 = arith.constant 0 : index
    %184 = vector.load %arg21[%c0_90, %c0_91, %c0_92] : memref<2x1x128xf32, #tpu.memory_space<vmem>>, vector<1x1x128xf32>
    %185 = vector.shape_cast %184 : vector<1x1x128xf32> to vector<1x128xf32>
    %186 = vector.broadcast %185 : vector<1x128xf32> to vector<10x128xf32>
    %187 = arith.addf %183, %186 : vector<10x128xf32>
    %cst_93 = arith.constant 1.702000e+00 : f32
    %188 = vector.broadcast %cst_93 : f32 to vector<10x128xf32>
    %189 = arith.mulf %188, %187 : vector<10x128xf32>
    %190 = arith.negf %189 : vector<10x128xf32>
    %191 = math.exp %190 : vector<10x128xf32>
    %cst_94 = arith.constant 1.000000e+00 : f32
    %192 = vector.broadcast %cst_94 : f32 to vector<10x128xf32>
    %193 = arith.addf %192, %191 : vector<10x128xf32>
    %194 = arith.divf %192, %193 : vector<10x128xf32>
    %195 = arith.mulf %187, %194 : vector<10x128xf32>
    %c0_95 = arith.constant 0 : index
    %c0_96 = arith.constant 0 : index
    %c0_97 = arith.constant 0 : index
    %196 = vector.load %arg22[%c0_95, %c0_96, %c0_97] : memref<2x32x128xf32, #tpu.memory_space<vmem>>, vector<1x32x128xf32>
    %197 = vector.shape_cast %196 : vector<1x32x128xf32> to vector<32x128xf32>
    %cst_98 = arith.constant dense<0.000000e+00> : vector<10x32xf32>
    %198 = tpu.matmul %195, %197, %cst_98 {dimension_numbers = #tpu.dot_dimension_numbers<[1], [1], [0], [0], [0, 0, 1, 0], [], []>} : vector<10x128xf32>, vector<32x128xf32>, vector<10x32xf32> -> vector<10x32xf32>
    %c0_99 = arith.constant 0 : index
    %c0_100 = arith.constant 0 : index
    %c0_101 = arith.constant 0 : index
    %199 = vector.load %arg23[%c0_99, %c0_100, %c0_101] : memref<2x1x32xf32, #tpu.memory_space<vmem>>, vector<1x1x32xf32>
    %200 = vector.shape_cast %199 : vector<1x1x32xf32> to vector<1x32xf32>
    %201 = vector.broadcast %200 : vector<1x32xf32> to vector<10x32xf32>
    %202 = arith.addf %198, %201 : vector<10x32xf32>
    %203 = arith.addf %154, %202 : vector<10x32xf32>
    %c1 = arith.constant 1 : index
    %c0_102 = arith.constant 0 : index
    %c0_103 = arith.constant 0 : index
    %204 = vector.load %arg8[%c1, %c0_102, %c0_103] : memref<2x1x32xf32, #tpu.memory_space<vmem>>, vector<1x1x32xf32>
    %205 = vector.shape_cast %204 : vector<1x1x32xf32> to vector<1x32xf32>
    %c1_104 = arith.constant 1 : index
    %c0_105 = arith.constant 0 : index
    %c0_106 = arith.constant 0 : index
    %206 = vector.load %arg9[%c1_104, %c0_105, %c0_106] : memref<2x1x32xf32, #tpu.memory_space<vmem>>, vector<1x1x32xf32>
    %207 = vector.shape_cast %206 : vector<1x1x32xf32> to vector<1x32xf32>
    %cst_107 = arith.constant dense<0.000000e+00> : vector<10xf32>
    %208 = vector.multi_reduction <add>, %203, %cst_107 [1] : vector<10x32xf32> to vector<10xf32>
    %209 = vector.shape_cast %208 : vector<10xf32> to vector<10x1xf32>
    %cst_108 = arith.constant 3.200000e+01 : f32
    %210 = vector.broadcast %cst_108 : f32 to vector<10x1xf32>
    %211 = arith.divf %209, %210 : vector<10x1xf32>
    %212 = vector.broadcast %211 : vector<10x1xf32> to vector<10x32xf32>
    %213 = arith.subf %203, %212 : vector<10x32xf32>
    %214 = arith.mulf %213, %213 : vector<10x32xf32>
    %cst_109 = arith.constant dense<0.000000e+00> : vector<10xf32>
    %215 = vector.multi_reduction <add>, %214, %cst_109 [1] : vector<10x32xf32> to vector<10xf32>
    %216 = vector.shape_cast %215 : vector<10xf32> to vector<10x1xf32>
    %cst_110 = arith.constant 3.200000e+01 : f32
    %217 = vector.broadcast %cst_110 : f32 to vector<10x1xf32>
    %218 = arith.divf %216, %217 : vector<10x1xf32>
    %219 = vector.broadcast %211 : vector<10x1xf32> to vector<10x32xf32>
    %220 = arith.subf %203, %219 : vector<10x32xf32>
    %cst_111 = arith.constant 9.99999974E-6 : f32
    %221 = vector.broadcast %cst_111 : f32 to vector<10x1xf32>
    %222 = arith.addf %218, %221 : vector<10x1xf32>
    %223 = math.rsqrt %222 : vector<10x1xf32>
    %224 = vector.broadcast %223 : vector<10x1xf32> to vector<10x32xf32>
    %225 = arith.mulf %220, %224 : vector<10x32xf32>
    %226 = vector.broadcast %205 : vector<1x32xf32> to vector<10x32xf32>
    %227 = arith.mulf %225, %226 : vector<10x32xf32>
    %228 = vector.broadcast %207 : vector<1x32xf32> to vector<10x32xf32>
    %229 = arith.addf %227, %228 : vector<10x32xf32>
    %c1_112 = arith.constant 1 : index
    %c0_113 = arith.constant 0 : index
    %c0_114 = arith.constant 0 : index
    %230 = vector.load %arg10[%c1_112, %c0_113, %c0_114] : memref<2x32x32xf32, #tpu.memory_space<vmem>>, vector<1x32x32xf32>
    %231 = vector.shape_cast %230 : vector<1x32x32xf32> to vector<32x32xf32>
    %cst_115 = arith.constant dense<0.000000e+00> : vector<10x32xf32>
    %232 = tpu.matmul %229, %231, %cst_115 {dimension_numbers = #tpu.dot_dimension_numbers<[1], [1], [0], [0], [0, 0, 1, 0], [], []>} : vector<10x32xf32>, vector<32x32xf32>, vector<10x32xf32> -> vector<10x32xf32>
    %c1_116 = arith.constant 1 : index
    %c0_117 = arith.constant 0 : index
    %c0_118 = arith.constant 0 : index
    %233 = vector.load %arg11[%c1_116, %c0_117, %c0_118] : memref<2x1x32xf32, #tpu.memory_space<vmem>>, vector<1x1x32xf32>
    %234 = vector.shape_cast %233 : vector<1x1x32xf32> to vector<1x32xf32>
    %235 = vector.broadcast %234 : vector<1x32xf32> to vector<10x32xf32>
    %236 = arith.addf %232, %235 : vector<10x32xf32>
    %c1_119 = arith.constant 1 : index
    %c0_120 = arith.constant 0 : index
    %c0_121 = arith.constant 0 : index
    %237 = vector.load %arg12[%c1_119, %c0_120, %c0_121] : memref<2x32x32xf32, #tpu.memory_space<vmem>>, vector<1x32x32xf32>
    %238 = vector.shape_cast %237 : vector<1x32x32xf32> to vector<32x32xf32>
    %cst_122 = arith.constant dense<0.000000e+00> : vector<10x32xf32>
    %239 = tpu.matmul %229, %238, %cst_122 {dimension_numbers = #tpu.dot_dimension_numbers<[1], [1], [0], [0], [0, 0, 1, 0], [], []>} : vector<10x32xf32>, vector<32x32xf32>, vector<10x32xf32> -> vector<10x32xf32>
    %c1_123 = arith.constant 1 : index
    %c0_124 = arith.constant 0 : index
    %c0_125 = arith.constant 0 : index
    %240 = vector.load %arg13[%c1_123, %c0_124, %c0_125] : memref<2x1x32xf32, #tpu.memory_space<vmem>>, vector<1x1x32xf32>
    %241 = vector.shape_cast %240 : vector<1x1x32xf32> to vector<1x32xf32>
    %242 = vector.broadcast %241 : vector<1x32xf32> to vector<10x32xf32>
    %243 = arith.addf %239, %242 : vector<10x32xf32>
    %c1_126 = arith.constant 1 : index
    %c0_127 = arith.constant 0 : index
    %c0_128 = arith.constant 0 : index
    %244 = vector.load %arg14[%c1_126, %c0_127, %c0_128] : memref<2x32x32xf32, #tpu.memory_space<vmem>>, vector<1x32x32xf32>
    %245 = vector.shape_cast %244 : vector<1x32x32xf32> to vector<32x32xf32>
    %cst_129 = arith.constant dense<0.000000e+00> : vector<10x32xf32>
    %246 = tpu.matmul %229, %245, %cst_129 {dimension_numbers = #tpu.dot_dimension_numbers<[1], [1], [0], [0], [0, 0, 1, 0], [], []>} : vector<10x32xf32>, vector<32x32xf32>, vector<10x32xf32> -> vector<10x32xf32>
    %c1_130 = arith.constant 1 : index
    %c0_131 = arith.constant 0 : index
    %c0_132 = arith.constant 0 : index
    %247 = vector.load %arg15[%c1_130, %c0_131, %c0_132] : memref<2x1x32xf32, #tpu.memory_space<vmem>>, vector<1x1x32xf32>
    %248 = vector.shape_cast %247 : vector<1x1x32xf32> to vector<1x32xf32>
    %249 = vector.broadcast %248 : vector<1x32xf32> to vector<10x32xf32>
    %250 = arith.addf %246, %249 : vector<10x32xf32>
    %251 = vector.extract_strided_slice %236 {offsets = [0, 0], sizes = [10, 8], strides = [1, 1]} : vector<10x32xf32> to vector<10x8xf32>
    %252 = vector.extract_strided_slice %243 {offsets = [0, 0], sizes = [10, 8], strides = [1, 1]} : vector<10x32xf32> to vector<10x8xf32>
    %253 = vector.extract_strided_slice %250 {offsets = [0, 0], sizes = [10, 8], strides = [1, 1]} : vector<10x32xf32> to vector<10x8xf32>
    %cst_133 = arith.constant dense<0.000000e+00> : vector<10x10xf32>
    %254 = tpu.matmul %251, %252, %cst_133 {dimension_numbers = #tpu.dot_dimension_numbers<[1], [1], [0], [0], [0, 0, 1, 0], [], []>} : vector<10x8xf32>, vector<10x8xf32>, vector<10x10xf32> -> vector<10x10xf32>
    %255 = arith.addf %254, %34 : vector<10x10xf32>
    %cst_134 = arith.constant dense<0xFF800000> : vector<10xf32>
    %256 = vector.multi_reduction <maximumf>, %255, %cst_134 [1] : vector<10x10xf32> to vector<10xf32>
    %257 = vector.shape_cast %256 : vector<10xf32> to vector<10x1xf32>
    %258 = vector.broadcast %257 : vector<10x1xf32> to vector<10x10xf32>
    %259 = arith.subf %255, %258 : vector<10x10xf32>
    %260 = math.exp %259 : vector<10x10xf32>
    %cst_135 = arith.constant dense<0.000000e+00> : vector<10xf32>
    %261 = vector.multi_reduction <add>, %260, %cst_135 [1] : vector<10x10xf32> to vector<10xf32>
    %262 = vector.shape_cast %261 : vector<10xf32> to vector<10x1xf32>
    %263 = tpu.reciprocal %262 {approx = true} : vector<10x1xf32> -> vector<10x1xf32>
    %264 = vector.broadcast %263 : vector<10x1xf32> to vector<10x10xf32>
    %265 = arith.mulf %260, %264 : vector<10x10xf32>
    %cst_136 = arith.constant dense<0.000000e+00> : vector<10x8xf32>
    %266 = tpu.matmul %265, %253, %cst_136 {dimension_numbers = #tpu.dot_dimension_numbers<[1], [0], [0], [1], [0, 0, 1, 1], [], []>} : vector<10x10xf32>, vector<10x8xf32>, vector<10x8xf32> -> vector<10x8xf32>
    %267 = vector.extract_strided_slice %236 {offsets = [0, 8], sizes = [10, 8], strides = [1, 1]} : vector<10x32xf32> to vector<10x8xf32>
    %268 = vector.extract_strided_slice %243 {offsets = [0, 8], sizes = [10, 8], strides = [1, 1]} : vector<10x32xf32> to vector<10x8xf32>
    %269 = vector.extract_strided_slice %250 {offsets = [0, 8], sizes = [10, 8], strides = [1, 1]} : vector<10x32xf32> to vector<10x8xf32>
    %cst_137 = arith.constant dense<0.000000e+00> : vector<10x10xf32>
    %270 = tpu.matmul %267, %268, %cst_137 {dimension_numbers = #tpu.dot_dimension_numbers<[1], [1], [0], [0], [0, 0, 1, 0], [], []>} : vector<10x8xf32>, vector<10x8xf32>, vector<10x10xf32> -> vector<10x10xf32>
    %271 = arith.addf %270, %34 : vector<10x10xf32>
    %cst_138 = arith.constant dense<0xFF800000> : vector<10xf32>
    %272 = vector.multi_reduction <maximumf>, %271, %cst_138 [1] : vector<10x10xf32> to vector<10xf32>
    %273 = vector.shape_cast %272 : vector<10xf32> to vector<10x1xf32>
    %274 = vector.broadcast %273 : vector<10x1xf32> to vector<10x10xf32>
    %275 = arith.subf %271, %274 : vector<10x10xf32>
    %276 = math.exp %275 : vector<10x10xf32>
    %cst_139 = arith.constant dense<0.000000e+00> : vector<10xf32>
    %277 = vector.multi_reduction <add>, %276, %cst_139 [1] : vector<10x10xf32> to vector<10xf32>
    %278 = vector.shape_cast %277 : vector<10xf32> to vector<10x1xf32>
    %279 = tpu.reciprocal %278 {approx = true} : vector<10x1xf32> -> vector<10x1xf32>
    %280 = vector.broadcast %279 : vector<10x1xf32> to vector<10x10xf32>
    %281 = arith.mulf %276, %280 : vector<10x10xf32>
    %cst_140 = arith.constant dense<0.000000e+00> : vector<10x8xf32>
    %282 = tpu.matmul %281, %269, %cst_140 {dimension_numbers = #tpu.dot_dimension_numbers<[1], [0], [0], [1], [0, 0, 1, 1], [], []>} : vector<10x10xf32>, vector<10x8xf32>, vector<10x8xf32> -> vector<10x8xf32>
    %283 = vector.extract_strided_slice %236 {offsets = [0, 16], sizes = [10, 8], strides = [1, 1]} : vector<10x32xf32> to vector<10x8xf32>
    %284 = vector.extract_strided_slice %243 {offsets = [0, 16], sizes = [10, 8], strides = [1, 1]} : vector<10x32xf32> to vector<10x8xf32>
    %285 = vector.extract_strided_slice %250 {offsets = [0, 16], sizes = [10, 8], strides = [1, 1]} : vector<10x32xf32> to vector<10x8xf32>
    %cst_141 = arith.constant dense<0.000000e+00> : vector<10x10xf32>
    %286 = tpu.matmul %283, %284, %cst_141 {dimension_numbers = #tpu.dot_dimension_numbers<[1], [1], [0], [0], [0, 0, 1, 0], [], []>} : vector<10x8xf32>, vector<10x8xf32>, vector<10x10xf32> -> vector<10x10xf32>
    %287 = arith.addf %286, %34 : vector<10x10xf32>
    %cst_142 = arith.constant dense<0xFF800000> : vector<10xf32>
    %288 = vector.multi_reduction <maximumf>, %287, %cst_142 [1] : vector<10x10xf32> to vector<10xf32>
    %289 = vector.shape_cast %288 : vector<10xf32> to vector<10x1xf32>
    %290 = vector.broadcast %289 : vector<10x1xf32> to vector<10x10xf32>
    %291 = arith.subf %287, %290 : vector<10x10xf32>
    %292 = math.exp %291 : vector<10x10xf32>
    %cst_143 = arith.constant dense<0.000000e+00> : vector<10xf32>
    %293 = vector.multi_reduction <add>, %292, %cst_143 [1] : vector<10x10xf32> to vector<10xf32>
    %294 = vector.shape_cast %293 : vector<10xf32> to vector<10x1xf32>
    %295 = tpu.reciprocal %294 {approx = true} : vector<10x1xf32> -> vector<10x1xf32>
    %296 = vector.broadcast %295 : vector<10x1xf32> to vector<10x10xf32>
    %297 = arith.mulf %292, %296 : vector<10x10xf32>
    %cst_144 = arith.constant dense<0.000000e+00> : vector<10x8xf32>
    %298 = tpu.matmul %297, %285, %cst_144 {dimension_numbers = #tpu.dot_dimension_numbers<[1], [0], [0], [1], [0, 0, 1, 1], [], []>} : vector<10x10xf32>, vector<10x8xf32>, vector<10x8xf32> -> vector<10x8xf32>
    %299 = vector.extract_strided_slice %236 {offsets = [0, 24], sizes = [10, 8], strides = [1, 1]} : vector<10x32xf32> to vector<10x8xf32>
    %300 = vector.extract_strided_slice %243 {offsets = [0, 24], sizes = [10, 8], strides = [1, 1]} : vector<10x32xf32> to vector<10x8xf32>
    %301 = vector.extract_strided_slice %250 {offsets = [0, 24], sizes = [10, 8], strides = [1, 1]} : vector<10x32xf32> to vector<10x8xf32>
    %cst_145 = arith.constant dense<0.000000e+00> : vector<10x10xf32>
    %302 = tpu.matmul %299, %300, %cst_145 {dimension_numbers = #tpu.dot_dimension_numbers<[1], [1], [0], [0], [0, 0, 1, 0], [], []>} : vector<10x8xf32>, vector<10x8xf32>, vector<10x10xf32> -> vector<10x10xf32>
    %303 = arith.addf %302, %34 : vector<10x10xf32>
    %cst_146 = arith.constant dense<0xFF800000> : vector<10xf32>
    %304 = vector.multi_reduction <maximumf>, %303, %cst_146 [1] : vector<10x10xf32> to vector<10xf32>
    %305 = vector.shape_cast %304 : vector<10xf32> to vector<10x1xf32>
    %306 = vector.broadcast %305 : vector<10x1xf32> to vector<10x10xf32>
    %307 = arith.subf %303, %306 : vector<10x10xf32>
    %308 = math.exp %307 : vector<10x10xf32>
    %cst_147 = arith.constant dense<0.000000e+00> : vector<10xf32>
    %309 = vector.multi_reduction <add>, %308, %cst_147 [1] : vector<10x10xf32> to vector<10xf32>
    %310 = vector.shape_cast %309 : vector<10xf32> to vector<10x1xf32>
    %311 = tpu.reciprocal %310 {approx = true} : vector<10x1xf32> -> vector<10x1xf32>
    %312 = vector.broadcast %311 : vector<10x1xf32> to vector<10x10xf32>
    %313 = arith.mulf %308, %312 : vector<10x10xf32>
    %cst_148 = arith.constant dense<0.000000e+00> : vector<10x8xf32>
    %314 = tpu.matmul %313, %301, %cst_148 {dimension_numbers = #tpu.dot_dimension_numbers<[1], [0], [0], [1], [0, 0, 1, 1], [], []>} : vector<10x10xf32>, vector<10x8xf32>, vector<10x8xf32> -> vector<10x8xf32>
    %315 = tpu.concatenate %266, %282, %298, %314 in 1 : vector<10x8xf32>, vector<10x8xf32>, vector<10x8xf32>, vector<10x8xf32> -> vector<10x32xf32>
    %c1_149 = arith.constant 1 : index
    %c0_150 = arith.constant 0 : index
    %c0_151 = arith.constant 0 : index
    %316 = vector.load %arg16[%c1_149, %c0_150, %c0_151] : memref<2x32x32xf32, #tpu.memory_space<vmem>>, vector<1x32x32xf32>
    %317 = vector.shape_cast %316 : vector<1x32x32xf32> to vector<32x32xf32>
    %cst_152 = arith.constant dense<0.000000e+00> : vector<10x32xf32>
    %318 = tpu.matmul %315, %317, %cst_152 {dimension_numbers = #tpu.dot_dimension_numbers<[1], [1], [0], [0], [0, 0, 1, 0], [], []>} : vector<10x32xf32>, vector<32x32xf32>, vector<10x32xf32> -> vector<10x32xf32>
    %c1_153 = arith.constant 1 : index
    %c0_154 = arith.constant 0 : index
    %c0_155 = arith.constant 0 : index
    %319 = vector.load %arg17[%c1_153, %c0_154, %c0_155] : memref<2x1x32xf32, #tpu.memory_space<vmem>>, vector<1x1x32xf32>
    %320 = vector.shape_cast %319 : vector<1x1x32xf32> to vector<1x32xf32>
    %321 = vector.broadcast %320 : vector<1x32xf32> to vector<10x32xf32>
    %322 = arith.addf %318, %321 : vector<10x32xf32>
    %323 = arith.addf %203, %322 : vector<10x32xf32>
    %c1_156 = arith.constant 1 : index
    %c0_157 = arith.constant 0 : index
    %c0_158 = arith.constant 0 : index
    %324 = vector.load %arg18[%c1_156, %c0_157, %c0_158] : memref<2x1x32xf32, #tpu.memory_space<vmem>>, vector<1x1x32xf32>
    %325 = vector.shape_cast %324 : vector<1x1x32xf32> to vector<1x32xf32>
    %c1_159 = arith.constant 1 : index
    %c0_160 = arith.constant 0 : index
    %c0_161 = arith.constant 0 : index
    %326 = vector.load %arg19[%c1_159, %c0_160, %c0_161] : memref<2x1x32xf32, #tpu.memory_space<vmem>>, vector<1x1x32xf32>
    %327 = vector.shape_cast %326 : vector<1x1x32xf32> to vector<1x32xf32>
    %cst_162 = arith.constant dense<0.000000e+00> : vector<10xf32>
    %328 = vector.multi_reduction <add>, %323, %cst_162 [1] : vector<10x32xf32> to vector<10xf32>
    %329 = vector.shape_cast %328 : vector<10xf32> to vector<10x1xf32>
    %cst_163 = arith.constant 3.200000e+01 : f32
    %330 = vector.broadcast %cst_163 : f32 to vector<10x1xf32>
    %331 = arith.divf %329, %330 : vector<10x1xf32>
    %332 = vector.broadcast %331 : vector<10x1xf32> to vector<10x32xf32>
    %333 = arith.subf %323, %332 : vector<10x32xf32>
    %334 = arith.mulf %333, %333 : vector<10x32xf32>
    %cst_164 = arith.constant dense<0.000000e+00> : vector<10xf32>
    %335 = vector.multi_reduction <add>, %334, %cst_164 [1] : vector<10x32xf32> to vector<10xf32>
    %336 = vector.shape_cast %335 : vector<10xf32> to vector<10x1xf32>
    %cst_165 = arith.constant 3.200000e+01 : f32
    %337 = vector.broadcast %cst_165 : f32 to vector<10x1xf32>
    %338 = arith.divf %336, %337 : vector<10x1xf32>
    %339 = vector.broadcast %331 : vector<10x1xf32> to vector<10x32xf32>
    %340 = arith.subf %323, %339 : vector<10x32xf32>
    %cst_166 = arith.constant 9.99999974E-6 : f32
    %341 = vector.broadcast %cst_166 : f32 to vector<10x1xf32>
    %342 = arith.addf %338, %341 : vector<10x1xf32>
    %343 = math.rsqrt %342 : vector<10x1xf32>
    %344 = vector.broadcast %343 : vector<10x1xf32> to vector<10x32xf32>
    %345 = arith.mulf %340, %344 : vector<10x32xf32>
    %346 = vector.broadcast %325 : vector<1x32xf32> to vector<10x32xf32>
    %347 = arith.mulf %345, %346 : vector<10x32xf32>
    %348 = vector.broadcast %327 : vector<1x32xf32> to vector<10x32xf32>
    %349 = arith.addf %347, %348 : vector<10x32xf32>
    %c1_167 = arith.constant 1 : index
    %c0_168 = arith.constant 0 : index
    %c0_169 = arith.constant 0 : index
    %350 = vector.load %arg20[%c1_167, %c0_168, %c0_169] : memref<2x128x32xf32, #tpu.memory_space<vmem>>, vector<1x128x32xf32>
    %351 = vector.shape_cast %350 : vector<1x128x32xf32> to vector<128x32xf32>
    %cst_170 = arith.constant dense<0.000000e+00> : vector<10x128xf32>
    %352 = tpu.matmul %349, %351, %cst_170 {dimension_numbers = #tpu.dot_dimension_numbers<[1], [1], [0], [0], [0, 0, 1, 0], [], []>} : vector<10x32xf32>, vector<128x32xf32>, vector<10x128xf32> -> vector<10x128xf32>
    %c1_171 = arith.constant 1 : index
    %c0_172 = arith.constant 0 : index
    %c0_173 = arith.constant 0 : index
    %353 = vector.load %arg21[%c1_171, %c0_172, %c0_173] : memref<2x1x128xf32, #tpu.memory_space<vmem>>, vector<1x1x128xf32>
    %354 = vector.shape_cast %353 : vector<1x1x128xf32> to vector<1x128xf32>
    %355 = vector.broadcast %354 : vector<1x128xf32> to vector<10x128xf32>
    %356 = arith.addf %352, %355 : vector<10x128xf32>
    %cst_174 = arith.constant 1.702000e+00 : f32
    %357 = vector.broadcast %cst_174 : f32 to vector<10x128xf32>
    %358 = arith.mulf %357, %356 : vector<10x128xf32>
    %359 = arith.negf %358 : vector<10x128xf32>
    %360 = math.exp %359 : vector<10x128xf32>
    %cst_175 = arith.constant 1.000000e+00 : f32
    %361 = vector.broadcast %cst_175 : f32 to vector<10x128xf32>
    %362 = arith.addf %361, %360 : vector<10x128xf32>
    %363 = arith.divf %361, %362 : vector<10x128xf32>
    %364 = arith.mulf %356, %363 : vector<10x128xf32>
    %c1_176 = arith.constant 1 : index
    %c0_177 = arith.constant 0 : index
    %c0_178 = arith.constant 0 : index
    %365 = vector.load %arg22[%c1_176, %c0_177, %c0_178] : memref<2x32x128xf32, #tpu.memory_space<vmem>>, vector<1x32x128xf32>
    %366 = vector.shape_cast %365 : vector<1x32x128xf32> to vector<32x128xf32>
    %cst_179 = arith.constant dense<0.000000e+00> : vector<10x32xf32>
    %367 = tpu.matmul %364, %366, %cst_179 {dimension_numbers = #tpu.dot_dimension_numbers<[1], [1], [0], [0], [0, 0, 1, 0], [], []>} : vector<10x128xf32>, vector<32x128xf32>, vector<10x32xf32> -> vector<10x32xf32>
    %c1_180 = arith.constant 1 : index
    %c0_181 = arith.constant 0 : index
    %c0_182 = arith.constant 0 : index
    %368 = vector.load %arg23[%c1_180, %c0_181, %c0_182] : memref<2x1x32xf32, #tpu.memory_space<vmem>>, vector<1x1x32xf32>
    %369 = vector.shape_cast %368 : vector<1x1x32xf32> to vector<1x32xf32>
    %370 = vector.broadcast %369 : vector<1x32xf32> to vector<10x32xf32>
    %371 = arith.addf %367, %370 : vector<10x32xf32>
    %372 = arith.addf %323, %371 : vector<10x32xf32>
    %373 = vector.extract_strided_slice %372 {offsets = [0, 0], sizes = [1, 32], strides = [1, 1]} : vector<10x32xf32> to vector<1x32xf32>
    %374 = vector.extract_strided_slice %372 {offsets = [5, 0], sizes = [1, 32], strides = [1, 1]} : vector<10x32xf32> to vector<1x32xf32>
    %375 = tpu.concatenate %373, %374 in 0 : vector<1x32xf32>, vector<1x32xf32> -> vector<2x32xf32>
    %c0_183 = arith.constant 0 : index
    %c0_184 = arith.constant 0 : index
    %376 = vector.load %arg24[%c0_183, %c0_184] : memref<1x32xf32, #tpu.memory_space<vmem>>, vector<1x32xf32>
    %c0_185 = arith.constant 0 : index
    %c0_186 = arith.constant 0 : index
    %377 = vector.load %arg25[%c0_185, %c0_186] : memref<1x32xf32, #tpu.memory_space<vmem>>, vector<1x32xf32>
    %cst_187 = arith.constant dense<0.000000e+00> : vector<2xf32>
    %378 = vector.multi_reduction <add>, %375, %cst_187 [1] : vector<2x32xf32> to vector<2xf32>
    %379 = vector.shape_cast %378 : vector<2xf32> to vector<2x1xf32>
    %cst_188 = arith.constant 3.200000e+01 : f32
    %380 = vector.broadcast %cst_188 : f32 to vector<2x1xf32>
    %381 = arith.divf %379, %380 : vector<2x1xf32>
    %382 = vector.broadcast %381 : vector<2x1xf32> to vector<2x32xf32>
    %383 = arith.subf %375, %382 : vector<2x32xf32>
    %384 = arith.mulf %383, %383 : vector<2x32xf32>
    %cst_189 = arith.constant dense<0.000000e+00> : vector<2xf32>
    %385 = vector.multi_reduction <add>, %384, %cst_189 [1] : vector<2x32xf32> to vector<2xf32>
    %386 = vector.shape_cast %385 : vector<2xf32> to vector<2x1xf32>
    %cst_190 = arith.constant 3.200000e+01 : f32
    %387 = vector.broadcast %cst_190 : f32 to vector<2x1xf32>
    %388 = arith.divf %386, %387 : vector<2x1xf32>
    %389 = vector.broadcast %381 : vector<2x1xf32> to vector<2x32xf32>
    %390 = arith.subf %375, %389 : vector<2x32xf32>
    %cst_191 = arith.constant 9.99999974E-6 : f32
    %391 = vector.broadcast %cst_191 : f32 to vector<2x1xf32>
    %392 = arith.addf %388, %391 : vector<2x1xf32>
    %393 = math.rsqrt %392 : vector<2x1xf32>
    %394 = vector.broadcast %393 : vector<2x1xf32> to vector<2x32xf32>
    %395 = arith.mulf %390, %394 : vector<2x32xf32>
    %396 = vector.broadcast %376 : vector<1x32xf32> to vector<2x32xf32>
    %397 = arith.mulf %395, %396 : vector<2x32xf32>
    %398 = vector.broadcast %377 : vector<1x32xf32> to vector<2x32xf32>
    %399 = arith.addf %397, %398 : vector<2x32xf32>
    %c0_192 = arith.constant 0 : index
    %c0_193 = arith.constant 0 : index
    %400 = vector.load %arg26[%c0_192, %c0_193] : memref<32x16xf32, #tpu.memory_space<vmem>>, vector<32x16xf32>
    %cst_194 = arith.constant dense<0.000000e+00> : vector<2x16xf32>
    %401 = tpu.matmul %399, %400, %cst_194 {dimension_numbers = #tpu.dot_dimension_numbers<[1], [0], [0], [1], [0, 0, 1, 1], [], []>} : vector<2x32xf32>, vector<32x16xf32>, vector<2x16xf32> -> vector<2x16xf32>
    %c0_195 = arith.constant 0 : index
    %c0_196 = arith.constant 0 : index
    %402 = vector.load %arg27[%c0_195, %c0_196] : memref<2x16xf32, #tpu.memory_space<vmem>>, vector<2x16xf32>
    tpu.vector_store %arg27[%c0_195, %c0_196], %401 {strides = array<i32>} : memref<2x16xf32, #tpu.memory_space<vmem>>, vector<2x16xf32>,
    return
  }
  func.func @transform_0(%arg0: i32) -> (i32, i32) {
    %c0_i32 = arith.constant 0 : i32
    %c0_i32_0 = arith.constant 0 : i32
    %c0_i32_1 = arith.constant 0 : i32
    return %c0_i32, %c0_i32_0 : i32, i32
  }
  func.func @transform_1(%arg0: i32) -> (i32, i32) {
    %c0_i32 = arith.constant 0 : i32
    %c0_i32_0 = arith.constant 0 : i32
    %c0_i32_1 = arith.constant 0 : i32
    return %c0_i32, %c0_i32_0 : i32, i32
  }
  func.func @transform_2(%arg0: i32) -> (i32, i32) {
    %c0_i32 = arith.constant 0 : i32
    %c0_i32_0 = arith.constant 0 : i32
    %c0_i32_1 = arith.constant 0 : i32
    return %c0_i32, %c0_i32_0 : i32, i32
  }
  func.func @transform_3(%arg0: i32) -> (i32, i32) {
    %c0_i32 = arith.constant 0 : i32
    %c0_i32_0 = arith.constant 0 : i32
    %c0_i32_1 = arith.constant 0 : i32
    return %c0_i32, %c0_i32_0 : i32, i32
  }
  func.func @transform_4(%arg0: i32) -> (i32, i32) {
    %c0_i32 = arith.constant 0 : i32
    %c0_i32_0 = arith.constant 0 : i32
    %c0_i32_1 = arith.constant 0 : i32
    return %c0_i32, %c0_i32_0 : i32, i32
  }
  func.func @transform_5(%arg0: i32) -> (i32, i32) {
    %c0_i32 = arith.constant 0 : i32
    %c0_i32_0 = arith.constant 0 : i32
    %c0_i32_1 = arith.constant 0 : i32
    return %c0_i32, %c0_i32_0 : i32, i32
  }
  func.func @transform_6(%arg0: i32) -> (i32, i32) {
    %c0_i32 = arith.constant 0 : i32
    %c0_i32_0 = arith.constant 0 : i32
    %c0_i32_1 = arith.constant 0 : i32
    return %c0_i32, %c0_i32_0 : i32, i32
  }
  func.func @transform_7(%arg0: i32) -> (i32, i32, i32) {
    %c0_i32 = arith.constant 0 : i32
    %c0_i32_0 = arith.constant 0 : i32
    %c0_i32_1 = arith.constant 0 : i32
    %c0_i32_2 = arith.constant 0 : i32
    return %c0_i32, %c0_i32_0, %c0_i32_1 : i32, i32, i32
  }
  func.func @transform_8(%arg0: i32) -> (i32, i32, i32) {
    %c0_i32 = arith.constant 0 : i32
    %c0_i32_0 = arith.constant 0 : i32
    %c0_i32_1 = arith.constant 0 : i32
    %c0_i32_2 = arith.constant 0 : i32
    return %c0_i32, %c0_i32_0, %c0_i32_1 : i32, i32, i32
  }
  func.func @transform_9(%arg0: i32) -> (i32, i32, i32) {
    %c0_i32 = arith.constant 0 : i32
    %c0_i32_0 = arith.constant 0 : i32
    %c0_i32_1 = arith.constant 0 : i32
    %c0_i32_2 = arith.constant 0 : i32
    return %c0_i32, %c0_i32_0, %c0_i32_1 : i32, i32, i32
  }
  func.func @transform_10(%arg0: i32) -> (i32, i32, i32) {
    %c0_i32 = arith.constant 0 : i32
    %c0_i32_0 = arith.constant 0 : i32
    %c0_i32_1 = arith.constant 0 : i32
    %c0_i32_2 = arith.constant 0 : i32
    return %c0_i32, %c0_i32_0, %c0_i32_1 : i32, i32, i32
  }
  func.func @transform_11(%arg0: i32) -> (i32, i32, i32) {
    %c0_i32 = arith.constant 0 : i32
    %c0_i32_0 = arith.constant 0 : i32
    %c0_i32_1 = arith.constant 0 : i32
    %c0_i32_2 = arith.constant 0 : i32
    return %c0_i32, %c0_i32_0, %c0_i32_1 : i32, i32, i32
  }
  func.func @transform_12(%arg0: i32) -> (i32, i32, i32) {
    %c0_i32 = arith.constant 0 : i32
    %c0_i32_0 = arith.constant 0 : i32
    %c0_i32_1 = arith.constant 0 : i32
    %c0_i32_2 = arith.constant 0 : i32
    return %c0_i32, %c0_i32_0, %c0_i32_1 : i32, i32, i32
  }
  func.func @transform_13(%arg0: i32) -> (i32, i32, i32) {
    %c0_i32 = arith.constant 0 : i32
    %c0_i32_0 = arith.constant 0 : i32
    %c0_i32_1 = arith.constant 0 : i32
    %c0_i32_2 = arith.constant 0 : i32
    return %c0_i32, %c0_i32_0, %c0_i32_1 : i32, i32, i32
  }
  func.func @transform_14(%arg0: i32) -> (i32, i32, i32) {
    %c0_i32 = arith.constant 0 : i32
    %c0_i32_0 = arith.constant 0 : i32
    %c0_i32_1 = arith.constant 0 : i32
    %c0_i32_2 = arith.constant 0 : i32
    return %c0_i32, %c0_i32_0, %c0_i32_1 : i32, i32, i32
  }
  func.func @transform_15(%arg0: i32) -> (i32, i32, i32) {
    %c0_i32 = arith.constant 0 : i32
    %c0_i32_0 = arith.constant 0 : i32
    %c0_i32_1 = arith.constant 0 : i32
    %c0_i32_2 = arith.constant 0 : i32
    return %c0_i32, %c0_i32_0, %c0_i32_1 : i32, i32, i32
  }
  func.func @transform_16(%arg0: i32) -> (i32, i32, i32) {
    %c0_i32 = arith.constant 0 : i32
    %c0_i32_0 = arith.constant 0 : i32
    %c0_i32_1 = arith.constant 0 : i32
    %c0_i32_2 = arith.constant 0 : i32
    return %c0_i32, %c0_i32_0, %c0_i32_1 : i32, i32, i32
  }
  func.func @transform_17(%arg0: i32) -> (i32, i32, i32) {
    %c0_i32 = arith.constant 0 : i32
    %c0_i32_0 = arith.constant 0 : i32
    %c0_i32_1 = arith.constant 0 : i32
    %c0_i32_2 = arith.constant 0 : i32
    return %c0_i32, %c0_i32_0, %c0_i32_1 : i32, i32, i32
  }
  func.func @transform_18(%arg0: i32) -> (i32, i32, i32) {
    %c0_i32 = arith.constant 0 : i32
    %c0_i32_0 = arith.constant 0 : i32
    %c0_i32_1 = arith.constant 0 : i32
    %c0_i32_2 = arith.constant 0 : i32
    return %c0_i32, %c0_i32_0, %c0_i32_1 : i32, i32, i32
  }
  func.func @transform_19(%arg0: i32) -> (i32, i32, i32) {
    %c0_i32 = arith.constant 0 : i32
    %c0_i32_0 = arith.constant 0 : i32
    %c0_i32_1 = arith.constant 0 : i32
    %c0_i32_2 = arith.constant 0 : i32
    return %c0_i32, %c0_i32_0, %c0_i32_1 : i32, i32, i32
  }
  func.func @transform_20(%arg0: i32) -> (i32, i32, i32) {
    %c0_i32 = arith.constant 0 : i32
    %c0_i32_0 = arith.constant 0 : i32
    %c0_i32_1 = arith.constant 0 : i32
    %c0_i32_2 = arith.constant 0 : i32
    return %c0_i32, %c0_i32_0, %c0_i32_1 : i32, i32, i32
  }
  func.func @transform_21(%arg0: i32) -> (i32, i32, i32) {
    %c0_i32 = arith.constant 0 : i32
    %c0_i32_0 = arith.constant 0 : i32
    %c0_i32_1 = arith.constant 0 : i32
    %c0_i32_2 = arith.constant 0 : i32
    return %c0_i32, %c0_i32_0, %c0_i32_1 : i32, i32, i32
  }
  func.func @transform_22(%arg0: i32) -> (i32, i32, i32) {
    %c0_i32 = arith.constant 0 : i32
    %c0_i32_0 = arith.constant 0 : i32
    %c0_i32_1 = arith.constant 0 : i32
    %c0_i32_2 = arith.constant 0 : i32
    return %c0_i32, %c0_i32_0, %c0_i32_1 : i32, i32, i32
  }
  func.func @transform_23(%arg0: i32) -> (i32, i32) {
    %c0_i32 = arith.constant 0 : i32
    %c0_i32_0 = arith.constant 0 : i32
    %c0_i32_1 = arith.constant 0 : i32
    return %c0_i32, %c0_i32_0 : i32, i32
  }
  func.func @transform_24(%arg0: i32) -> (i32, i32) {
    %c0_i32 = arith.constant 0 : i32
    %c0_i32_0 = arith.constant 0 : i32
    %c0_i32_1 = arith.constant 0 : i32
    return %c0_i32, %c0_i32_0 : i32, i32
  }
  func.func @transform_25(%arg0: i32) -> (i32, i32) {
    %c0_i32 = arith.constant 0 : i32
    %c0_i32_0 = arith.constant 0 : i32
    %c0_i32_1 = arith.constant 0 : i32
    return %c0_i32, %c0_i32_0 : i32, i32
  }
  func.func @transform_26(%arg0: i32) -> (i32, i32) {
    %c0_i32 = arith.constant 0 : i32
    %c0_i32_0 = arith.constant 0 : i32
    %c0_i32_1 = arith.constant 0 : i32
    return %c0_i32, %c0_i32_0 : i32, i32
  }
}

</mosaic_0001>

<llo_original>
// kernel: tpu_custom_call.1
$region0: #{tpu_custom_call.1}
  #allocation0 [shape = 'u32[]', space=smem, size = 0x4, offset = 0x4, fixed_abs, tag = 'smem constant byte address 0x4 - core index']
  #allocation1 [shape = 'u32[144,128]{1,0:T(1,128)}', space=vmem, size = 0x12000, scoped, tag = 'internal scratch']
  %s0 = inlined_call_operand.vmem [shape: f32[8,192], index: 0, kind: input, shape index: {}]
  %s1 = inlined_call_operand.vmem [shape: f32[192,32], index: 1, kind: input, shape index: {}]
  %s2 = inlined_call_operand.vmem [shape: f32[1,32], index: 2, kind: input, shape index: {}]
  %s3 = inlined_call_operand.vmem [shape: f32[10,32], index: 3, kind: input, shape index: {}]
  %s4 = inlined_call_operand.vmem [shape: f32[10,10], index: 4, kind: input, shape index: {}]
  %s5 = inlined_call_operand.vmem [shape: f32[1,32], index: 5, kind: input, shape index: {}]
  %s6 = inlined_call_operand.vmem [shape: f32[1,32], index: 6, kind: input, shape index: {}]
  %s7 = inlined_call_operand.vmem [shape: f32[2,1,32], index: 7, kind: input, shape index: {}]
  %s8 = inlined_call_operand.vmem [shape: f32[2,1,32], index: 8, kind: input, shape index: {}]
  %s9 = inlined_call_operand.vmem [shape: f32[2,32,32], index: 9, kind: input, shape index: {}]
  %s10 = inlined_call_operand.vmem [shape: f32[2,1,32], index: 10, kind: input, shape index: {}]
  %s11 = inlined_call_operand.vmem [shape: f32[2,32,32], index: 11, kind: input, shape index: {}]
  %s12 = inlined_call_operand.vmem [shape: f32[2,1,32], index: 12, kind: input, shape index: {}]
  %s13 = inlined_call_operand.vmem [shape: f32[2,32,32], index: 13, kind: input, shape index: {}]
  %s14 = inlined_call_operand.vmem [shape: f32[2,1,32], index: 14, kind: input, shape index: {}]
  %s15 = inlined_call_operand.vmem [shape: f32[2,32,32], index: 15, kind: input, shape index: {}]
  %s16 = inlined_call_operand.vmem [shape: f32[2,1,32], index: 16, kind: input, shape index: {}]
  %s17 = inlined_call_operand.vmem [shape: f32[2,1,32], index: 17, kind: input, shape index: {}]
  %s18 = inlined_call_operand.vmem [shape: f32[2,1,32], index: 18, kind: input, shape index: {}]
  %s19 = inlined_call_operand.vmem [shape: f32[2,128,32], index: 19, kind: input, shape index: {}]
  %s20 = inlined_call_operand.vmem [shape: f32[2,1,128], index: 20, kind: input, shape index: {}]
  %s21 = inlined_call_operand.vmem [shape: f32[2,32,128], index: 21, kind: input, shape index: {}]
  %s22 = inlined_call_operand.vmem [shape: f32[2,1,32], index: 22, kind: input, shape index: {}]
  %s23 = inlined_call_operand.vmem [shape: f32[1,32], index: 23, kind: input, shape index: {}]
  %s24 = inlined_call_operand.vmem [shape: f32[1,32], index: 24, kind: input, shape index: {}]
  %s25 = inlined_call_operand.vmem [shape: f32[32,16], index: 25, kind: input, shape index: {}]
  %s26 = inlined_call_operand.hbm [shape: f32[2,16], index: 26, kind: output, shape index: {}]
  %s27 = sld [smem:[#allocation0]]
  $region114: #{tpu_custom_call.1} parent=0
    _
  %s29 = ssub.s32 1, %s27
  %s30 = scalar_select 0, %s29, %s27
  $region1: #{tpu_custom_call.1} parent=0
    #allocation2 [shape = 'u8[1024]{0}', space=vmem, size = 0x400, scoped, tag = 'output window, operand 0, single buffered']
    #allocation3 [shape = 's32[1]{0}', space=sflag, size = 0x4, scoped, tag = 'scoped memory for tpu_custom_call.1']
    %31 = vsyncpa [#allocation3], 0
    // Predicated region
    $region2: #{tpu_custom_call.1} parent=1 // pred_check
      _
    $region3: #{tpu_custom_call.1} parent=1 // pred_check_branch
      %33 = sbr.rel (0) target = $region5
    $region4: #{tpu_custom_call.1} parent=1 // pred_region
      _
    $region5: #{tpu_custom_call.1} parent=1 // pred_fallthru
      _
    // Predicated region
    $region6: #{tpu_custom_call.1} parent=1 // pred_check
      _
    $region7: #{tpu_custom_call.1} parent=1 // pred_check_branch
      %35 = sbr.rel (0) target = $region9
    $region8: #{tpu_custom_call.1} parent=1 // pred_region
      _
    $region9: #{tpu_custom_call.1} parent=1 // pred_fallthru
      _
    // Predicated region
    $region10: #{tpu_custom_call.1} parent=1 // pred_check
      _
    $region11: #{tpu_custom_call.1} parent=1 // pred_check_branch
      %37 = sbr.rel (0) target = $region13
    $region12: #{tpu_custom_call.1} parent=1 // pred_region
      _
    $region13: #{tpu_custom_call.1} parent=1 // pred_fallthru
      _
    // Predicated region
    $region14: #{tpu_custom_call.1} parent=1 // pred_check
      _
    $region15: #{tpu_custom_call.1} parent=1 // pred_check_branch
      %39 = sbr.rel (0) target = $region17
    $region16: #{tpu_custom_call.1} parent=1 // pred_region
      _
    $region17: #{tpu_custom_call.1} parent=1 // pred_fallthru
      _
    // Predicated region
    $region18: #{tpu_custom_call.1} parent=1 // pred_check
      _
    $region19: #{tpu_custom_call.1} parent=1 // pred_check_branch
      %41 = sbr.rel (0) target = $region21
    $region20: #{tpu_custom_call.1} parent=1 // pred_region
      _
    $region21: #{tpu_custom_call.1} parent=1 // pred_fallthru
      _
    // Predicated region
    $region22: #{tpu_custom_call.1} parent=1 // pred_check
      _
    $region23: #{tpu_custom_call.1} parent=1 // pred_check_branch
      %43 = sbr.rel (0) target = $region25
    $region24: #{tpu_custom_call.1} parent=1 // pred_region
      _
    $region25: #{tpu_custom_call.1} parent=1 // pred_fallthru
      _
    // Predicated region
    $region26: #{tpu_custom_call.1} parent=1 // pred_check
      _
    $region27: #{tpu_custom_call.1} parent=1 // pred_check_branch
      %45 = sbr.rel (0) target = $region29
    $region28: #{tpu_custom_call.1} parent=1 // pred_region
      _
    $region29: #{tpu_custom_call.1} parent=1 // pred_fallthru
      _
    // Predicated region
    $region30: #{tpu_custom_call.1} parent=1 // pred_check
      _
    $region31: #{tpu_custom_call.1} parent=1 // pred_check_branch
      %47 = sbr.rel (0) target = $region33
    $region32: #{tpu_custom_call.1} parent=1 // pred_region
      _
    $region33: #{tpu_custom_call.1} parent=1 // pred_fallthru
      _
    // Predicated region
    $region34: #{tpu_custom_call.1} parent=1 // pred_check
      _
    $region35: #{tpu_custom_call.1} parent=1 // pred_check_branch
      %49 = sbr.rel (0) target = $region37
    $region36: #{tpu_custom_call.1} parent=1 // pred_region
      _
    $region37: #{tpu_custom_call.1} parent=1 // pred_fallthru
      _
    // Predicated region
    $region38: #{tpu_custom_call.1} parent=1 // pred_check
      _
    $region39: #{tpu_custom_call.1} parent=1 // pred_check_branch
      %51 = sbr.rel (0) target = $region41
    $region40: #{tpu_custom_call.1} parent=1 // pred_region
      _
    $region41: #{tpu_custom_call.1} parent=1 // pred_fallthru
      _
    // Predicated region
    $region42: #{tpu_custom_call.1} parent=1 // pred_check
      _
    $region43: #{tpu_custom_call.1} parent=1 // pred_check_branch
      %53 = sbr.rel (0) target = $region45
    $region44: #{tpu_custom_call.1} parent=1 // pred_region
      _
    $region45: #{tpu_custom_call.1} parent=1 // pred_fallthru
      _
    // Predicated region
    $region46: #{tpu_custom_call.1} parent=1 // pred_check
      _
    $region47: #{tpu_custom_call.1} parent=1 // pred_check_branch
      %55 = sbr.rel (0) target = $region49
    $region48: #{tpu_custom_call.1} parent=1 // pred_region
      _
    $region49: #{tpu_custom_call.1} parent=1 // pred_fallthru
      _
    // Predicated region
    $region50: #{tpu_custom_call.1} parent=1 // pred_check
      _
    $region51: #{tpu_custom_call.1} parent=1 // pred_check_branch
      %57 = sbr.rel (0) target = $region53
    $region52: #{tpu_custom_call.1} parent=1 // pred_region
      _
    $region53: #{tpu_custom_call.1} parent=1 // pred_fallthru
      _
    // Predicated region
    $region54: #{tpu_custom_call.1} parent=1 // pred_check
      _
    $region55: #{tpu_custom_call.1} parent=1 // pred_check_branch
      %59 = sbr.rel (0) target = $region57
    $region56: #{tpu_custom_call.1} parent=1 // pred_region
      _
    $region57: #{tpu_custom_call.1} parent=1 // pred_fallthru
      _
    // Predicated region
    $region58: #{tpu_custom_call.1} parent=1 // pred_check
      _
    $region59: #{tpu_custom_call.1} parent=1 // pred_check_branch
      %61 = sbr.rel (0) target = $region61
    $region60: #{tpu_custom_call.1} parent=1 // pred_region
      _
    $region61: #{tpu_custom_call.1} parent=1 // pred_fallthru
      _
    // Predicated region
    $region62: #{tpu_custom_call.1} parent=1 // pred_check
      _
    $region63: #{tpu_custom_call.1} parent=1 // pred_check_branch
      %63 = sbr.rel (0) target = $region65
    $region64: #{tpu_custom_call.1} parent=1 // pred_region
      _
    $region65: #{tpu_custom_call.1} parent=1 // pred_fallthru
      _
    // Predicated region
    $region66: #{tpu_custom_call.1} parent=1 // pred_check
      _
    $region67: #{tpu_custom_call.1} parent=1 // pred_check_branch
      %65 = sbr.rel (0) target = $region69
    $region68: #{tpu_custom_call.1} parent=1 // pred_region
      _
    $region69: #{tpu_custom_call.1} parent=1 // pred_fallthru
      _
    // Predicated region
    $region70: #{tpu_custom_call.1} parent=1 // pred_check
      _
    $region71: #{tpu_custom_call.1} parent=1 // pred_check_branch
      %67 = sbr.rel (0) target = $region73
    $region72: #{tpu_custom_call.1} parent=1 // pred_region
      _
    $region73: #{tpu_custom_call.1} parent=1 // pred_fallthru
      _
    // Predicated region
    $region74: #{tpu_custom_call.1} parent=1 // pred_check
      _
    $region75: #{tpu_custom_call.1} parent=1 // pred_check_branch
      %69 = sbr.rel (0) target = $region77
    $region76: #{tpu_custom_call.1} parent=1 // pred_region
      _
    $region77: #{tpu_custom_call.1} parent=1 // pred_fallthru
      _
    // Predicated region
    $region78: #{tpu_custom_call.1} parent=1 // pred_check
      _
    $region79: #{tpu_custom_call.1} parent=1 // pred_check_branch
      %71 = sbr.rel (0) target = $region81
    $region80: #{tpu_custom_call.1} parent=1 // pred_region
      _
    $region81: #{tpu_custom_call.1} parent=1 // pred_fallthru
      _
    // Predicated region
    $region82: #{tpu_custom_call.1} parent=1 // pred_check
      _
    $region83: #{tpu_custom_call.1} parent=1 // pred_check_branch
      %73 = sbr.rel (0) target = $region85
    $region84: #{tpu_custom_call.1} parent=1 // pred_region
      _
    $region85: #{tpu_custom_call.1} parent=1 // pred_fallthru
      _
    // Predicated region
    $region86: #{tpu_custom_call.1} parent=1 // pred_check
      _
    $region87: #{tpu_custom_call.1} parent=1 // pred_check_branch
      %75 = sbr.rel (0) target = $region89
    $region88: #{tpu_custom_call.1} parent=1 // pred_region
      _
    $region89: #{tpu_custom_call.1} parent=1 // pred_fallthru
      _
    // Predicated region
    $region90: #{tpu_custom_call.1} parent=1 // pred_check
      _
    $region91: #{tpu_custom_call.1} parent=1 // pred_check_branch
      %77 = sbr.rel (0) target = $region93
    $region92: #{tpu_custom_call.1} parent=1 // pred_region
      _
    $region93: #{tpu_custom_call.1} parent=1 // pred_fallthru
      _
    // Predicated region
    $region94: #{tpu_custom_call.1} parent=1 // pred_check
      _
    $region95: #{tpu_custom_call.1} parent=1 // pred_check_branch
      %79 = sbr.rel (0) target = $region97
    $region96: #{tpu_custom_call.1} parent=1 // pred_region
      _
    $region97: #{tpu_custom_call.1} parent=1 // pred_fallthru
      _
    // Predicated region
    $region98: #{tpu_custom_call.1} parent=1 // pred_check
      _
    $region99: #{tpu_custom_call.1} parent=1 // pred_check_branch
      %81 = sbr.rel (0) target = $region101
    $region100: #{tpu_custom_call.1} parent=1 // pred_region
      _
    $region101: #{tpu_custom_call.1} parent=1 // pred_fallthru
      _
    // Predicated region
    $region102: #{tpu_custom_call.1} parent=1 // pred_check
      _
    $region103: #{tpu_custom_call.1} parent=1 // pred_check_branch
      %83 = sbr.rel (0) target = $region105
    $region104: #{tpu_custom_call.1} parent=1 // pred_region
      _
    $region105: #{tpu_custom_call.1} parent=1 // pred_fallthru
      _
    %v84 = vld [vmem:[%s0] sm:$0xff]
    %v85 = vld [vmem:[%s0 + $0x8] sm:$0xff]
    %v86 = vld [vmem:[%s1] sm:$0xff]
    %v87 = vld [vmem:[%s1 + $0x8] sm:$0xff]
    %v88 = vld [vmem:[%s1 + $0x10] sm:$0xff]
    %v89 = vld [vmem:[%s1 + $0x18] sm:$0xff]
    %v90 = vld [vmem:[%s1 + $0x20] sm:$0xff]
    %v91 = vld [vmem:[%s1 + $0x28] sm:$0xff]
    %v92 = vld [vmem:[%s1 + $0x30] sm:$0xff]
    %v93 = vld [vmem:[%s1 + $0x38] sm:$0xff]
    %v94 = vld [vmem:[%s1 + $0x40] sm:$0xff]
    %v95 = vld [vmem:[%s1 + $0x48] sm:$0xff]
    %v96 = vld [vmem:[%s1 + $0x50] sm:$0xff]
    %v97 = vld [vmem:[%s1 + $0x58] sm:$0xff]
    %v98 = vld [vmem:[%s1 + $0x60] sm:$0xff]
    %v99 = vld [vmem:[%s1 + $0x68] sm:$0xff]
    %v100 = vld [vmem:[%s1 + $0x70] sm:$0xff]
    %v101 = vld [vmem:[%s1 + $0x78] sm:$0xff]
    %v102 = vld [vmem:[%s1 + $0x80] sm:$0xff]
    %v103 = vld [vmem:[%s1 + $0x88] sm:$0xff]
    %v104 = vld [vmem:[%s1 + $0x90] sm:$0xff]
    %v105 = vld [vmem:[%s1 + $0x98] sm:$0xff]
    %v106 = vld [vmem:[%s1 + $0xa0] sm:$0xff]
    %v107 = vld [vmem:[%s1 + $0xa8] sm:$0xff]
    %v108 = vld [vmem:[%s1 + $0xb0] sm:$0xff]
    %v109 = vld [vmem:[%s1 + $0xb8] sm:$0xff]
    %vm110 = vcmask 523264
    %v112 = vsel %vm110, %v85, 0
    %114 = vmatprep.subr.mxu0 0.0
    %115 = vmatpush1.msra.mxu0 %v86
    %116 = vmatprep.subr.mxu0 0.0
    %117 = vmatpush1.msra.mxu0 %v87
    %118 = vmatprep.subr.mxu0 0.0
    %119 = vmatpush1.msra.mxu0 %v88
    %120 = vmatprep.subr.mxu0 0.0
    %121 = vmatpush1.msra.mxu0 %v89
    %122 = vmatprep.subr.mxu0 0.0
    %123 = vmatpush1.msra.mxu0 %v90
    %124 = vmatprep.subr.mxu0 0.0
    %125 = vmatpush1.msra.mxu0 %v91
    %126 = vmatprep.subr.mxu0 0.0
    %127 = vmatpush1.msra.mxu0 %v92
    %128 = vmatprep.subr.mxu0 0.0
    %129 = vmatpush1.msra.mxu0 %v93
    %130 = vmatprep.subr.mxu0 0.0
    %131 = vmatpush1.msra.mxu0 %v94
    %132 = vmatprep.subr.mxu0 0.0
    %133 = vmatpush1.msra.mxu0 %v95
    %134 = vmatprep.subr.mxu0 0.0
    %135 = vmatpush1.msra.mxu0 %v96
    %136 = vmatprep.subr.mxu0 0.0
    %137 = vmatpush1.msra.mxu0 %v97
    %138 = vmatprep.subr.mxu0 0.0
    %139 = vmatpush1.msra.mxu0 %v98
    %140 = vmatprep.subr.mxu0 0.0
    %141 = vmatpush1.msra.mxu0 %v99
    %142 = vmatprep.subr.mxu0 0.0
    %143 = vmatpush1.msra.mxu0 %v100
    %144 = vmatprep.subr.mxu0 0.0
    %145 = vmatpush1.msra.mxu0 %v101
    %146 = vmatprep.subr.mxu0 0.0
    %147 = vmatpush1.msra.mxu0 %v102
    %148 = vmatprep.subr.mxu0 0.0
    %149 = vmatpush1.msra.mxu0 %v103
    %150 = vmatprep.subr.mxu0 0.0
    %151 = vmatpush1.msra.mxu0 %v104
    %152 = vmatprep.subr.mxu0 0.0
    %153 = vmatpush1.msra.mxu0 %v105
    %154 = vmatprep.subr.mxu0 0.0
    %155 = vmatpush1.msra.mxu0 %v106
    %156 = vmatprep.subr.mxu0 0.0
    %157 = vmatpush1.msra.mxu0 %v107
    %158 = vmatprep.subr.mxu0 0.0
    %159 = vmatpush1.msra.mxu0 %v108
    %160 = vmatprep.subr.mxu0 0.0
    %161 = vmatpush1.msra.mxu0 %v109
    %162 = vmatprep.subr.mxu0 0.0
    %163 = vmatpush1.msra.mxu0 0.0
    %164 = vmatprep.subr.mxu0 0.0
    %165 = vmatpush1.msra.mxu0 0.0
    %166 = vmatprep.subr.mxu0 0.0
    %167 = vmatpush1.msra.mxu0 0.0
    %168 = vmatprep.subr.mxu0 0.0
    %169 = vmatpush1.msra.mxu0 0.0
    %170 = vmatprep.subr.mxu0 0.0
    %171 = vmatpush1.msra.mxu0 0.0
    %172 = vmatprep.subr.mxu0 0.0
    %173 = vmatpush1.msra.mxu0 0.0
    %174 = vmatprep.subr.mxu0 0.0
    %175 = vmatpush1.msra.mxu0 0.0
    %176 = vmatprep.subr.mxu0 0.0
    %177 = vmatpush1.msra.mxu0 0.0
    %178 = vmatprep.mubr.f32.mxu0 %v112
    %179 = vmatmul.mubr.f32.gmra.mrb[0].mxu0 %v84
    %v180 = vpop.f32.mrb[0].mxu0
    %v181 = vadd.f32 0.0, %v180
    %v182 = vpop.f32.mrb[0].mxu0
    %183 = vdwg.mxu0
    %v184 = vld [vmem:[%s2] sm:$0x1]
    %v186 = vrot.slane %v181, 7
    %v189 = vlaneseq
    %v190 = vshrl.u32 %v189, 7
    %v191 = vsub.s32 0, %v190
    %v192 = vrot.slane %v184, %v191
    %v194 = vrot.slane %v181, 6
    %vm196 = vcmask 1040384
    %v197 = vsel %vm196, %v184, %v186
    %vm198 = vcmask 1044480
    %v199 = vsel %vm198, %v197, %v192
    %vm200 = vcmask 1045504
    %v201 = vsel %vm200, %v199, %v194
    %v202 = vld [vmem:[%s3] sm:$0xff]
    %v203 = vld [vmem:[%s3 + $0x8] sm:$0x3]
    %v204 = vadd.f32 %v201, %v202
    %v205 = vadd.f32 %v194, %v203
    %v206 = vld [vmem:[%s5] sm:$0x1]
    %v207 = vld [vmem:[%s6] sm:$0x1]
    %vm208 = vcmask 261120
    %v209 = vsel %vm208, %v204, 0.0
    %210 = vadd.xlane.f32.xlu0 %v209
    %v211 = vpop.xlane.xlu0 %210
    %vm212 = vcmask 254976
    %v213 = vsel %vm212, %v205, 0.0
    %214 = vadd.xlane.f32.xlu0 %v213
    %v215 = vpop.xlane.xlu0 %214
    %v216 = vrcp.pop 32.0
    %v217 = vmul.f32 %v211, %v216
    %v218 = vmul.f32 %v215, %v216
    %v219 = vsub.f32 %v204, %v217
    %v220 = vsub.f32 %v205, %v218
    %v221 = vmul.f32 %v219, %v219
    %v222 = vmul.f32 %v220, %v220
    %v223 = vsel %vm208, %v221, 0.0
    %224 = vadd.xlane.f32.xlu0 %v223
    %v225 = vpop.xlane.xlu0 %224
    %v226 = vsel %vm212, %v222, 0.0
    %227 = vadd.xlane.f32.xlu0 %v226
    %v228 = vpop.xlane.xlu0 %227
    %v229 = vmul.f32 %v225, %v216
    %v230 = vmul.f32 %v228, %v216
    %v231 = vadd.f32 %v229, 1e-05
    %v232 = vadd.f32 %v230, 1e-05
    %v233 = vrsqrt.pop %v231
    %v234 = vrsqrt.pop %v232
    %v235 = vmul.f32 %v219, %v233
    %v236 = vmul.f32 %v220, %v234
    %v238 = vlaneseq
    %v239 = vshrl.u32 %v238, 7
    %v240 = vsub.s32 0, %v239
    %v241 = vrot.slane %v206, %v240
    %v243 = vmul.f32 %v235, %v241
    %v244 = vmul.f32 %v236, %v241
    %v246 = vlaneseq
    %v247 = vshrl.u32 %v246, 7
    %v248 = vsub.s32 0, %v247
    %v249 = vrot.slane %v207, %v248
    %v251 = vadd.f32 %v243, %v249
    %v252 = vadd.f32 %v244, %v249
    %v253 = vld [vmem:[%s4] sm:$0xff]
    %v254 = vld [vmem:[%s4 + $0x8] sm:$0x3]
    %v255 = vld [vmem:[%s7] sm:$0x1]
    %v256 = vld [vmem:[%s8] sm:$0x1]
    %v257 = vsel %vm208, %v251, 0.0
    %258 = vadd.xlane.f32.xlu0 %v257
    %v259 = vpop.xlane.xlu0 %258
    %v260 = vsel %vm212, %v252, 0.0
    %261 = vadd.xlane.f32.xlu0 %v260
    %v262 = vpop.xlane.xlu0 %261
    %v263 = vmul.f32 %v259, %v216
    %v264 = vmul.f32 %v262, %v216
    %v265 = vsub.f32 %v251, %v263
    %v266 = vsub.f32 %v252, %v264
    %v267 = vmul.f32 %v265, %v265
    %v268 = vmul.f32 %v266, %v266
    %v269 = vsel %vm208, %v267, 0.0
    %270 = vadd.xlane.f32.xlu0 %v269
    %v271 = vpop.xlane.xlu0 %270
    %v272 = vsel %vm212, %v268, 0.0
    %273 = vadd.xlane.f32.xlu0 %v272
    %v274 = vpop.xlane.xlu0 %273
    %v275 = vmul.f32 %v271, %v216
    %v276 = vmul.f32 %v274, %v216
    %v277 = vadd.f32 %v275, 1e-05
    %v278 = vadd.f32 %v276, 1e-05
    %v279 = vrsqrt.pop %v277
    %v280 = vrsqrt.pop %v278
    %v281 = vmul.f32 %v265, %v279
    %v282 = vmul.f32 %v266, %v280
    %v284 = vlaneseq
    %v285 = vshrl.u32 %v284, 7
    %v286 = vsub.s32 0, %v285
    %v287 = vrot.slane %v255, %v286
    %v289 = vmul.f32 %v281, %v287
    %v290 = vmul.f32 %v282, %v287
    %v292 = vlaneseq
    %v293 = vshrl.u32 %v292, 7
    %v294 = vsub.s32 0, %v293
    %v295 = vrot.slane %v256, %v294
    %v297 = vadd.f32 %v289, %v295
    %v298 = vadd.f32 %v290, %v295
    %v299 = vld [vmem:[%s9] sm:$0xff]
    %v300 = vld [vmem:[%s9 + $0x8] sm:$0xff]
    %v301 = vld [vmem:[%s9 + $0x10] sm:$0xff]
    %v302 = vld [vmem:[%s9 + $0x18] sm:$0xff]
    %v303 = vld [vmem:[%s10] sm:$0x1]
    %v305 = vlaneseq
    %v306 = vshrl.u32 %v305, 7
    %v307 = vsub.s32 0, %v306
    %v308 = vrot.slane %v303, %v307
    %v311 = vsel %vm208, %v297, 0
    %v314 = vsel %vm208, %v298, 0
    %v317 = vsel %vm208, %v299, 0
    %v320 = vsel %vm208, %v300, 0
    %v323 = vsel %vm208, %v301, 0
    %v326 = vsel %vm208, %v302, 0
    %328 = vmatprep.subr.mxu0 0.0
    %329 = vmatpush1.xpose.msra.mxu0 %v317
    %330 = vmatprep.subr.mxu0 0.0
    %331 = vmatpush1.xpose.msra.mxu0 %v320
    %332 = vmatprep.subr.mxu0 0.0
    %333 = vmatpush1.xpose.msra.mxu0 %v323
    %334 = vmatprep.subr.mxu0 0.0
    %335 = vmatpush1.xpose.msra.mxu0 %v326
    %336 = vmatprep.subr.mxu0 0.0
    %337 = vmatpush1.xpose.msra.mxu0 0.0
    %338 = vmatprep.subr.mxu0 0.0
    %339 = vmatpush1.xpose.msra.mxu0 0.0
    %340 = vmatprep.subr.mxu0 0.0
    %341 = vmatpush1.xpose.msra.mxu0 0.0
    %342 = vmatprep.subr.mxu0 0.0
    %343 = vmatpush1.xpose.msra.mxu0 0.0
    %344 = vmatprep.subr.mxu0 0.0
    %345 = vmatpush1.xpose.msra.mxu0 0.0
    %346 = vmatprep.subr.mxu0 0.0
    %347 = vmatpush1.xpose.msra.mxu0 0.0
    %348 = vmatprep.subr.mxu0 0.0
    %349 = vmatpush1.xpose.msra.mxu0 0.0
    %350 = vmatprep.subr.mxu0 0.0
    %351 = vmatpush1.xpose.msra.mxu0 0.0
    %352 = vmatprep.subr.mxu0 0.0
    %353 = vmatpush1.xpose.msra.mxu0 0.0
    %354 = vmatprep.subr.mxu0 0.0
    %355 = vmatpush1.xpose.msra.mxu0 0.0
    %356 = vmatprep.subr.mxu0 0.0
    %357 = vmatpush1.xpose.msra.mxu0 0.0
    %358 = vmatprep.subr.mxu0 0.0
    %359 = vmatpush1.xpose.msra.mxu0 0.0
    %360 = vmatprep.subr.mxu0 0.0
    %361 = vmatpush1.xpose.msra.mxu0 0.0
    %362 = vmatprep.subr.mxu0 0.0
    %363 = vmatpush1.xpose.msra.mxu0 0.0
    %364 = vmatprep.subr.mxu0 0.0
    %365 = vmatpush1.xpose.msra.mxu0 0.0
    %366 = vmatprep.subr.mxu0 0.0
    %367 = vmatpush1.xpose.msra.mxu0 0.0
    %368 = vmatprep.subr.mxu0 0.0
    %369 = vmatpush1.xpose.msra.mxu0 0.0
    %370 = vmatprep.subr.mxu0 0.0
    %371 = vmatpush1.xpose.msra.mxu0 0.0
    %372 = vmatprep.subr.mxu0 0.0
    %373 = vmatpush1.xpose.msra.mxu0 0.0
    %374 = vmatprep.subr.mxu0 0.0
    %375 = vmatpush1.xpose.msra.mxu0 0.0
    %376 = vmatprep.subr.mxu0 0.0
    %377 = vmatpush1.xpose.msra.mxu0 0.0
    %378 = vmatprep.subr.mxu0 0.0
    %379 = vmatpush1.xpose.msra.mxu0 0.0
    %380 = vmatprep.subr.mxu0 0.0
    %381 = vmatpush1.xpose.msra.mxu0 0.0
    %382 = vmatprep.subr.mxu0 0.0
    %383 = vmatpush1.xpose.msra.mxu0 0.0
    %384 = vmatprep.subr.mxu0 0.0
    %385 = vmatpush1.xpose.msra.mxu0 0.0
    %386 = vmatprep.subr.mxu0 0.0
    %387 = vmatpush1.xpose.msra.mxu0 0.0
    %388 = vmatprep.subr.mxu0 0.0
    %389 = vmatpush1.xpose.msra.mxu0 0.0
    %390 = vmatprep.subr.mxu0 0.0
    %391 = vmatpush1.xpose.msra.mxu0 0.0
    %392 = vmatprep.mubr.f32.mxu0 0.0
    %393 = vmatmul.mubr.f32.gmra.mrb[0].mxu0 %v311
    %v394 = vpop.f32.mrb[0].mxu0
    %v395 = vadd.f32 %v308, %v394
    %v396 = vpop.f32.mrb[0].mxu0
    %397 = vmatprep.mubr.f32.mxu0 0.0
    %398 = vmatmul.mubr.f32.gmra.mrb[0].mxu0 %v314
    %v399 = vpop.f32.mrb[0].mxu0
    %v400 = vadd.f32 %v308, %v399
    %v401 = vpop.f32.mrb[0].mxu0
    %402 = vdwg.mxu0
    %v403 = vld [vmem:[%s11] sm:$0xff]
    %v404 = vld [vmem:[%s11 + $0x8] sm:$0xff]
    %v405 = vld [vmem:[%s11 + $0x10] sm:$0xff]
    %v406 = vld [vmem:[%s11 + $0x18] sm:$0xff]
    %v407 = vld [vmem:[%s12] sm:$0x1]
    %v409 = vlaneseq
    %v410 = vshrl.u32 %v409, 7
    %v411 = vsub.s32 0, %v410
    %v412 = vrot.slane %v407, %v411
    %v415 = vsel %vm208, %v403, 0
    %v418 = vsel %vm208, %v404, 0
    %v421 = vsel %vm208, %v405, 0
    %v424 = vsel %vm208, %v406, 0
    %426 = vmatprep.subr.mxu0 0.0
    %427 = vmatpush1.xpose.msra.mxu0 %v415
    %428 = vmatprep.subr.mxu0 0.0
    %429 = vmatpush1.xpose.msra.mxu0 %v418
    %430 = vmatprep.subr.mxu0 0.0
    %431 = vmatpush1.xpose.msra.mxu0 %v421
    %432 = vmatprep.subr.mxu0 0.0
    %433 = vmatpush1.xpose.msra.mxu0 %v424
    %434 = vmatprep.subr.mxu0 0.0
    %435 = vmatpush1.xpose.msra.mxu0 0.0
    %436 = vmatprep.subr.mxu0 0.0
    %437 = vmatpush1.xpose.msra.mxu0 0.0
    %438 = vmatprep.subr.mxu0 0.0
    %439 = vmatpush1.xpose.msra.mxu0 0.0
    %440 = vmatprep.subr.mxu0 0.0
    %441 = vmatpush1.xpose.msra.mxu0 0.0
    %442 = vmatprep.subr.mxu0 0.0
    %443 = vmatpush1.xpose.msra.mxu0 0.0
    %444 = vmatprep.subr.mxu0 0.0
    %445 = vmatpush1.xpose.msra.mxu0 0.0
    %446 = vmatprep.subr.mxu0 0.0
    %447 = vmatpush1.xpose.msra.mxu0 0.0
    %448 = vmatprep.subr.mxu0 0.0
    %449 = vmatpush1.xpose.msra.mxu0 0.0
    %450 = vmatprep.subr.mxu0 0.0
    %451 = vmatpush1.xpose.msra.mxu0 0.0
    %452 = vmatprep.subr.mxu0 0.0
    %453 = vmatpush1.xpose.msra.mxu0 0.0
    %454 = vmatprep.subr.mxu0 0.0
    %455 = vmatpush1.xpose.msra.mxu0 0.0
    %456 = vmatprep.subr.mxu0 0.0
    %457 = vmatpush1.xpose.msra.mxu0 0.0
    %458 = vmatprep.subr.mxu0 0.0
    %459 = vmatpush1.xpose.msra.mxu0 0.0
    %460 = vmatprep.subr.mxu0 0.0
    %461 = vmatpush1.xpose.msra.mxu0 0.0
    %462 = vmatprep.subr.mxu0 0.0
    %463 = vmatpush1.xpose.msra.mxu0 0.0
    %464 = vmatprep.subr.mxu0 0.0
    %465 = vmatpush1.xpose.msra.mxu0 0.0
    %466 = vmatprep.subr.mxu0 0.0
    %467 = vmatpush1.xpose.msra.mxu0 0.0
    %468 = vmatprep.subr.mxu0 0.0
    %469 = vmatpush1.xpose.msra.mxu0 0.0
    %470 = vmatprep.subr.mxu0 0.0
    %471 = vmatpush1.xpose.msra.mxu0 0.0
    %472 = vmatprep.subr.mxu0 0.0
    %473 = vmatpush1.xpose.msra.mxu0 0.0
    %474 = vmatprep.subr.mxu0 0.0
    %475 = vmatpush1.xpose.msra.mxu0 0.0
    %476 = vmatprep.subr.mxu0 0.0
    %477 = vmatpush1.xpose.msra.mxu0 0.0
    %478 = vmatprep.subr.mxu0 0.0
    %479 = vmatpush1.xpose.msra.mxu0 0.0
    %480 = vmatprep.subr.mxu0 0.0
    %481 = vmatpush1.xpose.msra.mxu0 0.0
    %482 = vmatprep.subr.mxu0 0.0
    %483 = vmatpush1.xpose.msra.mxu0 0.0
    %484 = vmatprep.subr.mxu0 0.0
    %485 = vmatpush1.xpose.msra.mxu0 0.0
    %486 = vmatprep.subr.mxu0 0.0
    %487 = vmatpush1.xpose.msra.mxu0 0.0
    %488 = vmatprep.subr.mxu0 0.0
    %489 = vmatpush1.xpose.msra.mxu0 0.0
    %490 = vmatprep.mubr.f32.mxu0 0.0
    %491 = vmatmul.mubr.f32.gmra.mrb[0].mxu0 %v311
    %v492 = vpop.f32.mrb[0].mxu0
    %v493 = vadd.f32 %v412, %v492
    %v494 = vpop.f32.mrb[0].mxu0
    %495 = vmatprep.mubr.f32.mxu0 0.0
    %496 = vmatmul.mubr.f32.gmra.mrb[0].mxu0 %v314
    %v497 = vpop.f32.mrb[0].mxu0
    %v498 = vadd.f32 %v412, %v497
    %v499 = vpop.f32.mrb[0].mxu0
    %500 = vdwg.mxu0
    %v501 = vld [vmem:[%s13] sm:$0xff]
    %v502 = vld [vmem:[%s13 + $0x8] sm:$0xff]
    %v503 = vld [vmem:[%s13 + $0x10] sm:$0xff]
    %v504 = vld [vmem:[%s13 + $0x18] sm:$0xff]
    %v505 = vld [vmem:[%s14] sm:$0x1]
    %v507 = vlaneseq
    %v508 = vshrl.u32 %v507, 7
    %v509 = vsub.s32 0, %v508
    %v510 = vrot.slane %v505, %v509
    %v513 = vsel %vm208, %v501, 0
    %v516 = vsel %vm208, %v502, 0
    %v519 = vsel %vm208, %v503, 0
    %v522 = vsel %vm208, %v504, 0
    %524 = vmatprep.subr.mxu0 0.0
    %525 = vmatpush1.xpose.msra.mxu0 %v513
    %526 = vmatprep.subr.mxu0 0.0
    %527 = vmatpush1.xpose.msra.mxu0 %v516
    %528 = vmatprep.subr.mxu0 0.0
    %529 = vmatpush1.xpose.msra.mxu0 %v519
    %530 = vmatprep.subr.mxu0 0.0
    %531 = vmatpush1.xpose.msra.mxu0 %v522
    %532 = vmatprep.subr.mxu0 0.0
    %533 = vmatpush1.xpose.msra.mxu0 0.0
    %534 = vmatprep.subr.mxu0 0.0
    %535 = vmatpush1.xpose.msra.mxu0 0.0
    %536 = vmatprep.subr.mxu0 0.0
    %537 = vmatpush1.xpose.msra.mxu0 0.0
    %538 = vmatprep.subr.mxu0 0.0
    %539 = vmatpush1.xpose.msra.mxu0 0.0
    %540 = vmatprep.subr.mxu0 0.0
    %541 = vmatpush1.xpose.msra.mxu0 0.0
    %542 = vmatprep.subr.mxu0 0.0
    %543 = vmatpush1.xpose.msra.mxu0 0.0
    %544 = vmatprep.subr.mxu0 0.0
    %545 = vmatpush1.xpose.msra.mxu0 0.0
    %546 = vmatprep.subr.mxu0 0.0
    %547 = vmatpush1.xpose.msra.mxu0 0.0
    %548 = vmatprep.subr.mxu0 0.0
    %549 = vmatpush1.xpose.msra.mxu0 0.0
    %550 = vmatprep.subr.mxu0 0.0
    %551 = vmatpush1.xpose.msra.mxu0 0.0
    %552 = vmatprep.subr.mxu0 0.0
    %553 = vmatpush1.xpose.msra.mxu0 0.0
    %554 = vmatprep.subr.mxu0 0.0
    %555 = vmatpush1.xpose.msra.mxu0 0.0
    %556 = vmatprep.subr.mxu0 0.0
    %557 = vmatpush1.xpose.msra.mxu0 0.0
    %558 = vmatprep.subr.mxu0 0.0
    %559 = vmatpush1.xpose.msra.mxu0 0.0
    %560 = vmatprep.subr.mxu0 0.0
    %561 = vmatpush1.xpose.msra.mxu0 0.0
    %562 = vmatprep.subr.mxu0 0.0
    %563 = vmatpush1.xpose.msra.mxu0 0.0
    %564 = vmatprep.subr.mxu0 0.0
    %565 = vmatpush1.xpose.msra.mxu0 0.0
    %566 = vmatprep.subr.mxu0 0.0
    %567 = vmatpush1.xpose.msra.mxu0 0.0
    %568 = vmatprep.subr.mxu0 0.0
    %569 = vmatpush1.xpose.msra.mxu0 0.0
    %570 = vmatprep.subr.mxu0 0.0
    %571 = vmatpush1.xpose.msra.mxu0 0.0
    %572 = vmatprep.subr.mxu0 0.0
    %573 = vmatpush1.xpose.msra.mxu0 0.0
    %574 = vmatprep.subr.mxu0 0.0
    %575 = vmatpush1.xpose.msra.mxu0 0.0
    %576 = vmatprep.subr.mxu0 0.0
    %577 = vmatpush1.xpose.msra.mxu0 0.0
    %578 = vmatprep.subr.mxu0 0.0
    %579 = vmatpush1.xpose.msra.mxu0 0.0
    %580 = vmatprep.subr.mxu0 0.0
    %581 = vmatpush1.xpose.msra.mxu0 0.0
    %582 = vmatprep.subr.mxu0 0.0
    %583 = vmatpush1.xpose.msra.mxu0 0.0
    %584 = vmatprep.subr.mxu0 0.0
    %585 = vmatpush1.xpose.msra.mxu0 0.0
    %586 = vmatprep.subr.mxu0 0.0
    %587 = vmatpush1.xpose.msra.mxu0 0.0
    %588 = vmatprep.mubr.f32.mxu0 0.0
    %589 = vmatmul.mubr.f32.gmra.mrb[0].mxu0 %v311
    %v590 = vpop.f32.mrb[0].mxu0
    %v591 = vadd.f32 %v510, %v590
    %v592 = vpop.f32.mrb[0].mxu0
    %593 = vmatprep.mubr.f32.mxu0 0.0
    %594 = vmatmul.mubr.f32.gmra.mrb[0].mxu0 %v314
    %v595 = vpop.f32.mrb[0].mxu0
    %v596 = vadd.f32 %v510, %v595
    %v597 = vpop.f32.mrb[0].mxu0
    %598 = vdwg.mxu0
    %vm599 = vcmask 64512
    %v601 = vsel %vm599, %v395, 0
    %v604 = vsel %vm599, %v400, 0
    %v607 = vsel %vm599, %v493, 0
    %v610 = vsel %vm599, %v498, 0
    %612 = vmatprep.subr.mxu0 0.0
    %613 = vmatpush1.xpose.msra.mxu0 %v607
    %614 = vmatprep.subr.mxu0 0.0
    %615 = vmatpush1.xpose.msra.mxu0 %v610
    %616 = vmatprep.subr.mxu0 0.0
    %617 = vmatpush1.xpose.msra.mxu0 0.0
    %618 = vmatprep.subr.mxu0 0.0
    %619 = vmatpush1.xpose.msra.mxu0 0.0
    %620 = vmatprep.subr.mxu0 0.0
    %621 = vmatpush1.xpose.msra.mxu0 0.0
    %622 = vmatprep.subr.mxu0 0.0
    %623 = vmatpush1.xpose.msra.mxu0 0.0
    %624 = vmatprep.subr.mxu0 0.0
    %625 = vmatpush1.xpose.msra.mxu0 0.0
    %626 = vmatprep.subr.mxu0 0.0
    %627 = vmatpush1.xpose.msra.mxu0 0.0
    %628 = vmatprep.subr.mxu0 0.0
    %629 = vmatpush1.xpose.msra.mxu0 0.0
    %630 = vmatprep.subr.mxu0 0.0
    %631 = vmatpush1.xpose.msra.mxu0 0.0
    %632 = vmatprep.subr.mxu0 0.0
    %633 = vmatpush1.xpose.msra.mxu0 0.0
    %634 = vmatprep.subr.mxu0 0.0
    %635 = vmatpush1.xpose.msra.mxu0 0.0
    %636 = vmatprep.subr.mxu0 0.0
    %637 = vmatpush1.xpose.msra.mxu0 0.0
    %638 = vmatprep.subr.mxu0 0.0
    %639 = vmatpush1.xpose.msra.mxu0 0.0
    %640 = vmatprep.subr.mxu0 0.0
    %641 = vmatpush1.xpose.msra.mxu0 0.0
    %642 = vmatprep.subr.mxu0 0.0
    %643 = vmatpush1.xpose.msra.mxu0 0.0
    %644 = vmatprep.subr.mxu0 0.0
    %645 = vmatpush1.xpose.msra.mxu0 0.0
    %646 = vmatprep.subr.mxu0 0.0
    %647 = vmatpush1.xpose.msra.mxu0 0.0
    %648 = vmatprep.subr.mxu0 0.0
    %649 = vmatpush1.xpose.msra.mxu0 0.0
    %650 = vmatprep.subr.mxu0 0.0
    %651 = vmatpush1.xpose.msra.mxu0 0.0
    %652 = vmatprep.subr.mxu0 0.0
    %653 = vmatpush1.xpose.msra.mxu0 0.0
    %654 = vmatprep.subr.mxu0 0.0
    %655 = vmatpush1.xpose.msra.mxu0 0.0
    %656 = vmatprep.subr.mxu0 0.0
    %657 = vmatpush1.xpose.msra.mxu0 0.0
    %658 = vmatprep.subr.mxu0 0.0
    %659 = vmatpush1.xpose.msra.mxu0 0.0
    %660 = vmatprep.subr.mxu0 0.0
    %661 = vmatpush1.xpose.msra.mxu0 0.0
    %662 = vmatprep.subr.mxu0 0.0
    %663 = vmatpush1.xpose.msra.mxu0 0.0
    %664 = vmatprep.subr.mxu0 0.0
    %665 = vmatpush1.xpose.msra.mxu0 0.0
    %666 = vmatprep.subr.mxu0 0.0
    %667 = vmatpush1.xpose.msra.mxu0 0.0
    %668 = vmatprep.subr.mxu0 0.0
    %669 = vmatpush1.xpose.msra.mxu0 0.0
    %670 = vmatprep.subr.mxu0 0.0
    %671 = vmatpush1.xpose.msra.mxu0 0.0
    %672 = vmatprep.subr.mxu0 0.0
    %673 = vmatpush1.xpose.msra.mxu0 0.0
    %674 = vmatprep.subr.mxu0 0.0
    %675 = vmatpush1.xpose.msra.mxu0 0.0
    %676 = vmatprep.mubr.f32.mxu0 0.0
    %677 = vmatmul.mubr.f32.gmra.mrb[0].mxu0 %v601
    %v678 = vpop.f32.mrb[0].mxu0
    %v679 = vadd.f32 %v253, %v678
    %v680 = vpop.f32.mrb[0].mxu0
    %681 = vmatprep.mubr.f32.mxu0 0.0
    %682 = vmatmul.mubr.f32.gmra.mrb[0].mxu0 %v604
    %v683 = vpop.f32.mrb[0].mxu0
    %v684 = vadd.f32 %v254, %v683
    %v685 = vpop.f32.mrb[0].mxu0
    %686 = vdwg.mxu0
    %vm687 = vcmask 80896
    %v688 = vsel %vm687, %v679, -inf
    %689 = vmax.xlane.f32.xlu0 %v688
    %v690 = vpop.xlane.xlu0 %689
    %vm691 = vcmask 74752
    %v692 = vsel %vm691, %v684, -inf
    %693 = vmax.xlane.f32.xlu0 %v692
    %v694 = vpop.xlane.xlu0 %693
    %v695 = vsub.f32 %v679, %v690
    %v696 = vsub.f32 %v684, %v694
    %v697 = vmul.f32 %v695, 1.442695
    %v698 = vpow.pop %v697
    %v699 = vmul.f32 %v696, 1.442695
    %v700 = vpow.pop %v699
    %v701 = vsel %vm687, %v698, 0.0
    %702 = vadd.xlane.f32.xlu0 %v701
    %v703 = vpop.xlane.xlu0 %702
    %v704 = vsel %vm691, %v700, 0.0
    %705 = vadd.xlane.f32.xlu0 %v704
    %v706 = vpop.xlane.xlu0 %705
    %v707 = vrcp.pop %v703
    %v708 = vrcp.pop %v706
    %v709 = vmul.f32 %v698, %v707
    %v710 = vmul.f32 %v700, %v708
    %v712 = vsel %vm687, %v709, 0
    %v715 = vsel %vm687, %v710, 0
    %vm717 = vcmask 1041408
    %v719 = vsel %vm717, %v596, 0
    %721 = vmatprep.subr.mxu0 0.0
    %722 = vmatpush1.msra.mxu0 %v591
    %723 = vmatprep.subr.mxu0 0.0
    %724 = vmatpush1.msra.mxu0 %v719
    %725 = vmatprep.subr.mxu0 0.0
    %726 = vmatpush1.msra.mxu0 0.0
    %727 = vmatprep.subr.mxu0 0.0
    %728 = vmatpush1.msra.mxu0 0.0
    %729 = vmatprep.subr.mxu0 0.0
    %730 = vmatpush1.msra.mxu0 0.0
    %731 = vmatprep.subr.mxu0 0.0
    %732 = vmatpush1.msra.mxu0 0.0
    %733 = vmatprep.subr.mxu0 0.0
    %734 = vmatpush1.msra.mxu0 0.0
    %735 = vmatprep.subr.mxu0 0.0
    %736 = vmatpush1.msra.mxu0 0.0
    %737 = vmatprep.subr.mxu0 0.0
    %738 = vmatpush1.msra.mxu0 0.0
    %739 = vmatprep.subr.mxu0 0.0
    %740 = vmatpush1.msra.mxu0 0.0
    %741 = vmatprep.subr.mxu0 0.0
    %742 = vmatpush1.msra.mxu0 0.0
    %743 = vmatprep.subr.mxu0 0.0
    %744 = vmatpush1.msra.mxu0 0.0
    %745 = vmatprep.subr.mxu0 0.0
    %746 = vmatpush1.msra.mxu0 0.0
    %747 = vmatprep.subr.mxu0 0.0
    %748 = vmatpush1.msra.mxu0 0.0
    %749 = vmatprep.subr.mxu0 0.0
    %750 = vmatpush1.msra.mxu0 0.0
    %751 = vmatprep.subr.mxu0 0.0
    %752 = vmatpush1.msra.mxu0 0.0
    %753 = vmatprep.subr.mxu0 0.0
    %754 = vmatpush1.msra.mxu0 0.0
    %755 = vmatprep.subr.mxu0 0.0
    %756 = vmatpush1.msra.mxu0 0.0
    %757 = vmatprep.subr.mxu0 0.0
    %758 = vmatpush1.msra.mxu0 0.0
    %759 = vmatprep.subr.mxu0 0.0
    %760 = vmatpush1.msra.mxu0 0.0
    %761 = vmatprep.subr.mxu0 0.0
    %762 = vmatpush1.msra.mxu0 0.0
    %763 = vmatprep.subr.mxu0 0.0
    %764 = vmatpush1.msra.mxu0 0.0
    %765 = vmatprep.subr.mxu0 0.0
    %766 = vmatpush1.msra.mxu0 0.0
    %767 = vmatprep.subr.mxu0 0.0
    %768 = vmatpush1.msra.mxu0 0.0
    %769 = vmatprep.subr.mxu0 0.0
    %770 = vmatpush1.msra.mxu0 0.0
    %771 = vmatprep.subr.mxu0 0.0
    %772 = vmatpush1.msra.mxu0 0.0
    %773 = vmatprep.subr.mxu0 0.0
    %774 = vmatpush1.msra.mxu0 0.0
    %775 = vmatprep.subr.mxu0 0.0
    %776 = vmatpush1.msra.mxu0 0.0
    %777 = vmatprep.subr.mxu0 0.0
    %778 = vmatpush1.msra.mxu0 0.0
    %779 = vmatprep.subr.mxu0 0.0
    %780 = vmatpush1.msra.mxu0 0.0
    %781 = vmatprep.subr.mxu0 0.0
    %782 = vmatpush1.msra.mxu0 0.0
    %783 = vmatprep.subr.mxu0 0.0
    %784 = vmatpush1.msra.mxu0 0.0
    %785 = vmatprep.mubr.f32.mxu0 0.0
    %786 = vmatmul.mubr.f32.gmra.mrb[0].mxu0 %v712
    %v787 = vpop.f32.mrb[0].mxu0
    %v788 = vadd.f32 0.0, %v787
    %v789 = vpop.f32.mrb[0].mxu0
    %790 = vmatprep.mubr.f32.mxu0 0.0
    %791 = vmatmul.mubr.f32.gmra.mrb[0].mxu0 %v715
    %v792 = vpop.f32.mrb[0].mxu0
    %v793 = vadd.f32 0.0, %v792
    %v794 = vpop.f32.mrb[0].mxu0
    %795 = vdwg.mxu0
    %796 = vrot.lane.b32.xlu0 %v395, 120
    %v797 = vpop.permute.xlu0 %796
    %798 = vrot.lane.b32.xlu0 %v400, 120
    %v799 = vpop.permute.xlu0 %798
    %800 = vrot.lane.b32.xlu0 %v493, 120
    %v801 = vpop.permute.xlu0 %800
    %802 = vrot.lane.b32.xlu0 %v498, 120
    %v803 = vpop.permute.xlu0 %802
    %v804 = vsel %vm599, %v797, 0
    %v806 = vsel %vm599, %v799, 0
    %v808 = vsel %vm599, %v801, 0
    %v810 = vsel %vm599, %v803, 0
    %812 = vmatprep.subr.mxu0 0.0
    %813 = vmatpush1.xpose.msra.mxu0 %v808
    %814 = vmatprep.subr.mxu0 0.0
    %815 = vmatpush1.xpose.msra.mxu0 %v810
    %816 = vmatprep.subr.mxu0 0.0
    %817 = vmatpush1.xpose.msra.mxu0 0.0
    %818 = vmatprep.subr.mxu0 0.0
    %819 = vmatpush1.xpose.msra.mxu0 0.0
    %820 = vmatprep.subr.mxu0 0.0
    %821 = vmatpush1.xpose.msra.mxu0 0.0
    %822 = vmatprep.subr.mxu0 0.0
    %823 = vmatpush1.xpose.msra.mxu0 0.0
    %824 = vmatprep.subr.mxu0 0.0
    %825 = vmatpush1.xpose.msra.mxu0 0.0
    %826 = vmatprep.subr.mxu0 0.0
    %827 = vmatpush1.xpose.msra.mxu0 0.0
    %828 = vmatprep.subr.mxu0 0.0
    %829 = vmatpush1.xpose.msra.mxu0 0.0
    %830 = vmatprep.subr.mxu0 0.0
    %831 = vmatpush1.xpose.msra.mxu0 0.0
    %832 = vmatprep.subr.mxu0 0.0
    %833 = vmatpush1.xpose.msra.mxu0 0.0
    %834 = vmatprep.subr.mxu0 0.0
    %835 = vmatpush1.xpose.msra.mxu0 0.0
    %836 = vmatprep.subr.mxu0 0.0
    %837 = vmatpush1.xpose.msra.mxu0 0.0
    %838 = vmatprep.subr.mxu0 0.0
    %839 = vmatpush1.xpose.msra.mxu0 0.0
    %840 = vmatprep.subr.mxu0 0.0
    %841 = vmatpush1.xpose.msra.mxu0 0.0
    %842 = vmatprep.subr.mxu0 0.0
    %843 = vmatpush1.xpose.msra.mxu0 0.0
    %844 = vmatprep.subr.mxu0 0.0
    %845 = vmatpush1.xpose.msra.mxu0 0.0
    %846 = vmatprep.subr.mxu0 0.0
    %847 = vmatpush1.xpose.msra.mxu0 0.0
    %848 = vmatprep.subr.mxu0 0.0
    %849 = vmatpush1.xpose.msra.mxu0 0.0
    %850 = vmatprep.subr.mxu0 0.0
    %851 = vmatpush1.xpose.msra.mxu0 0.0
    %852 = vmatprep.subr.mxu0 0.0
    %853 = vmatpush1.xpose.msra.mxu0 0.0
    %854 = vmatprep.subr.mxu0 0.0
    %855 = vmatpush1.xpose.msra.mxu0 0.0
    %856 = vmatprep.subr.mxu0 0.0
    %857 = vmatpush1.xpose.msra.mxu0 0.0
    %858 = vmatprep.subr.mxu0 0.0
    %859 = vmatpush1.xpose.msra.mxu0 0.0
    %860 = vmatprep.subr.mxu0 0.0
    %861 = vmatpush1.xpose.msra.mxu0 0.0
    %862 = vmatprep.subr.mxu0 0.0
    %863 = vmatpush1.xpose.msra.mxu0 0.0
    %864 = vmatprep.subr.mxu0 0.0
    %865 = vmatpush1.xpose.msra.mxu0 0.0
    %866 = vmatprep.subr.mxu0 0.0
    %867 = vmatpush1.xpose.msra.mxu0 0.0
    %868 = vmatprep.subr.mxu0 0.0
    %869 = vmatpush1.xpose.msra.mxu0 0.0
    %870 = vmatprep.subr.mxu0 0.0
    %871 = vmatpush1.xpose.msra.mxu0 0.0
    %872 = vmatprep.subr.mxu0 0.0
    %873 = vmatpush1.xpose.msra.mxu0 0.0
    %874 = vmatprep.subr.mxu0 0.0
    %875 = vmatpush1.xpose.msra.mxu0 0.0
    %876 = vmatprep.mubr.f32.mxu0 0.0
    %877 = vmatmul.mubr.f32.gmra.mrb[0].mxu0 %v804
    %v878 = vpop.f32.mrb[0].mxu0
    %v879 = vadd.f32 %v253, %v878
    %v880 = vpop.f32.mrb[0].mxu0
    %881 = vmatprep.mubr.f32.mxu0 0.0
    %882 = vmatmul.mubr.f32.gmra.mrb[0].mxu0 %v806
    %v883 = vpop.f32.mrb[0].mxu0
    %v884 = vadd.f32 %v254, %v883
    %v885 = vpop.f32.mrb[0].mxu0
    %886 = vdwg.mxu0
    %v887 = vsel %vm687, %v879, -inf
    %888 = vmax.xlane.f32.xlu0 %v887
    %v889 = vpop.xlane.xlu0 %888
    %v890 = vsel %vm691, %v884, -inf
    %891 = vmax.xlane.f32.xlu0 %v890
    %v892 = vpop.xlane.xlu0 %891
    %v893 = vsub.f32 %v879, %v889
    %v894 = vsub.f32 %v884, %v892
    %v895 = vmul.f32 %v893, 1.442695
    %v896 = vpow.pop %v895
    %v897 = vmul.f32 %v894, 1.442695
    %v898 = vpow.pop %v897
    %v899 = vsel %vm687, %v896, 0.0
    %900 = vadd.xlane.f32.xlu0 %v899
    %v901 = vpop.xlane.xlu0 %900
    %v902 = vsel %vm691, %v898, 0.0
    %903 = vadd.xlane.f32.xlu0 %v902
    %v904 = vpop.xlane.xlu0 %903
    %v905 = vrcp.pop %v901
    %v906 = vrcp.pop %v904
    %v907 = vmul.f32 %v896, %v905
    %v908 = vmul.f32 %v898, %v906
    %910 = vrot.lane.b32.xlu0 %v591, 120
    %v911 = vpop.permute.xlu0 %910
    %912 = vrot.lane.b32.xlu0 %v596, 120
    %v913 = vpop.permute.xlu0 %912
    %v916 = vsel %vm687, %v907, 0
    %v919 = vsel %vm687, %v908, 0
    %v921 = vsel %vm717, %v913, 0
    %923 = vmatprep.subr.mxu0 0.0
    %924 = vmatpush1.msra.mxu0 %v911
    %925 = vmatprep.subr.mxu0 0.0
    %926 = vmatpush1.msra.mxu0 %v921
    %927 = vmatprep.subr.mxu0 0.0
    %928 = vmatpush1.msra.mxu0 0.0
    %929 = vmatprep.subr.mxu0 0.0
    %930 = vmatpush1.msra.mxu0 0.0
    %931 = vmatprep.subr.mxu0 0.0
    %932 = vmatpush1.msra.mxu0 0.0
    %933 = vmatprep.subr.mxu0 0.0
    %934 = vmatpush1.msra.mxu0 0.0
    %935 = vmatprep.subr.mxu0 0.0
    %936 = vmatpush1.msra.mxu0 0.0
    %937 = vmatprep.subr.mxu0 0.0
    %938 = vmatpush1.msra.mxu0 0.0
    %939 = vmatprep.subr.mxu0 0.0
    %940 = vmatpush1.msra.mxu0 0.0
    %941 = vmatprep.subr.mxu0 0.0
    %942 = vmatpush1.msra.mxu0 0.0
    %943 = vmatprep.subr.mxu0 0.0
    %944 = vmatpush1.msra.mxu0 0.0
    %945 = vmatprep.subr.mxu0 0.0
    %946 = vmatpush1.msra.mxu0 0.0
    %947 = vmatprep.subr.mxu0 0.0
    %948 = vmatpush1.msra.mxu0 0.0
    %949 = vmatprep.subr.mxu0 0.0
    %950 = vmatpush1.msra.mxu0 0.0
    %951 = vmatprep.subr.mxu0 0.0
    %952 = vmatpush1.msra.mxu0 0.0
    %953 = vmatprep.subr.mxu0 0.0
    %954 = vmatpush1.msra.mxu0 0.0
    %955 = vmatprep.subr.mxu0 0.0
    %956 = vmatpush1.msra.mxu0 0.0
    %957 = vmatprep.subr.mxu0 0.0
    %958 = vmatpush1.msra.mxu0 0.0
    %959 = vmatprep.subr.mxu0 0.0
    %960 = vmatpush1.msra.mxu0 0.0
    %961 = vmatprep.subr.mxu0 0.0
    %962 = vmatpush1.msra.mxu0 0.0
    %963 = vmatprep.subr.mxu0 0.0
    %964 = vmatpush1.msra.mxu0 0.0
    %965 = vmatprep.subr.mxu0 0.0
    %966 = vmatpush1.msra.mxu0 0.0
    %967 = vmatprep.subr.mxu0 0.0
    %968 = vmatpush1.msra.mxu0 0.0
    %969 = vmatprep.subr.mxu0 0.0
    %970 = vmatpush1.msra.mxu0 0.0
    %971 = vmatprep.subr.mxu0 0.0
    %972 = vmatpush1.msra.mxu0 0.0
    %973 = vmatprep.subr.mxu0 0.0
    %974 = vmatpush1.msra.mxu0 0.0
    %975 = vmatprep.subr.mxu0 0.0
    %976 = vmatpush1.msra.mxu0 0.0
    %977 = vmatprep.subr.mxu0 0.0
    %978 = vmatpush1.msra.mxu0 0.0
    %979 = vmatprep.subr.mxu0 0.0
    %980 = vmatpush1.msra.mxu0 0.0
    %981 = vmatprep.subr.mxu0 0.0
    %982 = vmatpush1.msra.mxu0 0.0
    %983 = vmatprep.subr.mxu0 0.0
    %984 = vmatpush1.msra.mxu0 0.0
    %985 = vmatprep.subr.mxu0 0.0
    %986 = vmatpush1.msra.mxu0 0.0
    %987 = vmatprep.mubr.f32.mxu0 0.0
    %988 = vmatmul.mubr.f32.gmra.mrb[0].mxu0 %v916
    %v989 = vpop.f32.mrb[0].mxu0
    %v990 = vadd.f32 0.0, %v989
    %v991 = vpop.f32.mrb[0].mxu0
    %992 = vmatprep.mubr.f32.mxu0 0.0
    %993 = vmatmul.mubr.f32.gmra.mrb[0].mxu0 %v919
    %v994 = vpop.f32.mrb[0].mxu0
    %v995 = vadd.f32 0.0, %v994
    %v996 = vpop.f32.mrb[0].mxu0
    %997 = vdwg.mxu0
    %998 = vrot.lane.b32.xlu0 %v395, 112
    %v999 = vpop.permute.xlu0 %998
    %1000 = vrot.lane.b32.xlu0 %v400, 112
    %v1001 = vpop.permute.xlu0 %1000
    %1002 = vrot.lane.b32.xlu0 %v493, 112
    %v1003 = vpop.permute.xlu0 %1002
    %1004 = vrot.lane.b32.xlu0 %v498, 112
    %v1005 = vpop.permute.xlu0 %1004
    %v1006 = vsel %vm599, %v999, 0
    %v1008 = vsel %vm599, %v1001, 0
    %v1010 = vsel %vm599, %v1003, 0
    %v1012 = vsel %vm599, %v1005, 0
    %1014 = vmatprep.subr.mxu0 0.0
    %1015 = vmatpush1.xpose.msra.mxu0 %v1010
    %1016 = vmatprep.subr.mxu0 0.0
    %1017 = vmatpush1.xpose.msra.mxu0 %v1012
    %1018 = vmatprep.subr.mxu0 0.0
    %1019 = vmatpush1.xpose.msra.mxu0 0.0
    %1020 = vmatprep.subr.mxu0 0.0
    %1021 = vmatpush1.xpose.msra.mxu0 0.0
    %1022 = vmatprep.subr.mxu0 0.0
    %1023 = vmatpush1.xpose.msra.mxu0 0.0
    %1024 = vmatprep.subr.mxu0 0.0
    %1025 = vmatpush1.xpose.msra.mxu0 0.0
    %1026 = vmatprep.subr.mxu0 0.0
    %1027 = vmatpush1.xpose.msra.mxu0 0.0
    %1028 = vmatprep.subr.mxu0 0.0
    %1029 = vmatpush1.xpose.msra.mxu0 0.0
    %1030 = vmatprep.subr.mxu0 0.0
    %1031 = vmatpush1.xpose.msra.mxu0 0.0
    %1032 = vmatprep.subr.mxu0 0.0
    %1033 = vmatpush1.xpose.msra.mxu0 0.0
    %1034 = vmatprep.subr.mxu0 0.0
    %1035 = vmatpush1.xpose.msra.mxu0 0.0
    %1036 = vmatprep.subr.mxu0 0.0
    %1037 = vmatpush1.xpose.msra.mxu0 0.0
    %1038 = vmatprep.subr.mxu0 0.0
    %1039 = vmatpush1.xpose.msra.mxu0 0.0
    %1040 = vmatprep.subr.mxu0 0.0
    %1041 = vmatpush1.xpose.msra.mxu0 0.0
    %1042 = vmatprep.subr.mxu0 0.0
    %1043 = vmatpush1.xpose.msra.mxu0 0.0
    %1044 = vmatprep.subr.mxu0 0.0
    %1045 = vmatpush1.xpose.msra.mxu0 0.0
    %1046 = vmatprep.subr.mxu0 0.0
    %1047 = vmatpush1.xpose.msra.mxu0 0.0
    %1048 = vmatprep.subr.mxu0 0.0
    %1049 = vmatpush1.xpose.msra.mxu0 0.0
    %1050 = vmatprep.subr.mxu0 0.0
    %1051 = vmatpush1.xpose.msra.mxu0 0.0
    %1052 = vmatprep.subr.mxu0 0.0
    %1053 = vmatpush1.xpose.msra.mxu0 0.0
    %1054 = vmatprep.subr.mxu0 0.0
    %1055 = vmatpush1.xpose.msra.mxu0 0.0
    %1056 = vmatprep.subr.mxu0 0.0
    %1057 = vmatpush1.xpose.msra.mxu0 0.0
    %1058 = vmatprep.subr.mxu0 0.0
    %1059 = vmatpush1.xpose.msra.mxu0 0.0
    %1060 = vmatprep.subr.mxu0 0.0
    %1061 = vmatpush1.xpose.msra.mxu0 0.0
    %1062 = vmatprep.subr.mxu0 0.0
    %1063 = vmatpush1.xpose.msra.mxu0 0.0
    %1064 = vmatprep.subr.mxu0 0.0
    %1065 = vmatpush1.xpose.msra.mxu0 0.0
    %1066 = vmatprep.subr.mxu0 0.0
    %1067 = vmatpush1.xpose.msra.mxu0 0.0
    %1068 = vmatprep.subr.mxu0 0.0
    %1069 = vmatpush1.xpose.msra.mxu0 0.0
    %1070 = vmatprep.subr.mxu0 0.0
    %1071 = vmatpush1.xpose.msra.mxu0 0.0
    %1072 = vmatprep.subr.mxu0 0.0
    %1073 = vmatpush1.xpose.msra.mxu0 0.0
    %1074 = vmatprep.subr.mxu0 0.0
    %1075 = vmatpush1.xpose.msra.mxu0 0.0
    %1076 = vmatprep.subr.mxu0 0.0
    %1077 = vmatpush1.xpose.msra.mxu0 0.0
    %1078 = vmatprep.mubr.f32.mxu0 0.0
    %1079 = vmatmul.mubr.f32.gmra.mrb[0].mxu0 %v1006
    %v1080 = vpop.f32.mrb[0].mxu0
    %v1081 = vadd.f32 %v253, %v1080
    %v1082 = vpop.f32.mrb[0].mxu0
    %1083 = vmatprep.mubr.f32.mxu0 0.0
    %1084 = vmatmul.mubr.f32.gmra.mrb[0].mxu0 %v1008
    %v1085 = vpop.f32.mrb[0].mxu0
    %v1086 = vadd.f32 %v254, %v1085
    %v1087 = vpop.f32.mrb[0].mxu0
    %1088 = vdwg.mxu0
    %v1089 = vsel %vm687, %v1081, -inf
    %1090 = vmax.xlane.f32.xlu0 %v1089
    %v1091 = vpop.xlane.xlu0 %1090
    %v1092 = vsel %vm691, %v1086, -inf
    %1093 = vmax.xlane.f32.xlu0 %v1092
    %v1094 = vpop.xlane.xlu0 %1093
    %v1095 = vsub.f32 %v1081, %v1091
    %v1096 = vsub.f32 %v1086, %v1094
    %v1097 = vmul.f32 %v1095, 1.442695
    %v1098 = vpow.pop %v1097
    %v1099 = vmul.f32 %v1096, 1.442695
    %v1100 = vpow.pop %v1099
    %v1101 = vsel %vm687, %v1098, 0.0
    %1102 = vadd.xlane.f32.xlu0 %v1101
    %v1103 = vpop.xlane.xlu0 %1102
    %v1104 = vsel %vm691, %v1100, 0.0
    %1105 = vadd.xlane.f32.xlu0 %v1104
    %v1106 = vpop.xlane.xlu0 %1105
    %v1107 = vrcp.pop %v1103
    %v1108 = vrcp.pop %v1106
    %v1109 = vmul.f32 %v1098, %v1107
    %v1110 = vmul.f32 %v1100, %v1108
    %1111 = vrot.lane.b32.xlu0 %v591, 112
    %v1112 = vpop.permute.xlu0 %1111
    %1113 = vrot.lane.b32.xlu0 %v596, 112
    %v1114 = vpop.permute.xlu0 %1113
    %v1117 = vsel %vm687, %v1109, 0
    %v1120 = vsel %vm687, %v1110, 0
    %v1122 = vsel %vm717, %v1114, 0
    %1124 = vmatprep.subr.mxu0 0.0
    %1125 = vmatpush1.msra.mxu0 %v1112
    %1126 = vmatprep.subr.mxu0 0.0
    %1127 = vmatpush1.msra.mxu0 %v1122
    %1128 = vmatprep.subr.mxu0 0.0
    %1129 = vmatpush1.msra.mxu0 0.0
    %1130 = vmatprep.subr.mxu0 0.0
    %1131 = vmatpush1.msra.mxu0 0.0
    %1132 = vmatprep.subr.mxu0 0.0
    %1133 = vmatpush1.msra.mxu0 0.0
    %1134 = vmatprep.subr.mxu0 0.0
    %1135 = vmatpush1.msra.mxu0 0.0
    %1136 = vmatprep.subr.mxu0 0.0
    %1137 = vmatpush1.msra.mxu0 0.0
    %1138 = vmatprep.subr.mxu0 0.0
    %1139 = vmatpush1.msra.mxu0 0.0
    %1140 = vmatprep.subr.mxu0 0.0
    %1141 = vmatpush1.msra.mxu0 0.0
    %1142 = vmatprep.subr.mxu0 0.0
    %1143 = vmatpush1.msra.mxu0 0.0
    %1144 = vmatprep.subr.mxu0 0.0
    %1145 = vmatpush1.msra.mxu0 0.0
    %1146 = vmatprep.subr.mxu0 0.0
    %1147 = vmatpush1.msra.mxu0 0.0
    %1148 = vmatprep.subr.mxu0 0.0
    %1149 = vmatpush1.msra.mxu0 0.0
    %1150 = vmatprep.subr.mxu0 0.0
    %1151 = vmatpush1.msra.mxu0 0.0
    %1152 = vmatprep.subr.mxu0 0.0
    %1153 = vmatpush1.msra.mxu0 0.0
    %1154 = vmatprep.subr.mxu0 0.0
    %1155 = vmatpush1.msra.mxu0 0.0
    %1156 = vmatprep.subr.mxu0 0.0
    %1157 = vmatpush1.msra.mxu0 0.0
    %1158 = vmatprep.subr.mxu0 0.0
    %1159 = vmatpush1.msra.mxu0 0.0
    %1160 = vmatprep.subr.mxu0 0.0
    %1161 = vmatpush1.msra.mxu0 0.0
    %1162 = vmatprep.subr.mxu0 0.0
    %1163 = vmatpush1.msra.mxu0 0.0
    %1164 = vmatprep.subr.mxu0 0.0
    %1165 = vmatpush1.msra.mxu0 0.0
    %1166 = vmatprep.subr.mxu0 0.0
    %1167 = vmatpush1.msra.mxu0 0.0
    %1168 = vmatprep.subr.mxu0 0.0
    %1169 = vmatpush1.msra.mxu0 0.0
    %1170 = vmatprep.subr.mxu0 0.0
    %1171 = vmatpush1.msra.mxu0 0.0
    %1172 = vmatprep.subr.mxu0 0.0
    %1173 = vmatpush1.msra.mxu0 0.0
    %1174 = vmatprep.subr.mxu0 0.0
    %1175 = vmatpush1.msra.mxu0 0.0
    %1176 = vmatprep.subr.mxu0 0.0
    %1177 = vmatpush1.msra.mxu0 0.0
    %1178 = vmatprep.subr.mxu0 0.0
    %1179 = vmatpush1.msra.mxu0 0.0
    %1180 = vmatprep.subr.mxu0 0.0
    %1181 = vmatpush1.msra.mxu0 0.0
    %1182 = vmatprep.subr.mxu0 0.0
    %1183 = vmatpush1.msra.mxu0 0.0
    %1184 = vmatprep.subr.mxu0 0.0
    %1185 = vmatpush1.msra.mxu0 0.0
    %1186 = vmatprep.subr.mxu0 0.0
    %1187 = vmatpush1.msra.mxu0 0.0
    %1188 = vmatprep.mubr.f32.mxu0 0.0
    %1189 = vmatmul.mubr.f32.gmra.mrb[0].mxu0 %v1117
    %v1190 = vpop.f32.mrb[0].mxu0
    %v1191 = vadd.f32 0.0, %v1190
    %v1192 = vpop.f32.mrb[0].mxu0
    %1193 = vmatprep.mubr.f32.mxu0 0.0
    %1194 = vmatmul.mubr.f32.gmra.mrb[0].mxu0 %v1120
    %v1195 = vpop.f32.mrb[0].mxu0
    %v1196 = vadd.f32 0.0, %v1195
    %v1197 = vpop.f32.mrb[0].mxu0
    %1198 = vdwg.mxu0
    %1199 = vrot.lane.b32.xlu0 %v395, 104
    %v1200 = vpop.permute.xlu0 %1199
    %1201 = vrot.lane.b32.xlu0 %v400, 104
    %v1202 = vpop.permute.xlu0 %1201
    %1203 = vrot.lane.b32.xlu0 %v493, 104
    %v1204 = vpop.permute.xlu0 %1203
    %1205 = vrot.lane.b32.xlu0 %v498, 104
    %v1206 = vpop.permute.xlu0 %1205
    %v1207 = vsel %vm599, %v1200, 0
    %v1209 = vsel %vm599, %v1202, 0
    %v1211 = vsel %vm599, %v1204, 0
    %v1213 = vsel %vm599, %v1206, 0
    %1215 = vmatprep.subr.mxu0 0.0
    %1216 = vmatpush1.xpose.msra.mxu0 %v1211
    %1217 = vmatprep.subr.mxu0 0.0
    %1218 = vmatpush1.xpose.msra.mxu0 %v1213
    %1219 = vmatprep.subr.mxu0 0.0
    %1220 = vmatpush1.xpose.msra.mxu0 0.0
    %1221 = vmatprep.subr.mxu0 0.0
    %1222 = vmatpush1.xpose.msra.mxu0 0.0
    %1223 = vmatprep.subr.mxu0 0.0
    %1224 = vmatpush1.xpose.msra.mxu0 0.0
    %1225 = vmatprep.subr.mxu0 0.0
    %1226 = vmatpush1.xpose.msra.mxu0 0.0
    %1227 = vmatprep.subr.mxu0 0.0
    %1228 = vmatpush1.xpose.msra.mxu0 0.0
    %1229 = vmatprep.subr.mxu0 0.0
    %1230 = vmatpush1.xpose.msra.mxu0 0.0
    %1231 = vmatprep.subr.mxu0 0.0
    %1232 = vmatpush1.xpose.msra.mxu0 0.0
    %1233 = vmatprep.subr.mxu0 0.0
    %1234 = vmatpush1.xpose.msra.mxu0 0.0
    %1235 = vmatprep.subr.mxu0 0.0
    %1236 = vmatpush1.xpose.msra.mxu0 0.0
    %1237 = vmatprep.subr.mxu0 0.0
    %1238 = vmatpush1.xpose.msra.mxu0 0.0
    %1239 = vmatprep.subr.mxu0 0.0
    %1240 = vmatpush1.xpose.msra.mxu0 0.0
    %1241 = vmatprep.subr.mxu0 0.0
    %1242 = vmatpush1.xpose.msra.mxu0 0.0
    %1243 = vmatprep.subr.mxu0 0.0
    %1244 = vmatpush1.xpose.msra.mxu0 0.0
    %1245 = vmatprep.subr.mxu0 0.0
    %1246 = vmatpush1.xpose.msra.mxu0 0.0
    %1247 = vmatprep.subr.mxu0 0.0
    %1248 = vmatpush1.xpose.msra.mxu0 0.0
    %1249 = vmatprep.subr.mxu0 0.0
    %1250 = vmatpush1.xpose.msra.mxu0 0.0
    %1251 = vmatprep.subr.mxu0 0.0
    %1252 = vmatpush1.xpose.msra.mxu0 0.0
    %1253 = vmatprep.subr.mxu0 0.0
    %1254 = vmatpush1.xpose.msra.mxu0 0.0
    %1255 = vmatprep.subr.mxu0 0.0
    %1256 = vmatpush1.xpose.msra.mxu0 0.0
    %1257 = vmatprep.subr.mxu0 0.0
    %1258 = vmatpush1.xpose.msra.mxu0 0.0
    %1259 = vmatprep.subr.mxu0 0.0
    %1260 = vmatpush1.xpose.msra.mxu0 0.0
    %1261 = vmatprep.subr.mxu0 0.0
    %1262 = vmatpush1.xpose.msra.mxu0 0.0
    %1263 = vmatprep.subr.mxu0 0.0
    %1264 = vmatpush1.xpose.msra.mxu0 0.0
    %1265 = vmatprep.subr.mxu0 0.0
    %1266 = vmatpush1.xpose.msra.mxu0 0.0
    %1267 = vmatprep.subr.mxu0 0.0
    %1268 = vmatpush1.xpose.msra.mxu0 0.0
    %1269 = vmatprep.subr.mxu0 0.0
    %1270 = vmatpush1.xpose.msra.mxu0 0.0
    %1271 = vmatprep.subr.mxu0 0.0
    %1272 = vmatpush1.xpose.msra.mxu0 0.0
    %1273 = vmatprep.subr.mxu0 0.0
    %1274 = vmatpush1.xpose.msra.mxu0 0.0
    %1275 = vmatprep.subr.mxu0 0.0
    %1276 = vmatpush1.xpose.msra.mxu0 0.0
    %1277 = vmatprep.subr.mxu0 0.0
    %1278 = vmatpush1.xpose.msra.mxu0 0.0
    %1279 = vmatprep.mubr.f32.mxu0 0.0
    %1280 = vmatmul.mubr.f32.gmra.mrb[0].mxu0 %v1207
    %v1281 = vpop.f32.mrb[0].mxu0
    %v1282 = vadd.f32 %v253, %v1281
    %v1283 = vpop.f32.mrb[0].mxu0
    %1284 = vmatprep.mubr.f32.mxu0 0.0
    %1285 = vmatmul.mubr.f32.gmra.mrb[0].mxu0 %v1209
    %v1286 = vpop.f32.mrb[0].mxu0
    %v1287 = vadd.f32 %v254, %v1286
    %v1288 = vpop.f32.mrb[0].mxu0
    %1289 = vdwg.mxu0
    %v1290 = vsel %vm687, %v1282, -inf
    %1291 = vmax.xlane.f32.xlu0 %v1290
    %v1292 = vpop.xlane.xlu0 %1291
    %v1293 = vsel %vm691, %v1287, -inf
    %1294 = vmax.xlane.f32.xlu0 %v1293
    %v1295 = vpop.xlane.xlu0 %1294
    %v1296 = vsub.f32 %v1282, %v1292
    %v1297 = vsub.f32 %v1287, %v1295
    %v1298 = vmul.f32 %v1296, 1.442695
    %v1299 = vpow.pop %v1298
    %v1300 = vmul.f32 %v1297, 1.442695
    %v1301 = vpow.pop %v1300
    %v1302 = vsel %vm687, %v1299, 0.0
    %1303 = vadd.xlane.f32.xlu0 %v1302
    %v1304 = vpop.xlane.xlu0 %1303
    %v1305 = vsel %vm691, %v1301, 0.0
    %1306 = vadd.xlane.f32.xlu0 %v1305
    %v1307 = vpop.xlane.xlu0 %1306
    %v1308 = vrcp.pop %v1304
    %v1309 = vrcp.pop %v1307
    %v1310 = vmul.f32 %v1299, %v1308
    %v1311 = vmul.f32 %v1301, %v1309
    %1312 = vrot.lane.b32.xlu0 %v591, 104
    %v1313 = vpop.permute.xlu0 %1312
    %1314 = vrot.lane.b32.xlu0 %v596, 104
    %v1315 = vpop.permute.xlu0 %1314
    %v1318 = vsel %vm687, %v1310, 0
    %v1321 = vsel %vm687, %v1311, 0
    %v1323 = vsel %vm717, %v1315, 0
    %1325 = vmatprep.subr.mxu0 0.0
    %1326 = vmatpush1.msra.mxu0 %v1313
    %1327 = vmatprep.subr.mxu0 0.0
    %1328 = vmatpush1.msra.mxu0 %v1323
    %1329 = vmatprep.subr.mxu0 0.0
    %1330 = vmatpush1.msra.mxu0 0.0
    %1331 = vmatprep.subr.mxu0 0.0
    %1332 = vmatpush1.msra.mxu0 0.0
    %1333 = vmatprep.subr.mxu0 0.0
    %1334 = vmatpush1.msra.mxu0 0.0
    %1335 = vmatprep.subr.mxu0 0.0
    %1336 = vmatpush1.msra.mxu0 0.0
    %1337 = vmatprep.subr.mxu0 0.0
    %1338 = vmatpush1.msra.mxu0 0.0
    %1339 = vmatprep.subr.mxu0 0.0
    %1340 = vmatpush1.msra.mxu0 0.0
    %1341 = vmatprep.subr.mxu0 0.0
    %1342 = vmatpush1.msra.mxu0 0.0
    %1343 = vmatprep.subr.mxu0 0.0
    %1344 = vmatpush1.msra.mxu0 0.0
    %1345 = vmatprep.subr.mxu0 0.0
    %1346 = vmatpush1.msra.mxu0 0.0
    %1347 = vmatprep.subr.mxu0 0.0
    %1348 = vmatpush1.msra.mxu0 0.0
    %1349 = vmatprep.subr.mxu0 0.0
    %1350 = vmatpush1.msra.mxu0 0.0
    %1351 = vmatprep.subr.mxu0 0.0
    %1352 = vmatpush1.msra.mxu0 0.0
    %1353 = vmatprep.subr.mxu0 0.0
    %1354 = vmatpush1.msra.mxu0 0.0
    %1355 = vmatprep.subr.mxu0 0.0
    %1356 = vmatpush1.msra.mxu0 0.0
    %1357 = vmatprep.subr.mxu0 0.0
    %1358 = vmatpush1.msra.mxu0 0.0
    %1359 = vmatprep.subr.mxu0 0.0
    %1360 = vmatpush1.msra.mxu0 0.0
    %1361 = vmatprep.subr.mxu0 0.0
    %1362 = vmatpush1.msra.mxu0 0.0
    %1363 = vmatprep.subr.mxu0 0.0
    %1364 = vmatpush1.msra.mxu0 0.0
    %1365 = vmatprep.subr.mxu0 0.0
    %1366 = vmatpush1.msra.mxu0 0.0
    %1367 = vmatprep.subr.mxu0 0.0
    %1368 = vmatpush1.msra.mxu0 0.0
    %1369 = vmatprep.subr.mxu0 0.0
    %1370 = vmatpush1.msra.mxu0 0.0
    %1371 = vmatprep.subr.mxu0 0.0
    %1372 = vmatpush1.msra.mxu0 0.0
    %1373 = vmatprep.subr.mxu0 0.0
    %1374 = vmatpush1.msra.mxu0 0.0
    %1375 = vmatprep.subr.mxu0 0.0
    %1376 = vmatpush1.msra.mxu0 0.0
    %1377 = vmatprep.subr.mxu0 0.0
    %1378 = vmatpush1.msra.mxu0 0.0
    %1379 = vmatprep.subr.mxu0 0.0
    %1380 = vmatpush1.msra.mxu0 0.0
    %1381 = vmatprep.subr.mxu0 0.0
    %1382 = vmatpush1.msra.mxu0 0.0
    %1383 = vmatprep.subr.mxu0 0.0
    %1384 = vmatpush1.msra.mxu0 0.0
    %1385 = vmatprep.subr.mxu0 0.0
    %1386 = vmatpush1.msra.mxu0 0.0
    %1387 = vmatprep.subr.mxu0 0.0
    %1388 = vmatpush1.msra.mxu0 0.0
    %1389 = vmatprep.mubr.f32.mxu0 0.0
    %1390 = vmatmul.mubr.f32.gmra.mrb[0].mxu0 %v1318
    %v1391 = vpop.f32.mrb[0].mxu0
    %v1392 = vadd.f32 0.0, %v1391
    %v1393 = vpop.f32.mrb[0].mxu0
    %1394 = vmatprep.mubr.f32.mxu0 0.0
    %1395 = vmatmul.mubr.f32.gmra.mrb[0].mxu0 %v1321
    %v1396 = vpop.f32.mrb[0].mxu0
    %v1397 = vadd.f32 0.0, %v1396
    %v1398 = vpop.f32.mrb[0].mxu0
    %1399 = vdwg.mxu0
    %1402 = vrot.lane.b32.xlu0 %v990, 8
    %v1403 = vpop.permute.xlu0 %1402
    %1404 = vrot.lane.b32.xlu0 %v995, 8
    %v1405 = vpop.permute.xlu0 %1404
    %1410 = vrot.lane.b32.xlu0 %v1191, 16
    %v1411 = vpop.permute.xlu0 %1410
    %1412 = vrot.lane.b32.xlu0 %v1196, 16
    %v1413 = vpop.permute.xlu0 %1412
    %1418 = vrot.lane.b32.xlu0 %v1392, 24
    %v1419 = vpop.permute.xlu0 %1418
    %1420 = vrot.lane.b32.xlu0 %v1397, 24
    %v1421 = vpop.permute.xlu0 %1420
    %v1424 = vsel %vm599, %v788, %v1403
    %v1425 = vsel %vm599, %v793, %v1405
    %vm1426 = vcmask 130048
    %v1427 = vsel %vm1426, %v1424, %v1411
    %v1428 = vsel %vm1426, %v1425, %v1413
    %vm1429 = vcmask 195584
    %v1430 = vsel %vm1429, %v1427, %v1419
    %v1431 = vsel %vm1429, %v1428, %v1421
    %v1432 = vld [vmem:[%s15] sm:$0xff]
    %v1433 = vld [vmem:[%s15 + $0x8] sm:$0xff]
    %v1434 = vld [vmem:[%s15 + $0x10] sm:$0xff]
    %v1435 = vld [vmem:[%s15 + $0x18] sm:$0xff]
    %v1436 = vld [vmem:[%s16] sm:$0x1]
    %v1438 = vlaneseq
    %v1439 = vshrl.u32 %v1438, 7
    %v1440 = vsub.s32 0, %v1439
    %v1441 = vrot.slane %v1436, %v1440
    %v1444 = vsel %vm208, %v1430, 0
    %v1447 = vsel %vm208, %v1431, 0
    %v1450 = vsel %vm208, %v1432, 0
    %v1453 = vsel %vm208, %v1433, 0
    %v1456 = vsel %vm208, %v1434, 0
    %v1459 = vsel %vm208, %v1435, 0
    %1461 = vmatprep.subr.mxu0 0.0
    %1462 = vmatpush1.xpose.msra.mxu0 %v1450
    %1463 = vmatprep.subr.mxu0 0.0
    %1464 = vmatpush1.xpose.msra.mxu0 %v1453
    %1465 = vmatprep.subr.mxu0 0.0
    %1466 = vmatpush1.xpose.msra.mxu0 %v1456
    %1467 = vmatprep.subr.mxu0 0.0
    %1468 = vmatpush1.xpose.msra.mxu0 %v1459
    %1469 = vmatprep.subr.mxu0 0.0
    %1470 = vmatpush1.xpose.msra.mxu0 0.0
    %1471 = vmatprep.subr.mxu0 0.0
    %1472 = vmatpush1.xpose.msra.mxu0 0.0
    %1473 = vmatprep.subr.mxu0 0.0
    %1474 = vmatpush1.xpose.msra.mxu0 0.0
    %1475 = vmatprep.subr.mxu0 0.0
    %1476 = vmatpush1.xpose.msra.mxu0 0.0
    %1477 = vmatprep.subr.mxu0 0.0
    %1478 = vmatpush1.xpose.msra.mxu0 0.0
    %1479 = vmatprep.subr.mxu0 0.0
    %1480 = vmatpush1.xpose.msra.mxu0 0.0
    %1481 = vmatprep.subr.mxu0 0.0
    %1482 = vmatpush1.xpose.msra.mxu0 0.0
    %1483 = vmatprep.subr.mxu0 0.0
    %1484 = vmatpush1.xpose.msra.mxu0 0.0
    %1485 = vmatprep.subr.mxu0 0.0
    %1486 = vmatpush1.xpose.msra.mxu0 0.0
    %1487 = vmatprep.subr.mxu0 0.0
    %1488 = vmatpush1.xpose.msra.mxu0 0.0
    %1489 = vmatprep.subr.mxu0 0.0
    %1490 = vmatpush1.xpose.msra.mxu0 0.0
    %1491 = vmatprep.subr.mxu0 0.0
    %1492 = vmatpush1.xpose.msra.mxu0 0.0
    %1493 = vmatprep.subr.mxu0 0.0
    %1494 = vmatpush1.xpose.msra.mxu0 0.0
    %1495 = vmatprep.subr.mxu0 0.0
    %1496 = vmatpush1.xpose.msra.mxu0 0.0
    %1497 = vmatprep.subr.mxu0 0.0
    %1498 = vmatpush1.xpose.msra.mxu0 0.0
    %1499 = vmatprep.subr.mxu0 0.0
    %1500 = vmatpush1.xpose.msra.mxu0 0.0
    %1501 = vmatprep.subr.mxu0 0.0
    %1502 = vmatpush1.xpose.msra.mxu0 0.0
    %1503 = vmatprep.subr.mxu0 0.0
    %1504 = vmatpush1.xpose.msra.mxu0 0.0
    %1505 = vmatprep.subr.mxu0 0.0
    %1506 = vmatpush1.xpose.msra.mxu0 0.0
    %1507 = vmatprep.subr.mxu0 0.0
    %1508 = vmatpush1.xpose.msra.mxu0 0.0
    %1509 = vmatprep.subr.mxu0 0.0
    %1510 = vmatpush1.xpose.msra.mxu0 0.0
    %1511 = vmatprep.subr.mxu0 0.0
    %1512 = vmatpush1.xpose.msra.mxu0 0.0
    %1513 = vmatprep.subr.mxu0 0.0
    %1514 = vmatpush1.xpose.msra.mxu0 0.0
    %1515 = vmatprep.subr.mxu0 0.0
    %1516 = vmatpush1.xpose.msra.mxu0 0.0
    %1517 = vmatprep.subr.mxu0 0.0
    %1518 = vmatpush1.xpose.msra.mxu0 0.0
    %1519 = vmatprep.subr.mxu0 0.0
    %1520 = vmatpush1.xpose.msra.mxu0 0.0
    %1521 = vmatprep.subr.mxu0 0.0
    %1522 = vmatpush1.xpose.msra.mxu0 0.0
    %1523 = vmatprep.subr.mxu0 0.0
    %1524 = vmatpush1.xpose.msra.mxu0 0.0
    %1525 = vmatprep.mubr.f32.mxu0 0.0
    %1526 = vmatmul.mubr.f32.gmra.mrb[0].mxu0 %v1444
    %v1527 = vpop.f32.mrb[0].mxu0
    %v1528 = vadd.f32 %v1441, %v1527
    %v1529 = vpop.f32.mrb[0].mxu0
    %1530 = vmatprep.mubr.f32.mxu0 0.0
    %1531 = vmatmul.mubr.f32.gmra.mrb[0].mxu0 %v1447
    %v1532 = vpop.f32.mrb[0].mxu0
    %v1533 = vadd.f32 %v1441, %v1532
    %v1534 = vpop.f32.mrb[0].mxu0
    %1535 = vdwg.mxu0
    %v1536 = vadd.f32 %v251, %v1528
    %v1537 = vadd.f32 %v252, %v1533
    %v1538 = vld [vmem:[%s17] sm:$0x1]
    %v1539 = vld [vmem:[%s18] sm:$0x1]
    %v1540 = vsel %vm208, %v1536, 0.0
    %1541 = vadd.xlane.f32.xlu0 %v1540
    %v1542 = vpop.xlane.xlu0 %1541
    %v1543 = vsel %vm212, %v1537, 0.0
    %1544 = vadd.xlane.f32.xlu0 %v1543
    %v1545 = vpop.xlane.xlu0 %1544
    %v1546 = vmul.f32 %v1542, %v216
    %v1547 = vmul.f32 %v1545, %v216
    %v1548 = vsub.f32 %v1536, %v1546
    %v1549 = vsub.f32 %v1537, %v1547
    %v1550 = vmul.f32 %v1548, %v1548
    %v1551 = vmul.f32 %v1549, %v1549
    %v1552 = vsel %vm208, %v1550, 0.0
    %1553 = vadd.xlane.f32.xlu0 %v1552
    %v1554 = vpop.xlane.xlu0 %1553
    %v1555 = vsel %vm212, %v1551, 0.0
    %1556 = vadd.xlane.f32.xlu0 %v1555
    %v1557 = vpop.xlane.xlu0 %1556
    %v1558 = vmul.f32 %v1554, %v216
    %v1559 = vmul.f32 %v1557, %v216
    %v1560 = vadd.f32 %v1558, 1e-05
    %v1561 = vadd.f32 %v1559, 1e-05
    %v1562 = vrsqrt.pop %v1560
    %v1563 = vrsqrt.pop %v1561
    %v1564 = vmul.f32 %v1548, %v1562
    %v1565 = vmul.f32 %v1549, %v1563
    %v1567 = vlaneseq
    %v1568 = vshrl.u32 %v1567, 7
    %v1569 = vsub.s32 0, %v1568
    %v1570 = vrot.slane %v1538, %v1569
    %v1572 = vmul.f32 %v1564, %v1570
    %v1573 = vmul.f32 %v1565, %v1570
    %v1575 = vlaneseq
    %v1576 = vshrl.u32 %v1575, 7
    %v1577 = vsub.s32 0, %v1576
    %v1578 = vrot.slane %v1539, %v1577
    %v1580 = vadd.f32 %v1572, %v1578
    %v1581 = vadd.f32 %v1573, %v1578
    %v1582 = vld [vmem:[%s19] sm:$0xff]
    %v1583 = vld [vmem:[%s19 + $0x8] sm:$0xff]
    %v1584 = vld [vmem:[%s19 + $0x10] sm:$0xff]
    %v1585 = vld [vmem:[%s19 + $0x18] sm:$0xff]
    %v1586 = vld [vmem:[%s19 + $0x20] sm:$0xff]
    %v1587 = vld [vmem:[%s19 + $0x28] sm:$0xff]
    %v1588 = vld [vmem:[%s19 + $0x30] sm:$0xff]
    %v1589 = vld [vmem:[%s19 + $0x38] sm:$0xff]
    %v1590 = vld [vmem:[%s19 + $0x40] sm:$0xff]
    %v1591 = vld [vmem:[%s19 + $0x48] sm:$0xff]
    %v1592 = vld [vmem:[%s19 + $0x50] sm:$0xff]
    %v1593 = vld [vmem:[%s19 + $0x58] sm:$0xff]
    %v1594 = vld [vmem:[%s19 + $0x60] sm:$0xff]
    %v1595 = vld [vmem:[%s19 + $0x68] sm:$0xff]
    %v1596 = vld [vmem:[%s19 + $0x70] sm:$0xff]
    %v1597 = vld [vmem:[%s19 + $0x78] sm:$0xff]
    %v1598 = vld [vmem:[%s20] sm:$0x1]
    %v1600 = vlaneseq
    %v1601 = vshrl.u32 %v1600, 7
    %v1602 = vsub.s32 0, %v1601
    %v1603 = vrot.slane %v1598, %v1602
    %v1606 = vsel %vm208, %v1580, 0
    %v1609 = vsel %vm208, %v1581, 0
    %v1612 = vsel %vm208, %v1582, 0
    %v1615 = vsel %vm208, %v1583, 0
    %v1618 = vsel %vm208, %v1584, 0
    %v1621 = vsel %vm208, %v1585, 0
    %v1624 = vsel %vm208, %v1586, 0
    %v1627 = vsel %vm208, %v1587, 0
    %v1630 = vsel %vm208, %v1588, 0
    %v1633 = vsel %vm208, %v1589, 0
    %v1636 = vsel %vm208, %v1590, 0
    %v1639 = vsel %vm208, %v1591, 0
    %v1642 = vsel %vm208, %v1592, 0
    %v1645 = vsel %vm208, %v1593, 0
    %v1648 = vsel %vm208, %v1594, 0
    %v1651 = vsel %vm208, %v1595, 0
    %v1654 = vsel %vm208, %v1596, 0
    %v1657 = vsel %vm208, %v1597, 0
    %1659 = vmatprep.subr.mxu0 0.0
    %1660 = vmatpush1.xpose.msra.mxu0 %v1612
    %1661 = vmatprep.subr.mxu0 0.0
    %1662 = vmatpush1.xpose.msra.mxu0 %v1615
    %1663 = vmatprep.subr.mxu0 0.0
    %1664 = vmatpush1.xpose.msra.mxu0 %v1618
    %1665 = vmatprep.subr.mxu0 0.0
    %1666 = vmatpush1.xpose.msra.mxu0 %v1621
    %1667 = vmatprep.subr.mxu0 0.0
    %1668 = vmatpush1.xpose.msra.mxu0 %v1624
    %1669 = vmatprep.subr.mxu0 0.0
    %1670 = vmatpush1.xpose.msra.mxu0 %v1627
    %1671 = vmatprep.subr.mxu0 0.0
    %1672 = vmatpush1.xpose.msra.mxu0 %v1630
    %1673 = vmatprep.subr.mxu0 0.0
    %1674 = vmatpush1.xpose.msra.mxu0 %v1633
    %1675 = vmatprep.subr.mxu0 0.0
    %1676 = vmatpush1.xpose.msra.mxu0 %v1636
    %1677 = vmatprep.subr.mxu0 0.0
    %1678 = vmatpush1.xpose.msra.mxu0 %v1639
    %1679 = vmatprep.subr.mxu0 0.0
    %1680 = vmatpush1.xpose.msra.mxu0 %v1642
    %1681 = vmatprep.subr.mxu0 0.0
    %1682 = vmatpush1.xpose.msra.mxu0 %v1645
    %1683 = vmatprep.subr.mxu0 0.0
    %1684 = vmatpush1.xpose.msra.mxu0 %v1648
    %1685 = vmatprep.subr.mxu0 0.0
    %1686 = vmatpush1.xpose.msra.mxu0 %v1651
    %1687 = vmatprep.subr.mxu0 0.0
    %1688 = vmatpush1.xpose.msra.mxu0 %v1654
    %1689 = vmatprep.subr.mxu0 0.0
    %1690 = vmatpush1.xpose.msra.mxu0 %v1657
    %1691 = vmatprep.subr.mxu0 0.0
    %1692 = vmatpush1.xpose.msra.mxu0 0.0
    %1693 = vmatprep.subr.mxu0 0.0
    %1694 = vmatpush1.xpose.msra.mxu0 0.0
    %1695 = vmatprep.subr.mxu0 0.0
    %1696 = vmatpush1.xpose.msra.mxu0 0.0
    %1697 = vmatprep.subr.mxu0 0.0
    %1698 = vmatpush1.xpose.msra.mxu0 0.0
    %1699 = vmatprep.subr.mxu0 0.0
    %1700 = vmatpush1.xpose.msra.mxu0 0.0
    %1701 = vmatprep.subr.mxu0 0.0
    %1702 = vmatpush1.xpose.msra.mxu0 0.0
    %1703 = vmatprep.subr.mxu0 0.0
    %1704 = vmatpush1.xpose.msra.mxu0 0.0
    %1705 = vmatprep.subr.mxu0 0.0
    %1706 = vmatpush1.xpose.msra.mxu0 0.0
    %1707 = vmatprep.subr.mxu0 0.0
    %1708 = vmatpush1.xpose.msra.mxu0 0.0
    %1709 = vmatprep.subr.mxu0 0.0
    %1710 = vmatpush1.xpose.msra.mxu0 0.0
    %1711 = vmatprep.subr.mxu0 0.0
    %1712 = vmatpush1.xpose.msra.mxu0 0.0
    %1713 = vmatprep.subr.mxu0 0.0
    %1714 = vmatpush1.xpose.msra.mxu0 0.0
    %1715 = vmatprep.subr.mxu0 0.0
    %1716 = vmatpush1.xpose.msra.mxu0 0.0
    %1717 = vmatprep.subr.mxu0 0.0
    %1718 = vmatpush1.xpose.msra.mxu0 0.0
    %1719 = vmatprep.subr.mxu0 0.0
    %1720 = vmatpush1.xpose.msra.mxu0 0.0
    %1721 = vmatprep.subr.mxu0 0.0
    %1722 = vmatpush1.xpose.msra.mxu0 0.0
    %1723 = vmatprep.mubr.f32.mxu0 0.0
    %1724 = vmatmul.mubr.f32.gmra.mrb[0].mxu0 %v1606
    %v1725 = vpop.f32.mrb[0].mxu0
    %v1726 = vadd.f32 %v1603, %v1725
    %v1727 = vpop.f32.mrb[0].mxu0
    %1728 = vmatprep.mubr.f32.mxu0 0.0
    %1729 = vmatmul.mubr.f32.gmra.mrb[0].mxu0 %v1609
    %v1730 = vpop.f32.mrb[0].mxu0
    %v1731 = vadd.f32 %v1603, %v1730
    %v1732 = vpop.f32.mrb[0].mxu0
    %1733 = vdwg.mxu0
    %v1734 = vmul.f32 %v1726, 1.702
    %v1735 = vmul.f32 %v1731, 1.702
    %v1736 = vxor.u32 %v1734, 2147483648
    %v1737 = vxor.u32 %v1735, 2147483648
    %v1738 = vmul.f32 %v1736, 1.442695
    %v1739 = vpow.pop %v1738
    %v1740 = vmul.f32 %v1737, 1.442695
    %v1741 = vpow.pop %v1740
    %v1742 = vadd.f32 %v1739, 1.0
    %v1743 = vadd.f32 %v1741, 1.0
    %v1744 = vrcp.pop %v1742
    %v1745 = vmul.f32 1.0, %v1744
    %v1746 = vrcp.pop %v1743
    %v1747 = vmul.f32 1.0, %v1746
    %v1748 = vmul.f32 %v1726, %v1745
    %v1749 = vmul.f32 %v1731, %v1747
    %v1750 = vld [vmem:[%s21] sm:$0xff]
    %v1751 = vld [vmem:[%s21 + $0x8] sm:$0xff]
    %v1752 = vld [vmem:[%s21 + $0x10] sm:$0xff]
    %v1753 = vld [vmem:[%s21 + $0x18] sm:$0xff]
    %v1754 = vld [vmem:[%s22] sm:$0x1]
    %v1756 = vlaneseq
    %v1757 = vshrl.u32 %v1756, 7
    %v1758 = vsub.s32 0, %v1757
    %v1759 = vrot.slane %v1754, %v1758
    %1761 = vmatprep.subr.mxu0 0.0
    %1762 = vmatpush1.xpose.msra.mxu0 %v1750
    %1763 = vmatprep.subr.mxu0 0.0
    %1764 = vmatpush1.xpose.msra.mxu0 %v1751
    %1765 = vmatprep.subr.mxu0 0.0
    %1766 = vmatpush1.xpose.msra.mxu0 %v1752
    %1767 = vmatprep.subr.mxu0 0.0
    %1768 = vmatpush1.xpose.msra.mxu0 %v1753
    %1769 = vmatprep.subr.mxu0 0.0
    %1770 = vmatpush1.xpose.msra.mxu0 0.0
    %1771 = vmatprep.subr.mxu0 0.0
    %1772 = vmatpush1.xpose.msra.mxu0 0.0
    %1773 = vmatprep.subr.mxu0 0.0
    %1774 = vmatpush1.xpose.msra.mxu0 0.0
    %1775 = vmatprep.subr.mxu0 0.0
    %1776 = vmatpush1.xpose.msra.mxu0 0.0
    %1777 = vmatprep.subr.mxu0 0.0
    %1778 = vmatpush1.xpose.msra.mxu0 0.0
    %1779 = vmatprep.subr.mxu0 0.0
    %1780 = vmatpush1.xpose.msra.mxu0 0.0
    %1781 = vmatprep.subr.mxu0 0.0
    %1782 = vmatpush1.xpose.msra.mxu0 0.0
    %1783 = vmatprep.subr.mxu0 0.0
    %1784 = vmatpush1.xpose.msra.mxu0 0.0
    %1785 = vmatprep.subr.mxu0 0.0
    %1786 = vmatpush1.xpose.msra.mxu0 0.0
    %1787 = vmatprep.subr.mxu0 0.0
    %1788 = vmatpush1.xpose.msra.mxu0 0.0
    %1789 = vmatprep.subr.mxu0 0.0
    %1790 = vmatpush1.xpose.msra.mxu0 0.0
    %1791 = vmatprep.subr.mxu0 0.0
    %1792 = vmatpush1.xpose.msra.mxu0 0.0
    %1793 = vmatprep.subr.mxu0 0.0
    %1794 = vmatpush1.xpose.msra.mxu0 0.0
    %1795 = vmatprep.subr.mxu0 0.0
    %1796 = vmatpush1.xpose.msra.mxu0 0.0
    %1797 = vmatprep.subr.mxu0 0.0
    %1798 = vmatpush1.xpose.msra.mxu0 0.0
    %1799 = vmatprep.subr.mxu0 0.0
    %1800 = vmatpush1.xpose.msra.mxu0 0.0
    %1801 = vmatprep.subr.mxu0 0.0
    %1802 = vmatpush1.xpose.msra.mxu0 0.0
    %1803 = vmatprep.subr.mxu0 0.0
    %1804 = vmatpush1.xpose.msra.mxu0 0.0
    %1805 = vmatprep.subr.mxu0 0.0
    %1806 = vmatpush1.xpose.msra.mxu0 0.0
    %1807 = vmatprep.subr.mxu0 0.0
    %1808 = vmatpush1.xpose.msra.mxu0 0.0
    %1809 = vmatprep.subr.mxu0 0.0
    %1810 = vmatpush1.xpose.msra.mxu0 0.0
    %1811 = vmatprep.subr.mxu0 0.0
    %1812 = vmatpush1.xpose.msra.mxu0 0.0
    %1813 = vmatprep.subr.mxu0 0.0
    %1814 = vmatpush1.xpose.msra.mxu0 0.0
    %1815 = vmatprep.subr.mxu0 0.0
    %1816 = vmatpush1.xpose.msra.mxu0 0.0
    %1817 = vmatprep.subr.mxu0 0.0
    %1818 = vmatpush1.xpose.msra.mxu0 0.0
    %1819 = vmatprep.subr.mxu0 0.0
    %1820 = vmatpush1.xpose.msra.mxu0 0.0
    %1821 = vmatprep.subr.mxu0 0.0
    %1822 = vmatpush1.xpose.msra.mxu0 0.0
    %1823 = vmatprep.subr.mxu0 0.0
    %1824 = vmatpush1.xpose.msra.mxu0 0.0
    %1825 = vmatprep.mubr.f32.mxu0 0.0
    %1826 = vmatmul.mubr.f32.gmra.mrb[0].mxu0 %v1748
    %v1827 = vpop.f32.mrb[0].mxu0
    %v1828 = vadd.f32 %v1759, %v1827
    %v1829 = vpop.f32.mrb[0].mxu0
    %1830 = vmatprep.mubr.f32.mxu0 0.0
    %1831 = vmatmul.mubr.f32.gmra.mrb[0].mxu0 %v1749
    %v1832 = vpop.f32.mrb[0].mxu0
    %v1833 = vadd.f32 %v1759, %v1832
    %v1834 = vpop.f32.mrb[0].mxu0
    %1835 = vdwg.mxu0
    %v1836 = vadd.f32 %v1536, %v1828
    %v1837 = vadd.f32 %v1537, %v1833
    %s1838 = scalar_lea.vmem %s7, 1
    %v1839 = vld [vmem:[%s1838] sm:$0x1]
    %s1840 = scalar_lea.vmem %s8, 1
    %v1841 = vld [vmem:[%s1840] sm:$0x1]
    %v1842 = vsel %vm208, %v1836, 0.0
    %1843 = vadd.xlane.f32.xlu0 %v1842
    %v1844 = vpop.xlane.xlu0 %1843
    %v1845 = vsel %vm212, %v1837, 0.0
    %1846 = vadd.xlane.f32.xlu0 %v1845
    %v1847 = vpop.xlane.xlu0 %1846
    %v1848 = vmul.f32 %v1844, %v216
    %v1849 = vmul.f32 %v1847, %v216
    %v1850 = vsub.f32 %v1836, %v1848
    %v1851 = vsub.f32 %v1837, %v1849
    %v1852 = vmul.f32 %v1850, %v1850
    %v1853 = vmul.f32 %v1851, %v1851
    %v1854 = vsel %vm208, %v1852, 0.0
    %1855 = vadd.xlane.f32.xlu0 %v1854
    %v1856 = vpop.xlane.xlu0 %1855
    %v1857 = vsel %vm212, %v1853, 0.0
    %1858 = vadd.xlane.f32.xlu0 %v1857
    %v1859 = vpop.xlane.xlu0 %1858
    %v1860 = vmul.f32 %v1856, %v216
    %v1861 = vmul.f32 %v1859, %v216
    %v1862 = vadd.f32 %v1860, 1e-05
    %v1863 = vadd.f32 %v1861, 1e-05
    %v1864 = vrsqrt.pop %v1862
    %v1865 = vrsqrt.pop %v1863
    %v1866 = vmul.f32 %v1850, %v1864
    %v1867 = vmul.f32 %v1851, %v1865
    %v1869 = vlaneseq
    %v1870 = vshrl.u32 %v1869, 7
    %v1871 = vsub.s32 0, %v1870
    %v1872 = vrot.slane %v1839, %v1871
    %v1874 = vmul.f32 %v1866, %v1872
    %v1875 = vmul.f32 %v1867, %v1872
    %v1877 = vlaneseq
    %v1878 = vshrl.u32 %v1877, 7
    %v1879 = vsub.s32 0, %v1878
    %v1880 = vrot.slane %v1841, %v1879
    %v1882 = vadd.f32 %v1874, %v1880
    %v1883 = vadd.f32 %v1875, %v1880
    %s1884 = scalar_lea.vmem %s9, 32
    %v1885 = vld [vmem:[%s1884] sm:$0xff]
    %v1886 = vld [vmem:[%s1884 + $0x8] sm:$0xff]
    %v1887 = vld [vmem:[%s1884 + $0x10] sm:$0xff]
    %v1888 = vld [vmem:[%s1884 + $0x18] sm:$0xff]
    %s1889 = scalar_lea.vmem %s10, 1
    %v1890 = vld [vmem:[%s1889] sm:$0x1]
    %v1892 = vlaneseq
    %v1893 = vshrl.u32 %v1892, 7
    %v1894 = vsub.s32 0, %v1893
    %v1895 = vrot.slane %v1890, %v1894
    %v1898 = vsel %vm208, %v1882, 0
    %v1901 = vsel %vm208, %v1883, 0
    %v1904 = vsel %vm208, %v1885, 0
    %v1907 = vsel %vm208, %v1886, 0
    %v1910 = vsel %vm208, %v1887, 0
    %v1913 = vsel %vm208, %v1888, 0
    %1915 = vmatprep.subr.mxu0 0.0
    %1916 = vmatpush1.xpose.msra.mxu0 %v1904
    %1917 = vmatprep.subr.mxu0 0.0
    %1918 = vmatpush1.xpose.msra.mxu0 %v1907
    %1919 = vmatprep.subr.mxu0 0.0
    %1920 = vmatpush1.xpose.msra.mxu0 %v1910
    %1921 = vmatprep.subr.mxu0 0.0
    %1922 = vmatpush1.xpose.msra.mxu0 %v1913
    %1923 = vmatprep.subr.mxu0 0.0
    %1924 = vmatpush1.xpose.msra.mxu0 0.0
    %1925 = vmatprep.subr.mxu0 0.0
    %1926 = vmatpush1.xpose.msra.mxu0 0.0
    %1927 = vmatprep.subr.mxu0 0.0
    %1928 = vmatpush1.xpose.msra.mxu0 0.0
    %1929 = vmatprep.subr.mxu0 0.0
    %1930 = vmatpush1.xpose.msra.mxu0 0.0
    %1931 = vmatprep.subr.mxu0 0.0
    %1932 = vmatpush1.xpose.msra.mxu0 0.0
    %1933 = vmatprep.subr.mxu0 0.0
    %1934 = vmatpush1.xpose.msra.mxu0 0.0
    %1935 = vmatprep.subr.mxu0 0.0
    %1936 = vmatpush1.xpose.msra.mxu0 0.0
    %1937 = vmatprep.subr.mxu0 0.0
    %1938 = vmatpush1.xpose.msra.mxu0 0.0
    %1939 = vmatprep.subr.mxu0 0.0
    %1940 = vmatpush1.xpose.msra.mxu0 0.0
    %1941 = vmatprep.subr.mxu0 0.0
    %1942 = vmatpush1.xpose.msra.mxu0 0.0
    %1943 = vmatprep.subr.mxu0 0.0
    %1944 = vmatpush1.xpose.msra.mxu0 0.0
    %1945 = vmatprep.subr.mxu0 0.0
    %1946 = vmatpush1.xpose.msra.mxu0 0.0
    %1947 = vmatprep.subr.mxu0 0.0
    %1948 = vmatpush1.xpose.msra.mxu0 0.0
    %1949 = vmatprep.subr.mxu0 0.0
    %1950 = vmatpush1.xpose.msra.mxu0 0.0
    %1951 = vmatprep.subr.mxu0 0.0
    %1952 = vmatpush1.xpose.msra.mxu0 0.0
    %1953 = vmatprep.subr.mxu0 0.0
    %1954 = vmatpush1.xpose.msra.mxu0 0.0
    %1955 = vmatprep.subr.mxu0 0.0
    %1956 = vmatpush1.xpose.msra.mxu0 0.0
    %1957 = vmatprep.subr.mxu0 0.0
    %1958 = vmatpush1.xpose.msra.mxu0 0.0
    %1959 = vmatprep.subr.mxu0 0.0
    %1960 = vmatpush1.xpose.msra.mxu0 0.0
    %1961 = vmatprep.subr.mxu0 0.0
    %1962 = vmatpush1.xpose.msra.mxu0 0.0
    %1963 = vmatprep.subr.mxu0 0.0
    %1964 = vmatpush1.xpose.msra.mxu0 0.0
    %1965 = vmatprep.subr.mxu0 0.0
    %1966 = vmatpush1.xpose.msra.mxu0 0.0
    %1967 = vmatprep.subr.mxu0 0.0
    %1968 = vmatpush1.xpose.msra.mxu0 0.0
    %1969 = vmatprep.subr.mxu0 0.0
    %1970 = vmatpush1.xpose.msra.mxu0 0.0
    %1971 = vmatprep.subr.mxu0 0.0
    %1972 = vmatpush1.xpose.msra.mxu0 0.0
    %1973 = vmatprep.subr.mxu0 0.0
    %1974 = vmatpush1.xpose.msra.mxu0 0.0
    %1975 = vmatprep.subr.mxu0 0.0
    %1976 = vmatpush1.xpose.msra.mxu0 0.0
    %1977 = vmatprep.subr.mxu0 0.0
    %1978 = vmatpush1.xpose.msra.mxu0 0.0
    %1979 = vmatprep.mubr.f32.mxu0 0.0
    %1980 = vmatmul.mubr.f32.gmra.mrb[0].mxu0 %v1898
    %v1981 = vpop.f32.mrb[0].mxu0
    %v1982 = vadd.f32 %v1895, %v1981
    %v1983 = vpop.f32.mrb[0].mxu0
    %1984 = vmatprep.mubr.f32.mxu0 0.0
    %1985 = vmatmul.mubr.f32.gmra.mrb[0].mxu0 %v1901
    %v1986 = vpop.f32.mrb[0].mxu0
    %v1987 = vadd.f32 %v1895, %v1986
    %v1988 = vpop.f32.mrb[0].mxu0
    %1989 = vdwg.mxu0
    %s1990 = scalar_lea.vmem %s11, 32
    %v1991 = vld [vmem:[%s1990] sm:$0xff]
    %v1992 = vld [vmem:[%s1990 + $0x8] sm:$0xff]
    %v1993 = vld [vmem:[%s1990 + $0x10] sm:$0xff]
    %v1994 = vld [vmem:[%s1990 + $0x18] sm:$0xff]
    %s1995 = scalar_lea.vmem %s12, 1
    %v1996 = vld [vmem:[%s1995] sm:$0x1]
    %v1998 = vlaneseq
    %v1999 = vshrl.u32 %v1998, 7
    %v2000 = vsub.s32 0, %v1999
    %v2001 = vrot.slane %v1996, %v2000
    %v2004 = vsel %vm208, %v1991, 0
    %v2007 = vsel %vm208, %v1992, 0
    %v2010 = vsel %vm208, %v1993, 0
    %v2013 = vsel %vm208, %v1994, 0
    %2015 = vmatprep.subr.mxu0 0.0
    %2016 = vmatpush1.xpose.msra.mxu0 %v2004
    %2017 = vmatprep.subr.mxu0 0.0
    %2018 = vmatpush1.xpose.msra.mxu0 %v2007
    %2019 = vmatprep.subr.mxu0 0.0
    %2020 = vmatpush1.xpose.msra.mxu0 %v2010
    %2021 = vmatprep.subr.mxu0 0.0
    %2022 = vmatpush1.xpose.msra.mxu0 %v2013
    %2023 = vmatprep.subr.mxu0 0.0
    %2024 = vmatpush1.xpose.msra.mxu0 0.0
    %2025 = vmatprep.subr.mxu0 0.0
    %2026 = vmatpush1.xpose.msra.mxu0 0.0
    %2027 = vmatprep.subr.mxu0 0.0
    %2028 = vmatpush1.xpose.msra.mxu0 0.0
    %2029 = vmatprep.subr.mxu0 0.0
    %2030 = vmatpush1.xpose.msra.mxu0 0.0
    %2031 = vmatprep.subr.mxu0 0.0
    %2032 = vmatpush1.xpose.msra.mxu0 0.0
    %2033 = vmatprep.subr.mxu0 0.0
    %2034 = vmatpush1.xpose.msra.mxu0 0.0
    %2035 = vmatprep.subr.mxu0 0.0
    %2036 = vmatpush1.xpose.msra.mxu0 0.0
    %2037 = vmatprep.subr.mxu0 0.0
    %2038 = vmatpush1.xpose.msra.mxu0 0.0
    %2039 = vmatprep.subr.mxu0 0.0
    %2040 = vmatpush1.xpose.msra.mxu0 0.0
    %2041 = vmatprep.subr.mxu0 0.0
    %2042 = vmatpush1.xpose.msra.mxu0 0.0
    %2043 = vmatprep.subr.mxu0 0.0
    %2044 = vmatpush1.xpose.msra.mxu0 0.0
    %2045 = vmatprep.subr.mxu0 0.0
    %2046 = vmatpush1.xpose.msra.mxu0 0.0
    %2047 = vmatprep.subr.mxu0 0.0
    %2048 = vmatpush1.xpose.msra.mxu0 0.0
    %2049 = vmatprep.subr.mxu0 0.0
    %2050 = vmatpush1.xpose.msra.mxu0 0.0
    %2051 = vmatprep.subr.mxu0 0.0
    %2052 = vmatpush1.xpose.msra.mxu0 0.0
    %2053 = vmatprep.subr.mxu0 0.0
    %2054 = vmatpush1.xpose.msra.mxu0 0.0
    %2055 = vmatprep.subr.mxu0 0.0
    %2056 = vmatpush1.xpose.msra.mxu0 0.0
    %2057 = vmatprep.subr.mxu0 0.0
    %2058 = vmatpush1.xpose.msra.mxu0 0.0
    %2059 = vmatprep.subr.mxu0 0.0
    %2060 = vmatpush1.xpose.msra.mxu0 0.0
    %2061 = vmatprep.subr.mxu0 0.0
    %2062 = vmatpush1.xpose.msra.mxu0 0.0
    %2063 = vmatprep.subr.mxu0 0.0
    %2064 = vmatpush1.xpose.msra.mxu0 0.0
    %2065 = vmatprep.subr.mxu0 0.0
    %2066 = vmatpush1.xpose.msra.mxu0 0.0
    %2067 = vmatprep.subr.mxu0 0.0
    %2068 = vmatpush1.xpose.msra.mxu0 0.0
    %2069 = vmatprep.subr.mxu0 0.0
    %2070 = vmatpush1.xpose.msra.mxu0 0.0
    %2071 = vmatprep.subr.mxu0 0.0
    %2072 = vmatpush1.xpose.msra.mxu0 0.0
    %2073 = vmatprep.subr.mxu0 0.0
    %2074 = vmatpush1.xpose.msra.mxu0 0.0
    %2075 = vmatprep.subr.mxu0 0.0
    %2076 = vmatpush1.xpose.msra.mxu0 0.0
    %2077 = vmatprep.subr.mxu0 0.0
    %2078 = vmatpush1.xpose.msra.mxu0 0.0
    %2079 = vmatprep.mubr.f32.mxu0 0.0
    %2080 = vmatmul.mubr.f32.gmra.mrb[0].mxu0 %v1898
    %v2081 = vpop.f32.mrb[0].mxu0
    %v2082 = vadd.f32 %v2001, %v2081
    %v2083 = vpop.f32.mrb[0].mxu0
    %2084 = vmatprep.mubr.f32.mxu0 0.0
    %2085 = vmatmul.mubr.f32.gmra.mrb[0].mxu0 %v1901
    %v2086 = vpop.f32.mrb[0].mxu0
    %v2087 = vadd.f32 %v2001, %v2086
    %v2088 = vpop.f32.mrb[0].mxu0
    %2089 = vdwg.mxu0
    %s2090 = scalar_lea.vmem %s13, 32
    %v2091 = vld [vmem:[%s2090] sm:$0xff]
    %v2092 = vld [vmem:[%s2090 + $0x8] sm:$0xff]
    %v2093 = vld [vmem:[%s2090 + $0x10] sm:$0xff]
    %v2094 = vld [vmem:[%s2090 + $0x18] sm:$0xff]
    %s2095 = scalar_lea.vmem %s14, 1
    %v2096 = vld [vmem:[%s2095] sm:$0x1]
    %v2098 = vlaneseq
    %v2099 = vshrl.u32 %v2098, 7
    %v2100 = vsub.s32 0, %v2099
    %v2101 = vrot.slane %v2096, %v2100
    %v2104 = vsel %vm208, %v2091, 0
    %v2107 = vsel %vm208, %v2092, 0
    %v2110 = vsel %vm208, %v2093, 0
    %v2113 = vsel %vm208, %v2094, 0
    %2115 = vmatprep.subr.mxu0 0.0
    %2116 = vmatpush1.xpose.msra.mxu0 %v2104
    %2117 = vmatprep.subr.mxu0 0.0
    %2118 = vmatpush1.xpose.msra.mxu0 %v2107
    %2119 = vmatprep.subr.mxu0 0.0
    %2120 = vmatpush1.xpose.msra.mxu0 %v2110
    %2121 = vmatprep.subr.mxu0 0.0
    %2122 = vmatpush1.xpose.msra.mxu0 %v2113
    %2123 = vmatprep.subr.mxu0 0.0
    %2124 = vmatpush1.xpose.msra.mxu0 0.0
    %2125 = vmatprep.subr.mxu0 0.0
    %2126 = vmatpush1.xpose.msra.mxu0 0.0
    %2127 = vmatprep.subr.mxu0 0.0
    %2128 = vmatpush1.xpose.msra.mxu0 0.0
    %2129 = vmatprep.subr.mxu0 0.0
    %2130 = vmatpush1.xpose.msra.mxu0 0.0
    %2131 = vmatprep.subr.mxu0 0.0
    %2132 = vmatpush1.xpose.msra.mxu0 0.0
    %2133 = vmatprep.subr.mxu0 0.0
    %2134 = vmatpush1.xpose.msra.mxu0 0.0
    %2135 = vmatprep.subr.mxu0 0.0
    %2136 = vmatpush1.xpose.msra.mxu0 0.0
    %2137 = vmatprep.subr.mxu0 0.0
    %2138 = vmatpush1.xpose.msra.mxu0 0.0
    %2139 = vmatprep.subr.mxu0 0.0
    %2140 = vmatpush1.xpose.msra.mxu0 0.0
    %2141 = vmatprep.subr.mxu0 0.0
    %2142 = vmatpush1.xpose.msra.mxu0 0.0
    %2143 = vmatprep.subr.mxu0 0.0
    %2144 = vmatpush1.xpose.msra.mxu0 0.0
    %2145 = vmatprep.subr.mxu0 0.0
    %2146 = vmatpush1.xpose.msra.mxu0 0.0
    %2147 = vmatprep.subr.mxu0 0.0
    %2148 = vmatpush1.xpose.msra.mxu0 0.0
    %2149 = vmatprep.subr.mxu0 0.0
    %2150 = vmatpush1.xpose.msra.mxu0 0.0
    %2151 = vmatprep.subr.mxu0 0.0
    %2152 = vmatpush1.xpose.msra.mxu0 0.0
    %2153 = vmatprep.subr.mxu0 0.0
    %2154 = vmatpush1.xpose.msra.mxu0 0.0
    %2155 = vmatprep.subr.mxu0 0.0
    %2156 = vmatpush1.xpose.msra.mxu0 0.0
    %2157 = vmatprep.subr.mxu0 0.0
    %2158 = vmatpush1.xpose.msra.mxu0 0.0
    %2159 = vmatprep.subr.mxu0 0.0
    %2160 = vmatpush1.xpose.msra.mxu0 0.0
    %2161 = vmatprep.subr.mxu0 0.0
    %2162 = vmatpush1.xpose.msra.mxu0 0.0
    %2163 = vmatprep.subr.mxu0 0.0
    %2164 = vmatpush1.xpose.msra.mxu0 0.0
    %2165 = vmatprep.subr.mxu0 0.0
    %2166 = vmatpush1.xpose.msra.mxu0 0.0
    %2167 = vmatprep.subr.mxu0 0.0
    %2168 = vmatpush1.xpose.msra.mxu0 0.0
    %2169 = vmatprep.subr.mxu0 0.0
    %2170 = vmatpush1.xpose.msra.mxu0 0.0
    %2171 = vmatprep.subr.mxu0 0.0
    %2172 = vmatpush1.xpose.msra.mxu0 0.0
    %2173 = vmatprep.subr.mxu0 0.0
    %2174 = vmatpush1.xpose.msra.mxu0 0.0
    %2175 = vmatprep.subr.mxu0 0.0
    %2176 = vmatpush1.xpose.msra.mxu0 0.0
    %2177 = vmatprep.subr.mxu0 0.0
    %2178 = vmatpush1.xpose.msra.mxu0 0.0
    %2179 = vmatprep.mubr.f32.mxu0 0.0
    %2180 = vmatmul.mubr.f32.gmra.mrb[0].mxu0 %v1898
    %v2181 = vpop.f32.mrb[0].mxu0
    %v2182 = vadd.f32 %v2101, %v2181
    %v2183 = vpop.f32.mrb[0].mxu0
    %2184 = vmatprep.mubr.f32.mxu0 0.0
    %2185 = vmatmul.mubr.f32.gmra.mrb[0].mxu0 %v1901
    %v2186 = vpop.f32.mrb[0].mxu0
    %v2187 = vadd.f32 %v2101, %v2186
    %v2188 = vpop.f32.mrb[0].mxu0
    %2189 = vdwg.mxu0
    %v2191 = vsel %vm599, %v1982, 0
    %v2194 = vsel %vm599, %v1987, 0
    %v2197 = vsel %vm599, %v2082, 0
    %v2200 = vsel %vm599, %v2087, 0
    %2202 = vmatprep.subr.mxu0 0.0
    %2203 = vmatpush1.xpose.msra.mxu0 %v2197
    %2204 = vmatprep.subr.mxu0 0.0
    %2205 = vmatpush1.xpose.msra.mxu0 %v2200
    %2206 = vmatprep.subr.mxu0 0.0
    %2207 = vmatpush1.xpose.msra.mxu0 0.0
    %2208 = vmatprep.subr.mxu0 0.0
    %2209 = vmatpush1.xpose.msra.mxu0 0.0
    %2210 = vmatprep.subr.mxu0 0.0
    %2211 = vmatpush1.xpose.msra.mxu0 0.0
    %2212 = vmatprep.subr.mxu0 0.0
    %2213 = vmatpush1.xpose.msra.mxu0 0.0
    %2214 = vmatprep.subr.mxu0 0.0
    %2215 = vmatpush1.xpose.msra.mxu0 0.0
    %2216 = vmatprep.subr.mxu0 0.0
    %2217 = vmatpush1.xpose.msra.mxu0 0.0
    %2218 = vmatprep.subr.mxu0 0.0
    %2219 = vmatpush1.xpose.msra.mxu0 0.0
    %2220 = vmatprep.subr.mxu0 0.0
    %2221 = vmatpush1.xpose.msra.mxu0 0.0
    %2222 = vmatprep.subr.mxu0 0.0
    %2223 = vmatpush1.xpose.msra.mxu0 0.0
    %2224 = vmatprep.subr.mxu0 0.0
    %2225 = vmatpush1.xpose.msra.mxu0 0.0
    %2226 = vmatprep.subr.mxu0 0.0
    %2227 = vmatpush1.xpose.msra.mxu0 0.0
    %2228 = vmatprep.subr.mxu0 0.0
    %2229 = vmatpush1.xpose.msra.mxu0 0.0
    %2230 = vmatprep.subr.mxu0 0.0
    %2231 = vmatpush1.xpose.msra.mxu0 0.0
    %2232 = vmatprep.subr.mxu0 0.0
    %2233 = vmatpush1.xpose.msra.mxu0 0.0
    %2234 = vmatprep.subr.mxu0 0.0
    %2235 = vmatpush1.xpose.msra.mxu0 0.0
    %2236 = vmatprep.subr.mxu0 0.0
    %2237 = vmatpush1.xpose.msra.mxu0 0.0
    %2238 = vmatprep.subr.mxu0 0.0
    %2239 = vmatpush1.xpose.msra.mxu0 0.0
    %2240 = vmatprep.subr.mxu0 0.0
    %2241 = vmatpush1.xpose.msra.mxu0 0.0
    %2242 = vmatprep.subr.mxu0 0.0
    %2243 = vmatpush1.xpose.msra.mxu0 0.0
    %2244 = vmatprep.subr.mxu0 0.0
    %2245 = vmatpush1.xpose.msra.mxu0 0.0
    %2246 = vmatprep.subr.mxu0 0.0
    %2247 = vmatpush1.xpose.msra.mxu0 0.0
    %2248 = vmatprep.subr.mxu0 0.0
    %2249 = vmatpush1.xpose.msra.mxu0 0.0
    %2250 = vmatprep.subr.mxu0 0.0
    %2251 = vmatpush1.xpose.msra.mxu0 0.0
    %2252 = vmatprep.subr.mxu0 0.0
    %2253 = vmatpush1.xpose.msra.mxu0 0.0
    %2254 = vmatprep.subr.mxu0 0.0
    %2255 = vmatpush1.xpose.msra.mxu0 0.0
    %2256 = vmatprep.subr.mxu0 0.0
    %2257 = vmatpush1.xpose.msra.mxu0 0.0
    %2258 = vmatprep.subr.mxu0 0.0
    %2259 = vmatpush1.xpose.msra.mxu0 0.0
    %2260 = vmatprep.subr.mxu0 0.0
    %2261 = vmatpush1.xpose.msra.mxu0 0.0
    %2262 = vmatprep.subr.mxu0 0.0
    %2263 = vmatpush1.xpose.msra.mxu0 0.0
    %2264 = vmatprep.subr.mxu0 0.0
    %2265 = vmatpush1.xpose.msra.mxu0 0.0
    %2266 = vmatprep.mubr.f32.mxu0 0.0
    %2267 = vmatmul.mubr.f32.gmra.mrb[0].mxu0 %v2191
    %v2268 = vpop.f32.mrb[0].mxu0
    %v2269 = vadd.f32 %v253, %v2268
    %v2270 = vpop.f32.mrb[0].mxu0
    %2271 = vmatprep.mubr.f32.mxu0 0.0
    %2272 = vmatmul.mubr.f32.gmra.mrb[0].mxu0 %v2194
    %v2273 = vpop.f32.mrb[0].mxu0
    %v2274 = vadd.f32 %v254, %v2273
    %v2275 = vpop.f32.mrb[0].mxu0
    %2276 = vdwg.mxu0
    %v2277 = vsel %vm687, %v2269, -inf
    %2278 = vmax.xlane.f32.xlu0 %v2277
    %v2279 = vpop.xlane.xlu0 %2278
    %v2280 = vsel %vm691, %v2274, -inf
    %2281 = vmax.xlane.f32.xlu0 %v2280
    %v2282 = vpop.xlane.xlu0 %2281
    %v2283 = vsub.f32 %v2269, %v2279
    %v2284 = vsub.f32 %v2274, %v2282
    %v2285 = vmul.f32 %v2283, 1.442695
    %v2286 = vpow.pop %v2285
    %v2287 = vmul.f32 %v2284, 1.442695
    %v2288 = vpow.pop %v2287
    %v2289 = vsel %vm687, %v2286, 0.0
    %2290 = vadd.xlane.f32.xlu0 %v2289
    %v2291 = vpop.xlane.xlu0 %2290
    %v2292 = vsel %vm691, %v2288, 0.0
    %2293 = vadd.xlane.f32.xlu0 %v2292
    %v2294 = vpop.xlane.xlu0 %2293
    %v2295 = vrcp.pop %v2291
    %v2296 = vrcp.pop %v2294
    %v2297 = vmul.f32 %v2286, %v2295
    %v2298 = vmul.f32 %v2288, %v2296
    %v2300 = vsel %vm687, %v2297, 0
    %v2303 = vsel %vm687, %v2298, 0
    %v2306 = vsel %vm717, %v2187, 0
    %2308 = vmatprep.subr.mxu0 0.0
    %2309 = vmatpush1.msra.mxu0 %v2182
    %2310 = vmatprep.subr.mxu0 0.0
    %2311 = vmatpush1.msra.mxu0 %v2306
    %2312 = vmatprep.subr.mxu0 0.0
    %2313 = vmatpush1.msra.mxu0 0.0
    %2314 = vmatprep.subr.mxu0 0.0
    %2315 = vmatpush1.msra.mxu0 0.0
    %2316 = vmatprep.subr.mxu0 0.0
    %2317 = vmatpush1.msra.mxu0 0.0
    %2318 = vmatprep.subr.mxu0 0.0
    %2319 = vmatpush1.msra.mxu0 0.0
    %2320 = vmatprep.subr.mxu0 0.0
    %2321 = vmatpush1.msra.mxu0 0.0
    %2322 = vmatprep.subr.mxu0 0.0
    %2323 = vmatpush1.msra.mxu0 0.0
    %2324 = vmatprep.subr.mxu0 0.0
    %2325 = vmatpush1.msra.mxu0 0.0
    %2326 = vmatprep.subr.mxu0 0.0
    %2327 = vmatpush1.msra.mxu0 0.0
    %2328 = vmatprep.subr.mxu0 0.0
    %2329 = vmatpush1.msra.mxu0 0.0
    %2330 = vmatprep.subr.mxu0 0.0
    %2331 = vmatpush1.msra.mxu0 0.0
    %2332 = vmatprep.subr.mxu0 0.0
    %2333 = vmatpush1.msra.mxu0 0.0
    %2334 = vmatprep.subr.mxu0 0.0
    %2335 = vmatpush1.msra.mxu0 0.0
    %2336 = vmatprep.subr.mxu0 0.0
    %2337 = vmatpush1.msra.mxu0 0.0
    %2338 = vmatprep.subr.mxu0 0.0
    %2339 = vmatpush1.msra.mxu0 0.0
    %2340 = vmatprep.subr.mxu0 0.0
    %2341 = vmatpush1.msra.mxu0 0.0
    %2342 = vmatprep.subr.mxu0 0.0
    %2343 = vmatpush1.msra.mxu0 0.0
    %2344 = vmatprep.subr.mxu0 0.0
    %2345 = vmatpush1.msra.mxu0 0.0
    %2346 = vmatprep.subr.mxu0 0.0
    %2347 = vmatpush1.msra.mxu0 0.0
    %2348 = vmatprep.subr.mxu0 0.0
    %2349 = vmatpush1.msra.mxu0 0.0
    %2350 = vmatprep.subr.mxu0 0.0
    %2351 = vmatpush1.msra.mxu0 0.0
    %2352 = vmatprep.subr.mxu0 0.0
    %2353 = vmatpush1.msra.mxu0 0.0
    %2354 = vmatprep.subr.mxu0 0.0
    %2355 = vmatpush1.msra.mxu0 0.0
    %2356 = vmatprep.subr.mxu0 0.0
    %2357 = vmatpush1.msra.mxu0 0.0
    %2358 = vmatprep.subr.mxu0 0.0
    %2359 = vmatpush1.msra.mxu0 0.0
    %2360 = vmatprep.subr.mxu0 0.0
    %2361 = vmatpush1.msra.mxu0 0.0
    %2362 = vmatprep.subr.mxu0 0.0
    %2363 = vmatpush1.msra.mxu0 0.0
    %2364 = vmatprep.subr.mxu0 0.0
    %2365 = vmatpush1.msra.mxu0 0.0
    %2366 = vmatprep.subr.mxu0 0.0
    %2367 = vmatpush1.msra.mxu0 0.0
    %2368 = vmatprep.subr.mxu0 0.0
    %2369 = vmatpush1.msra.mxu0 0.0
    %2370 = vmatprep.subr.mxu0 0.0
    %2371 = vmatpush1.msra.mxu0 0.0
    %2372 = vmatprep.mubr.f32.mxu0 0.0
    %2373 = vmatmul.mubr.f32.gmra.mrb[0].mxu0 %v2300
    %v2374 = vpop.f32.mrb[0].mxu0
    %v2375 = vadd.f32 0.0, %v2374
    %v2376 = vpop.f32.mrb[0].mxu0
    %2377 = vmatprep.mubr.f32.mxu0 0.0
    %2378 = vmatmul.mubr.f32.gmra.mrb[0].mxu0 %v2303
    %v2379 = vpop.f32.mrb[0].mxu0
    %v2380 = vadd.f32 0.0, %v2379
    %v2381 = vpop.f32.mrb[0].mxu0
    %2382 = vdwg.mxu0
    %2383 = vrot.lane.b32.xlu0 %v1982, 120
    %v2384 = vpop.permute.xlu0 %2383
    %2385 = vrot.lane.b32.xlu0 %v1987, 120
    %v2386 = vpop.permute.xlu0 %2385
    %2387 = vrot.lane.b32.xlu0 %v2082, 120
    %v2388 = vpop.permute.xlu0 %2387
    %2389 = vrot.lane.b32.xlu0 %v2087, 120
    %v2390 = vpop.permute.xlu0 %2389
    %v2391 = vsel %vm599, %v2384, 0
    %v2393 = vsel %vm599, %v2386, 0
    %v2395 = vsel %vm599, %v2388, 0
    %v2397 = vsel %vm599, %v2390, 0
    %2399 = vmatprep.subr.mxu0 0.0
    %2400 = vmatpush1.xpose.msra.mxu0 %v2395
    %2401 = vmatprep.subr.mxu0 0.0
    %2402 = vmatpush1.xpose.msra.mxu0 %v2397
    %2403 = vmatprep.subr.mxu0 0.0
    %2404 = vmatpush1.xpose.msra.mxu0 0.0
    %2405 = vmatprep.subr.mxu0 0.0
    %2406 = vmatpush1.xpose.msra.mxu0 0.0
    %2407 = vmatprep.subr.mxu0 0.0
    %2408 = vmatpush1.xpose.msra.mxu0 0.0
    %2409 = vmatprep.subr.mxu0 0.0
    %2410 = vmatpush1.xpose.msra.mxu0 0.0
    %2411 = vmatprep.subr.mxu0 0.0
    %2412 = vmatpush1.xpose.msra.mxu0 0.0
    %2413 = vmatprep.subr.mxu0 0.0
    %2414 = vmatpush1.xpose.msra.mxu0 0.0
    %2415 = vmatprep.subr.mxu0 0.0
    %2416 = vmatpush1.xpose.msra.mxu0 0.0
    %2417 = vmatprep.subr.mxu0 0.0
    %2418 = vmatpush1.xpose.msra.mxu0 0.0
    %2419 = vmatprep.subr.mxu0 0.0
    %2420 = vmatpush1.xpose.msra.mxu0 0.0
    %2421 = vmatprep.subr.mxu0 0.0
    %2422 = vmatpush1.xpose.msra.mxu0 0.0
    %2423 = vmatprep.subr.mxu0 0.0
    %2424 = vmatpush1.xpose.msra.mxu0 0.0
    %2425 = vmatprep.subr.mxu0 0.0
    %2426 = vmatpush1.xpose.msra.mxu0 0.0
    %2427 = vmatprep.subr.mxu0 0.0
    %2428 = vmatpush1.xpose.msra.mxu0 0.0
    %2429 = vmatprep.subr.mxu0 0.0
    %2430 = vmatpush1.xpose.msra.mxu0 0.0
    %2431 = vmatprep.subr.mxu0 0.0
    %2432 = vmatpush1.xpose.msra.mxu0 0.0
    %2433 = vmatprep.subr.mxu0 0.0
    %2434 = vmatpush1.xpose.msra.mxu0 0.0
    %2435 = vmatprep.subr.mxu0 0.0
    %2436 = vmatpush1.xpose.msra.mxu0 0.0
    %2437 = vmatprep.subr.mxu0 0.0
    %2438 = vmatpush1.xpose.msra.mxu0 0.0
    %2439 = vmatprep.subr.mxu0 0.0
    %2440 = vmatpush1.xpose.msra.mxu0 0.0
    %2441 = vmatprep.subr.mxu0 0.0
    %2442 = vmatpush1.xpose.msra.mxu0 0.0
    %2443 = vmatprep.subr.mxu0 0.0
    %2444 = vmatpush1.xpose.msra.mxu0 0.0
    %2445 = vmatprep.subr.mxu0 0.0
    %2446 = vmatpush1.xpose.msra.mxu0 0.0
    %2447 = vmatprep.subr.mxu0 0.0
    %2448 = vmatpush1.xpose.msra.mxu0 0.0
    %2449 = vmatprep.subr.mxu0 0.0
    %2450 = vmatpush1.xpose.msra.mxu0 0.0
    %2451 = vmatprep.subr.mxu0 0.0
    %2452 = vmatpush1.xpose.msra.mxu0 0.0
    %2453 = vmatprep.subr.mxu0 0.0
    %2454 = vmatpush1.xpose.msra.mxu0 0.0
    %2455 = vmatprep.subr.mxu0 0.0
    %2456 = vmatpush1.xpose.msra.mxu0 0.0
    %2457 = vmatprep.subr.mxu0 0.0
    %2458 = vmatpush1.xpose.msra.mxu0 0.0
    %2459 = vmatprep.subr.mxu0 0.0
    %2460 = vmatpush1.xpose.msra.mxu0 0.0
    %2461 = vmatprep.subr.mxu0 0.0
    %2462 = vmatpush1.xpose.msra.mxu0 0.0
    %2463 = vmatprep.mubr.f32.mxu0 0.0
    %2464 = vmatmul.mubr.f32.gmra.mrb[0].mxu0 %v2391
    %v2465 = vpop.f32.mrb[0].mxu0
    %v2466 = vadd.f32 %v253, %v2465
    %v2467 = vpop.f32.mrb[0].mxu0
    %2468 = vmatprep.mubr.f32.mxu0 0.0
    %2469 = vmatmul.mubr.f32.gmra.mrb[0].mxu0 %v2393
    %v2470 = vpop.f32.mrb[0].mxu0
    %v2471 = vadd.f32 %v254, %v2470
    %v2472 = vpop.f32.mrb[0].mxu0
    %2473 = vdwg.mxu0
    %v2474 = vsel %vm687, %v2466, -inf
    %2475 = vmax.xlane.f32.xlu0 %v2474
    %v2476 = vpop.xlane.xlu0 %2475
    %v2477 = vsel %vm691, %v2471, -inf
    %2478 = vmax.xlane.f32.xlu0 %v2477
    %v2479 = vpop.xlane.xlu0 %2478
    %v2480 = vsub.f32 %v2466, %v2476
    %v2481 = vsub.f32 %v2471, %v2479
    %v2482 = vmul.f32 %v2480, 1.442695
    %v2483 = vpow.pop %v2482
    %v2484 = vmul.f32 %v2481, 1.442695
    %v2485 = vpow.pop %v2484
    %v2486 = vsel %vm687, %v2483, 0.0
    %2487 = vadd.xlane.f32.xlu0 %v2486
    %v2488 = vpop.xlane.xlu0 %2487
    %v2489 = vsel %vm691, %v2485, 0.0
    %2490 = vadd.xlane.f32.xlu0 %v2489
    %v2491 = vpop.xlane.xlu0 %2490
    %v2492 = vrcp.pop %v2488
    %v2493 = vrcp.pop %v2491
    %v2494 = vmul.f32 %v2483, %v2492
    %v2495 = vmul.f32 %v2485, %v2493
    %2497 = vrot.lane.b32.xlu0 %v2182, 120
    %v2498 = vpop.permute.xlu0 %2497
    %2499 = vrot.lane.b32.xlu0 %v2187, 120
    %v2500 = vpop.permute.xlu0 %2499
    %v2503 = vsel %vm687, %v2494, 0
    %v2506 = vsel %vm687, %v2495, 0
    %v2508 = vsel %vm717, %v2500, 0
    %2510 = vmatprep.subr.mxu0 0.0
    %2511 = vmatpush1.msra.mxu0 %v2498
    %2512 = vmatprep.subr.mxu0 0.0
    %2513 = vmatpush1.msra.mxu0 %v2508
    %2514 = vmatprep.subr.mxu0 0.0
    %2515 = vmatpush1.msra.mxu0 0.0
    %2516 = vmatprep.subr.mxu0 0.0
    %2517 = vmatpush1.msra.mxu0 0.0
    %2518 = vmatprep.subr.mxu0 0.0
    %2519 = vmatpush1.msra.mxu0 0.0
    %2520 = vmatprep.subr.mxu0 0.0
    %2521 = vmatpush1.msra.mxu0 0.0
    %2522 = vmatprep.subr.mxu0 0.0
    %2523 = vmatpush1.msra.mxu0 0.0
    %2524 = vmatprep.subr.mxu0 0.0
    %2525 = vmatpush1.msra.mxu0 0.0
    %2526 = vmatprep.subr.mxu0 0.0
    %2527 = vmatpush1.msra.mxu0 0.0
    %2528 = vmatprep.subr.mxu0 0.0
    %2529 = vmatpush1.msra.mxu0 0.0
    %2530 = vmatprep.subr.mxu0 0.0
    %2531 = vmatpush1.msra.mxu0 0.0
    %2532 = vmatprep.subr.mxu0 0.0
    %2533 = vmatpush1.msra.mxu0 0.0
    %2534 = vmatprep.subr.mxu0 0.0
    %2535 = vmatpush1.msra.mxu0 0.0
    %2536 = vmatprep.subr.mxu0 0.0
    %2537 = vmatpush1.msra.mxu0 0.0
    %2538 = vmatprep.subr.mxu0 0.0
    %2539 = vmatpush1.msra.mxu0 0.0
    %2540 = vmatprep.subr.mxu0 0.0
    %2541 = vmatpush1.msra.mxu0 0.0
    %2542 = vmatprep.subr.mxu0 0.0
    %2543 = vmatpush1.msra.mxu0 0.0
    %2544 = vmatprep.subr.mxu0 0.0
    %2545 = vmatpush1.msra.mxu0 0.0
    %2546 = vmatprep.subr.mxu0 0.0
    %2547 = vmatpush1.msra.mxu0 0.0
    %2548 = vmatprep.subr.mxu0 0.0
    %2549 = vmatpush1.msra.mxu0 0.0
    %2550 = vmatprep.subr.mxu0 0.0
    %2551 = vmatpush1.msra.mxu0 0.0
    %2552 = vmatprep.subr.mxu0 0.0
    %2553 = vmatpush1.msra.mxu0 0.0
    %2554 = vmatprep.subr.mxu0 0.0
    %2555 = vmatpush1.msra.mxu0 0.0
    %2556 = vmatprep.subr.mxu0 0.0
    %2557 = vmatpush1.msra.mxu0 0.0
    %2558 = vmatprep.subr.mxu0 0.0
    %2559 = vmatpush1.msra.mxu0 0.0
    %2560 = vmatprep.subr.mxu0 0.0
    %2561 = vmatpush1.msra.mxu0 0.0
    %2562 = vmatprep.subr.mxu0 0.0
    %2563 = vmatpush1.msra.mxu0 0.0
    %2564 = vmatprep.subr.mxu0 0.0
    %2565 = vmatpush1.msra.mxu0 0.0
    %2566 = vmatprep.subr.mxu0 0.0
    %2567 = vmatpush1.msra.mxu0 0.0
    %2568 = vmatprep.subr.mxu0 0.0
    %2569 = vmatpush1.msra.mxu0 0.0
    %2570 = vmatprep.subr.mxu0 0.0
    %2571 = vmatpush1.msra.mxu0 0.0
    %2572 = vmatprep.subr.mxu0 0.0
    %2573 = vmatpush1.msra.mxu0 0.0
    %2574 = vmatprep.mubr.f32.mxu0 0.0
    %2575 = vmatmul.mubr.f32.gmra.mrb[0].mxu0 %v2503
    %v2576 = vpop.f32.mrb[0].mxu0
    %v2577 = vadd.f32 0.0, %v2576
    %v2578 = vpop.f32.mrb[0].mxu0
    %2579 = vmatprep.mubr.f32.mxu0 0.0
    %2580 = vmatmul.mubr.f32.gmra.mrb[0].mxu0 %v2506
    %v2581 = vpop.f32.mrb[0].mxu0
    %v2582 = vadd.f32 0.0, %v2581
    %v2583 = vpop.f32.mrb[0].mxu0
    %2584 = vdwg.mxu0
    %2585 = vrot.lane.b32.xlu0 %v1982, 112
    %v2586 = vpop.permute.xlu0 %2585
    %2587 = vrot.lane.b32.xlu0 %v1987, 112
    %v2588 = vpop.permute.xlu0 %2587
    %2589 = vrot.lane.b32.xlu0 %v2082, 112
    %v2590 = vpop.permute.xlu0 %2589
    %2591 = vrot.lane.b32.xlu0 %v2087, 112
    %v2592 = vpop.permute.xlu0 %2591
    %v2593 = vsel %vm599, %v2586, 0
    %v2595 = vsel %vm599, %v2588, 0
    %v2597 = vsel %vm599, %v2590, 0
    %v2599 = vsel %vm599, %v2592, 0
    %2601 = vmatprep.subr.mxu0 0.0
    %2602 = vmatpush1.xpose.msra.mxu0 %v2597
    %2603 = vmatprep.subr.mxu0 0.0
    %2604 = vmatpush1.xpose.msra.mxu0 %v2599
    %2605 = vmatprep.subr.mxu0 0.0
    %2606 = vmatpush1.xpose.msra.mxu0 0.0
    %2607 = vmatprep.subr.mxu0 0.0
    %2608 = vmatpush1.xpose.msra.mxu0 0.0
    %2609 = vmatprep.subr.mxu0 0.0
    %2610 = vmatpush1.xpose.msra.mxu0 0.0
    %2611 = vmatprep.subr.mxu0 0.0
    %2612 = vmatpush1.xpose.msra.mxu0 0.0
    %2613 = vmatprep.subr.mxu0 0.0
    %2614 = vmatpush1.xpose.msra.mxu0 0.0
    %2615 = vmatprep.subr.mxu0 0.0
    %2616 = vmatpush1.xpose.msra.mxu0 0.0
    %2617 = vmatprep.subr.mxu0 0.0
    %2618 = vmatpush1.xpose.msra.mxu0 0.0
    %2619 = vmatprep.subr.mxu0 0.0
    %2620 = vmatpush1.xpose.msra.mxu0 0.0
    %2621 = vmatprep.subr.mxu0 0.0
    %2622 = vmatpush1.xpose.msra.mxu0 0.0
    %2623 = vmatprep.subr.mxu0 0.0
    %2624 = vmatpush1.xpose.msra.mxu0 0.0
    %2625 = vmatprep.subr.mxu0 0.0
    %2626 = vmatpush1.xpose.msra.mxu0 0.0
    %2627 = vmatprep.subr.mxu0 0.0
    %2628 = vmatpush1.xpose.msra.mxu0 0.0
    %2629 = vmatprep.subr.mxu0 0.0
    %2630 = vmatpush1.xpose.msra.mxu0 0.0
    %2631 = vmatprep.subr.mxu0 0.0
    %2632 = vmatpush1.xpose.msra.mxu0 0.0
    %2633 = vmatprep.subr.mxu0 0.0
    %2634 = vmatpush1.xpose.msra.mxu0 0.0
    %2635 = vmatprep.subr.mxu0 0.0
    %2636 = vmatpush1.xpose.msra.mxu0 0.0
    %2637 = vmatprep.subr.mxu0 0.0
    %2638 = vmatpush1.xpose.msra.mxu0 0.0
    %2639 = vmatprep.subr.mxu0 0.0
    %2640 = vmatpush1.xpose.msra.mxu0 0.0
    %2641 = vmatprep.subr.mxu0 0.0
    %2642 = vmatpush1.xpose.msra.mxu0 0.0
    %2643 = vmatprep.subr.mxu0 0.0
    %2644 = vmatpush1.xpose.msra.mxu0 0.0
    %2645 = vmatprep.subr.mxu0 0.0
    %2646 = vmatpush1.xpose.msra.mxu0 0.0
    %2647 = vmatprep.subr.mxu0 0.0
    %2648 = vmatpush1.xpose.msra.mxu0 0.0
    %2649 = vmatprep.subr.mxu0 0.0
    %2650 = vmatpush1.xpose.msra.mxu0 0.0
    %2651 = vmatprep.subr.mxu0 0.0
    %2652 = vmatpush1.xpose.msra.mxu0 0.0
    %2653 = vmatprep.subr.mxu0 0.0
    %2654 = vmatpush1.xpose.msra.mxu0 0.0
    %2655 = vmatprep.subr.mxu0 0.0
    %2656 = vmatpush1.xpose.msra.mxu0 0.0
    %2657 = vmatprep.subr.mxu0 0.0
    %2658 = vmatpush1.xpose.msra.mxu0 0.0
    %2659 = vmatprep.subr.mxu0 0.0
    %2660 = vmatpush1.xpose.msra.mxu0 0.0
    %2661 = vmatprep.subr.mxu0 0.0
    %2662 = vmatpush1.xpose.msra.mxu0 0.0
    %2663 = vmatprep.subr.mxu0 0.0
    %2664 = vmatpush1.xpose.msra.mxu0 0.0
    %2665 = vmatprep.mubr.f32.mxu0 0.0
    %2666 = vmatmul.mubr.f32.gmra.mrb[0].mxu0 %v2593
    %v2667 = vpop.f32.mrb[0].mxu0
    %v2668 = vadd.f32 %v253, %v2667
    %v2669 = vpop.f32.mrb[0].mxu0
    %2670 = vmatprep.mubr.f32.mxu0 0.0
    %2671 = vmatmul.mubr.f32.gmra.mrb[0].mxu0 %v2595
    %v2672 = vpop.f32.mrb[0].mxu0
    %v2673 = vadd.f32 %v254, %v2672
    %v2674 = vpop.f32.mrb[0].mxu0
    %2675 = vdwg.mxu0
    %v2676 = vsel %vm687, %v2668, -inf
    %2677 = vmax.xlane.f32.xlu0 %v2676
    %v2678 = vpop.xlane.xlu0 %2677
    %v2679 = vsel %vm691, %v2673, -inf
    %2680 = vmax.xlane.f32.xlu0 %v2679
    %v2681 = vpop.xlane.xlu0 %2680
    %v2682 = vsub.f32 %v2668, %v2678
    %v2683 = vsub.f32 %v2673, %v2681
    %v2684 = vmul.f32 %v2682, 1.442695
    %v2685 = vpow.pop %v2684
    %v2686 = vmul.f32 %v2683, 1.442695
    %v2687 = vpow.pop %v2686
    %v2688 = vsel %vm687, %v2685, 0.0
    %2689 = vadd.xlane.f32.xlu0 %v2688
    %v2690 = vpop.xlane.xlu0 %2689
    %v2691 = vsel %vm691, %v2687, 0.0
    %2692 = vadd.xlane.f32.xlu0 %v2691
    %v2693 = vpop.xlane.xlu0 %2692
    %v2694 = vrcp.pop %v2690
    %v2695 = vrcp.pop %v2693
    %v2696 = vmul.f32 %v2685, %v2694
    %v2697 = vmul.f32 %v2687, %v2695
    %2698 = vrot.lane.b32.xlu0 %v2182, 112
    %v2699 = vpop.permute.xlu0 %2698
    %2700 = vrot.lane.b32.xlu0 %v2187, 112
    %v2701 = vpop.permute.xlu0 %2700
    %v2704 = vsel %vm687, %v2696, 0
    %v2707 = vsel %vm687, %v2697, 0
    %v2709 = vsel %vm717, %v2701, 0
    %2711 = vmatprep.subr.mxu0 0.0
    %2712 = vmatpush1.msra.mxu0 %v2699
    %2713 = vmatprep.subr.mxu0 0.0
    %2714 = vmatpush1.msra.mxu0 %v2709
    %2715 = vmatprep.subr.mxu0 0.0
    %2716 = vmatpush1.msra.mxu0 0.0
    %2717 = vmatprep.subr.mxu0 0.0
    %2718 = vmatpush1.msra.mxu0 0.0
    %2719 = vmatprep.subr.mxu0 0.0
    %2720 = vmatpush1.msra.mxu0 0.0
    %2721 = vmatprep.subr.mxu0 0.0
    %2722 = vmatpush1.msra.mxu0 0.0
    %2723 = vmatprep.subr.mxu0 0.0
    %2724 = vmatpush1.msra.mxu0 0.0
    %2725 = vmatprep.subr.mxu0 0.0
    %2726 = vmatpush1.msra.mxu0 0.0
    %2727 = vmatprep.subr.mxu0 0.0
    %2728 = vmatpush1.msra.mxu0 0.0
    %2729 = vmatprep.subr.mxu0 0.0
    %2730 = vmatpush1.msra.mxu0 0.0
    %2731 = vmatprep.subr.mxu0 0.0
    %2732 = vmatpush1.msra.mxu0 0.0
    %2733 = vmatprep.subr.mxu0 0.0
    %2734 = vmatpush1.msra.mxu0 0.0
    %2735 = vmatprep.subr.mxu0 0.0
    %2736 = vmatpush1.msra.mxu0 0.0
    %2737 = vmatprep.subr.mxu0 0.0
    %2738 = vmatpush1.msra.mxu0 0.0
    %2739 = vmatprep.subr.mxu0 0.0
    %2740 = vmatpush1.msra.mxu0 0.0
    %2741 = vmatprep.subr.mxu0 0.0
    %2742 = vmatpush1.msra.mxu0 0.0
    %2743 = vmatprep.subr.mxu0 0.0
    %2744 = vmatpush1.msra.mxu0 0.0
    %2745 = vmatprep.subr.mxu0 0.0
    %2746 = vmatpush1.msra.mxu0 0.0
    %2747 = vmatprep.subr.mxu0 0.0
    %2748 = vmatpush1.msra.mxu0 0.0
    %2749 = vmatprep.subr.mxu0 0.0
    %2750 = vmatpush1.msra.mxu0 0.0
    %2751 = vmatprep.subr.mxu0 0.0
    %2752 = vmatpush1.msra.mxu0 0.0
    %2753 = vmatprep.subr.mxu0 0.0
    %2754 = vmatpush1.msra.mxu0 0.0
    %2755 = vmatprep.subr.mxu0 0.0
    %2756 = vmatpush1.msra.mxu0 0.0
    %2757 = vmatprep.subr.mxu0 0.0
    %2758 = vmatpush1.msra.mxu0 0.0
    %2759 = vmatprep.subr.mxu0 0.0
    %2760 = vmatpush1.msra.mxu0 0.0
    %2761 = vmatprep.subr.mxu0 0.0
    %2762 = vmatpush1.msra.mxu0 0.0
    %2763 = vmatprep.subr.mxu0 0.0
    %2764 = vmatpush1.msra.mxu0 0.0
    %2765 = vmatprep.subr.mxu0 0.0
    %2766 = vmatpush1.msra.mxu0 0.0
    %2767 = vmatprep.subr.mxu0 0.0
    %2768 = vmatpush1.msra.mxu0 0.0
    %2769 = vmatprep.subr.mxu0 0.0
    %2770 = vmatpush1.msra.mxu0 0.0
    %2771 = vmatprep.subr.mxu0 0.0
    %2772 = vmatpush1.msra.mxu0 0.0
    %2773 = vmatprep.subr.mxu0 0.0
    %2774 = vmatpush1.msra.mxu0 0.0
    %2775 = vmatprep.mubr.f32.mxu0 0.0
    %2776 = vmatmul.mubr.f32.gmra.mrb[0].mxu0 %v2704
    %v2777 = vpop.f32.mrb[0].mxu0
    %v2778 = vadd.f32 0.0, %v2777
    %v2779 = vpop.f32.mrb[0].mxu0
    %2780 = vmatprep.mubr.f32.mxu0 0.0
    %2781 = vmatmul.mubr.f32.gmra.mrb[0].mxu0 %v2707
    %v2782 = vpop.f32.mrb[0].mxu0
    %v2783 = vadd.f32 0.0, %v2782
    %v2784 = vpop.f32.mrb[0].mxu0
    %2785 = vdwg.mxu0
    %2786 = vrot.lane.b32.xlu0 %v1982, 104
    %v2787 = vpop.permute.xlu0 %2786
    %2788 = vrot.lane.b32.xlu0 %v1987, 104
    %v2789 = vpop.permute.xlu0 %2788
    %2790 = vrot.lane.b32.xlu0 %v2082, 104
    %v2791 = vpop.permute.xlu0 %2790
    %2792 = vrot.lane.b32.xlu0 %v2087, 104
    %v2793 = vpop.permute.xlu0 %2792
    %v2794 = vsel %vm599, %v2787, 0
    %v2796 = vsel %vm599, %v2789, 0
    %v2798 = vsel %vm599, %v2791, 0
    %v2800 = vsel %vm599, %v2793, 0
    %2802 = vmatprep.subr.mxu0 0.0
    %2803 = vmatpush1.xpose.msra.mxu0 %v2798
    %2804 = vmatprep.subr.mxu0 0.0
    %2805 = vmatpush1.xpose.msra.mxu0 %v2800
    %2806 = vmatprep.subr.mxu0 0.0
    %2807 = vmatpush1.xpose.msra.mxu0 0.0
    %2808 = vmatprep.subr.mxu0 0.0
    %2809 = vmatpush1.xpose.msra.mxu0 0.0
    %2810 = vmatprep.subr.mxu0 0.0
    %2811 = vmatpush1.xpose.msra.mxu0 0.0
    %2812 = vmatprep.subr.mxu0 0.0
    %2813 = vmatpush1.xpose.msra.mxu0 0.0
    %2814 = vmatprep.subr.mxu0 0.0
    %2815 = vmatpush1.xpose.msra.mxu0 0.0
    %2816 = vmatprep.subr.mxu0 0.0
    %2817 = vmatpush1.xpose.msra.mxu0 0.0
    %2818 = vmatprep.subr.mxu0 0.0
    %2819 = vmatpush1.xpose.msra.mxu0 0.0
    %2820 = vmatprep.subr.mxu0 0.0
    %2821 = vmatpush1.xpose.msra.mxu0 0.0
    %2822 = vmatprep.subr.mxu0 0.0
    %2823 = vmatpush1.xpose.msra.mxu0 0.0
    %2824 = vmatprep.subr.mxu0 0.0
    %2825 = vmatpush1.xpose.msra.mxu0 0.0
    %2826 = vmatprep.subr.mxu0 0.0
    %2827 = vmatpush1.xpose.msra.mxu0 0.0
    %2828 = vmatprep.subr.mxu0 0.0
    %2829 = vmatpush1.xpose.msra.mxu0 0.0
    %2830 = vmatprep.subr.mxu0 0.0
    %2831 = vmatpush1.xpose.msra.mxu0 0.0
    %2832 = vmatprep.subr.mxu0 0.0
    %2833 = vmatpush1.xpose.msra.mxu0 0.0
    %2834 = vmatprep.subr.mxu0 0.0
    %2835 = vmatpush1.xpose.msra.mxu0 0.0
    %2836 = vmatprep.subr.mxu0 0.0
    %2837 = vmatpush1.xpose.msra.mxu0 0.0
    %2838 = vmatprep.subr.mxu0 0.0
    %2839 = vmatpush1.xpose.msra.mxu0 0.0
    %2840 = vmatprep.subr.mxu0 0.0
    %2841 = vmatpush1.xpose.msra.mxu0 0.0
    %2842 = vmatprep.subr.mxu0 0.0
    %2843 = vmatpush1.xpose.msra.mxu0 0.0
    %2844 = vmatprep.subr.mxu0 0.0
    %2845 = vmatpush1.xpose.msra.mxu0 0.0
    %2846 = vmatprep.subr.mxu0 0.0
    %2847 = vmatpush1.xpose.msra.mxu0 0.0
    %2848 = vmatprep.subr.mxu0 0.0
    %2849 = vmatpush1.xpose.msra.mxu0 0.0
    %2850 = vmatprep.subr.mxu0 0.0
    %2851 = vmatpush1.xpose.msra.mxu0 0.0
    %2852 = vmatprep.subr.mxu0 0.0
    %2853 = vmatpush1.xpose.msra.mxu0 0.0
    %2854 = vmatprep.subr.mxu0 0.0
    %2855 = vmatpush1.xpose.msra.mxu0 0.0
    %2856 = vmatprep.subr.mxu0 0.0
    %2857 = vmatpush1.xpose.msra.mxu0 0.0
    %2858 = vmatprep.subr.mxu0 0.0
    %2859 = vmatpush1.xpose.msra.mxu0 0.0
    %2860 = vmatprep.subr.mxu0 0.0
    %2861 = vmatpush1.xpose.msra.mxu0 0.0
    %2862 = vmatprep.subr.mxu0 0.0
    %2863 = vmatpush1.xpose.msra.mxu0 0.0
    %2864 = vmatprep.subr.mxu0 0.0
    %2865 = vmatpush1.xpose.msra.mxu0 0.0
    %2866 = vmatprep.mubr.f32.mxu0 0.0
    %2867 = vmatmul.mubr.f32.gmra.mrb[0].mxu0 %v2794
    %v2868 = vpop.f32.mrb[0].mxu0
    %v2869 = vadd.f32 %v253, %v2868
    %v2870 = vpop.f32.mrb[0].mxu0
    %2871 = vmatprep.mubr.f32.mxu0 0.0
    %2872 = vmatmul.mubr.f32.gmra.mrb[0].mxu0 %v2796
    %v2873 = vpop.f32.mrb[0].mxu0
    %v2874 = vadd.f32 %v254, %v2873
    %v2875 = vpop.f32.mrb[0].mxu0
    %2876 = vdwg.mxu0
    %v2877 = vsel %vm687, %v2869, -inf
    %2878 = vmax.xlane.f32.xlu0 %v2877
    %v2879 = vpop.xlane.xlu0 %2878
    %v2880 = vsel %vm691, %v2874, -inf
    %2881 = vmax.xlane.f32.xlu0 %v2880
    %v2882 = vpop.xlane.xlu0 %2881
    %v2883 = vsub.f32 %v2869, %v2879
    %v2884 = vsub.f32 %v2874, %v2882
    %v2885 = vmul.f32 %v2883, 1.442695
    %v2886 = vpow.pop %v2885
    %v2887 = vmul.f32 %v2884, 1.442695
    %v2888 = vpow.pop %v2887
    %v2889 = vsel %vm687, %v2886, 0.0
    %2890 = vadd.xlane.f32.xlu0 %v2889
    %v2891 = vpop.xlane.xlu0 %2890
    %v2892 = vsel %vm691, %v2888, 0.0
    %2893 = vadd.xlane.f32.xlu0 %v2892
    %v2894 = vpop.xlane.xlu0 %2893
    %v2895 = vrcp.pop %v2891
    %v2896 = vrcp.pop %v2894
    %v2897 = vmul.f32 %v2886, %v2895
    %v2898 = vmul.f32 %v2888, %v2896
    %2899 = vrot.lane.b32.xlu0 %v2182, 104
    %v2900 = vpop.permute.xlu0 %2899
    %2901 = vrot.lane.b32.xlu0 %v2187, 104
    %v2902 = vpop.permute.xlu0 %2901
    %v2905 = vsel %vm687, %v2897, 0
    %v2908 = vsel %vm687, %v2898, 0
    %v2910 = vsel %vm717, %v2902, 0
    %2912 = vmatprep.subr.mxu0 0.0
    %2913 = vmatpush1.msra.mxu0 %v2900
    %2914 = vmatprep.subr.mxu0 0.0
    %2915 = vmatpush1.msra.mxu0 %v2910
    %2916 = vmatprep.subr.mxu0 0.0
    %2917 = vmatpush1.msra.mxu0 0.0
    %2918 = vmatprep.subr.mxu0 0.0
    %2919 = vmatpush1.msra.mxu0 0.0
    %2920 = vmatprep.subr.mxu0 0.0
    %2921 = vmatpush1.msra.mxu0 0.0
    %2922 = vmatprep.subr.mxu0 0.0
    %2923 = vmatpush1.msra.mxu0 0.0
    %2924 = vmatprep.subr.mxu0 0.0
    %2925 = vmatpush1.msra.mxu0 0.0
    %2926 = vmatprep.subr.mxu0 0.0
    %2927 = vmatpush1.msra.mxu0 0.0
    %2928 = vmatprep.subr.mxu0 0.0
    %2929 = vmatpush1.msra.mxu0 0.0
    %2930 = vmatprep.subr.mxu0 0.0
    %2931 = vmatpush1.msra.mxu0 0.0
    %2932 = vmatprep.subr.mxu0 0.0
    %2933 = vmatpush1.msra.mxu0 0.0
    %2934 = vmatprep.subr.mxu0 0.0
    %2935 = vmatpush1.msra.mxu0 0.0
    %2936 = vmatprep.subr.mxu0 0.0
    %2937 = vmatpush1.msra.mxu0 0.0
    %2938 = vmatprep.subr.mxu0 0.0
    %2939 = vmatpush1.msra.mxu0 0.0
    %2940 = vmatprep.subr.mxu0 0.0
    %2941 = vmatpush1.msra.mxu0 0.0
    %2942 = vmatprep.subr.mxu0 0.0
    %2943 = vmatpush1.msra.mxu0 0.0
    %2944 = vmatprep.subr.mxu0 0.0
    %2945 = vmatpush1.msra.mxu0 0.0
    %2946 = vmatprep.subr.mxu0 0.0
    %2947 = vmatpush1.msra.mxu0 0.0
    %2948 = vmatprep.subr.mxu0 0.0
    %2949 = vmatpush1.msra.mxu0 0.0
    %2950 = vmatprep.subr.mxu0 0.0
    %2951 = vmatpush1.msra.mxu0 0.0
    %2952 = vmatprep.subr.mxu0 0.0
    %2953 = vmatpush1.msra.mxu0 0.0
    %2954 = vmatprep.subr.mxu0 0.0
    %2955 = vmatpush1.msra.mxu0 0.0
    %2956 = vmatprep.subr.mxu0 0.0
    %2957 = vmatpush1.msra.mxu0 0.0
    %2958 = vmatprep.subr.mxu0 0.0
    %2959 = vmatpush1.msra.mxu0 0.0
    %2960 = vmatprep.subr.mxu0 0.0
    %2961 = vmatpush1.msra.mxu0 0.0
    %2962 = vmatprep.subr.mxu0 0.0
    %2963 = vmatpush1.msra.mxu0 0.0
    %2964 = vmatprep.subr.mxu0 0.0
    %2965 = vmatpush1.msra.mxu0 0.0
    %2966 = vmatprep.subr.mxu0 0.0
    %2967 = vmatpush1.msra.mxu0 0.0
    %2968 = vmatprep.subr.mxu0 0.0
    %2969 = vmatpush1.msra.mxu0 0.0
    %2970 = vmatprep.subr.mxu0 0.0
    %2971 = vmatpush1.msra.mxu0 0.0
    %2972 = vmatprep.subr.mxu0 0.0
    %2973 = vmatpush1.msra.mxu0 0.0
    %2974 = vmatprep.subr.mxu0 0.0
    %2975 = vmatpush1.msra.mxu0 0.0
    %2976 = vmatprep.mubr.f32.mxu0 0.0
    %2977 = vmatmul.mubr.f32.gmra.mrb[0].mxu0 %v2905
    %v2978 = vpop.f32.mrb[0].mxu0
    %v2979 = vadd.f32 0.0, %v2978
    %v2980 = vpop.f32.mrb[0].mxu0
    %2981 = vmatprep.mubr.f32.mxu0 0.0
    %2982 = vmatmul.mubr.f32.gmra.mrb[0].mxu0 %v2908
    %v2983 = vpop.f32.mrb[0].mxu0
    %v2984 = vadd.f32 0.0, %v2983
    %v2985 = vpop.f32.mrb[0].mxu0
    %2986 = vdwg.mxu0
    %2989 = vrot.lane.b32.xlu0 %v2577, 8
    %v2990 = vpop.permute.xlu0 %2989
    %2991 = vrot.lane.b32.xlu0 %v2582, 8
    %v2992 = vpop.permute.xlu0 %2991
    %2997 = vrot.lane.b32.xlu0 %v2778, 16
    %v2998 = vpop.permute.xlu0 %2997
    %2999 = vrot.lane.b32.xlu0 %v2783, 16
    %v3000 = vpop.permute.xlu0 %2999
    %3005 = vrot.lane.b32.xlu0 %v2979, 24
    %v3006 = vpop.permute.xlu0 %3005
    %3007 = vrot.lane.b32.xlu0 %v2984, 24
    %v3008 = vpop.permute.xlu0 %3007
    %v3011 = vsel %vm599, %v2375, %v2990
    %v3012 = vsel %vm599, %v2380, %v2992
    %v3013 = vsel %vm1426, %v3011, %v2998
    %v3014 = vsel %vm1426, %v3012, %v3000
    %v3015 = vsel %vm1429, %v3013, %v3006
    %v3016 = vsel %vm1429, %v3014, %v3008
    %s3017 = scalar_lea.vmem %s15, 32
    %v3018 = vld [vmem:[%s3017] sm:$0xff]
    %v3019 = vld [vmem:[%s3017 + $0x8] sm:$0xff]
    %v3020 = vld [vmem:[%s3017 + $0x10] sm:$0xff]
    %v3021 = vld [vmem:[%s3017 + $0x18] sm:$0xff]
    %s3022 = scalar_lea.vmem %s16, 1
    %v3023 = vld [vmem:[%s3022] sm:$0x1]
    %v3025 = vlaneseq
    %v3026 = vshrl.u32 %v3025, 7
    %v3027 = vsub.s32 0, %v3026
    %v3028 = vrot.slane %v3023, %v3027
    %v3031 = vsel %vm208, %v3015, 0
    %v3034 = vsel %vm208, %v3016, 0
    %v3037 = vsel %vm208, %v3018, 0
    %v3040 = vsel %vm208, %v3019, 0
    %v3043 = vsel %vm208, %v3020, 0
    %v3046 = vsel %vm208, %v3021, 0
    %3048 = vmatprep.subr.mxu0 0.0
    %3049 = vmatpush1.xpose.msra.mxu0 %v3037
    %3050 = vmatprep.subr.mxu0 0.0
    %3051 = vmatpush1.xpose.msra.mxu0 %v3040
    %3052 = vmatprep.subr.mxu0 0.0
    %3053 = vmatpush1.xpose.msra.mxu0 %v3043
    %3054 = vmatprep.subr.mxu0 0.0
    %3055 = vmatpush1.xpose.msra.mxu0 %v3046
    %3056 = vmatprep.subr.mxu0 0.0
    %3057 = vmatpush1.xpose.msra.mxu0 0.0
    %3058 = vmatprep.subr.mxu0 0.0
    %3059 = vmatpush1.xpose.msra.mxu0 0.0
    %3060 = vmatprep.subr.mxu0 0.0
    %3061 = vmatpush1.xpose.msra.mxu0 0.0
    %3062 = vmatprep.subr.mxu0 0.0
    %3063 = vmatpush1.xpose.msra.mxu0 0.0
    %3064 = vmatprep.subr.mxu0 0.0
    %3065 = vmatpush1.xpose.msra.mxu0 0.0
    %3066 = vmatprep.subr.mxu0 0.0
    %3067 = vmatpush1.xpose.msra.mxu0 0.0
    %3068 = vmatprep.subr.mxu0 0.0
    %3069 = vmatpush1.xpose.msra.mxu0 0.0
    %3070 = vmatprep.subr.mxu0 0.0
    %3071 = vmatpush1.xpose.msra.mxu0 0.0
    %3072 = vmatprep.subr.mxu0 0.0
    %3073 = vmatpush1.xpose.msra.mxu0 0.0
    %3074 = vmatprep.subr.mxu0 0.0
    %3075 = vmatpush1.xpose.msra.mxu0 0.0
    %3076 = vmatprep.subr.mxu0 0.0
    %3077 = vmatpush1.xpose.msra.mxu0 0.0
    %3078 = vmatprep.subr.mxu0 0.0
    %3079 = vmatpush1.xpose.msra.mxu0 0.0
    %3080 = vmatprep.subr.mxu0 0.0
    %3081 = vmatpush1.xpose.msra.mxu0 0.0
    %3082 = vmatprep.subr.mxu0 0.0
    %3083 = vmatpush1.xpose.msra.mxu0 0.0
    %3084 = vmatprep.subr.mxu0 0.0
    %3085 = vmatpush1.xpose.msra.mxu0 0.0
    %3086 = vmatprep.subr.mxu0 0.0
    %3087 = vmatpush1.xpose.msra.mxu0 0.0
    %3088 = vmatprep.subr.mxu0 0.0
    %3089 = vmatpush1.xpose.msra.mxu0 0.0
    %3090 = vmatprep.subr.mxu0 0.0
    %3091 = vmatpush1.xpose.msra.mxu0 0.0
    %3092 = vmatprep.subr.mxu0 0.0
    %3093 = vmatpush1.xpose.msra.mxu0 0.0
    %3094 = vmatprep.subr.mxu0 0.0
    %3095 = vmatpush1.xpose.msra.mxu0 0.0
    %3096 = vmatprep.subr.mxu0 0.0
    %3097 = vmatpush1.xpose.msra.mxu0 0.0
    %3098 = vmatprep.subr.mxu0 0.0
    %3099 = vmatpush1.xpose.msra.mxu0 0.0
    %3100 = vmatprep.subr.mxu0 0.0
    %3101 = vmatpush1.xpose.msra.mxu0 0.0
    %3102 = vmatprep.subr.mxu0 0.0
    %3103 = vmatpush1.xpose.msra.mxu0 0.0
    %3104 = vmatprep.subr.mxu0 0.0
    %3105 = vmatpush1.xpose.msra.mxu0 0.0
    %3106 = vmatprep.subr.mxu0 0.0
    %3107 = vmatpush1.xpose.msra.mxu0 0.0
    %3108 = vmatprep.subr.mxu0 0.0
    %3109 = vmatpush1.xpose.msra.mxu0 0.0
    %3110 = vmatprep.subr.mxu0 0.0
    %3111 = vmatpush1.xpose.msra.mxu0 0.0
    %3112 = vmatprep.mubr.f32.mxu0 0.0
    %3113 = vmatmul.mubr.f32.gmra.mrb[0].mxu0 %v3031
    %v3114 = vpop.f32.mrb[0].mxu0
    %v3115 = vadd.f32 %v3028, %v3114
    %v3116 = vpop.f32.mrb[0].mxu0
    %3117 = vmatprep.mubr.f32.mxu0 0.0
    %3118 = vmatmul.mubr.f32.gmra.mrb[0].mxu0 %v3034
    %v3119 = vpop.f32.mrb[0].mxu0
    %v3120 = vadd.f32 %v3028, %v3119
    %v3121 = vpop.f32.mrb[0].mxu0
    %3122 = vdwg.mxu0
    %v3123 = vadd.f32 %v1836, %v3115
    %v3124 = vadd.f32 %v1837, %v3120
    %s3125 = scalar_lea.vmem %s17, 1
    %v3126 = vld [vmem:[%s3125] sm:$0x1]
    %s3127 = scalar_lea.vmem %s18, 1
    %v3128 = vld [vmem:[%s3127] sm:$0x1]
    %v3129 = vsel %vm208, %v3123, 0.0
    %3130 = vadd.xlane.f32.xlu0 %v3129
    %v3131 = vpop.xlane.xlu0 %3130
    %v3132 = vsel %vm212, %v3124, 0.0
    %3133 = vadd.xlane.f32.xlu0 %v3132
    %v3134 = vpop.xlane.xlu0 %3133
    %v3135 = vmul.f32 %v3131, %v216
    %v3136 = vmul.f32 %v3134, %v216
    %v3137 = vsub.f32 %v3123, %v3135
    %v3138 = vsub.f32 %v3124, %v3136
    %v3139 = vmul.f32 %v3137, %v3137
    %v3140 = vmul.f32 %v3138, %v3138
    %v3141 = vsel %vm208, %v3139, 0.0
    %3142 = vadd.xlane.f32.xlu0 %v3141
    %v3143 = vpop.xlane.xlu0 %3142
    %v3144 = vsel %vm212, %v3140, 0.0
    %3145 = vadd.xlane.f32.xlu0 %v3144
    %v3146 = vpop.xlane.xlu0 %3145
    %v3147 = vmul.f32 %v3143, %v216
    %v3148 = vmul.f32 %v3146, %v216
    %v3149 = vadd.f32 %v3147, 1e-05
    %v3150 = vadd.f32 %v3148, 1e-05
    %v3151 = vrsqrt.pop %v3149
    %v3152 = vrsqrt.pop %v3150
    %v3153 = vmul.f32 %v3137, %v3151
    %v3154 = vmul.f32 %v3138, %v3152
    %v3156 = vlaneseq
    %v3157 = vshrl.u32 %v3156, 7
    %v3158 = vsub.s32 0, %v3157
    %v3159 = vrot.slane %v3126, %v3158
    %v3161 = vmul.f32 %v3153, %v3159
    %v3162 = vmul.f32 %v3154, %v3159
    %v3164 = vlaneseq
    %v3165 = vshrl.u32 %v3164, 7
    %v3166 = vsub.s32 0, %v3165
    %v3167 = vrot.slane %v3128, %v3166
    %v3169 = vadd.f32 %v3161, %v3167
    %v3170 = vadd.f32 %v3162, %v3167
    %s3171 = scalar_lea.vmem %s19, 128
    %v3172 = vld [vmem:[%s3171] sm:$0xff]
    %v3173 = vld [vmem:[%s3171 + $0x8] sm:$0xff]
    %v3174 = vld [vmem:[%s3171 + $0x10] sm:$0xff]
    %v3175 = vld [vmem:[%s3171 + $0x18] sm:$0xff]
    %v3176 = vld [vmem:[%s3171 + $0x20] sm:$0xff]
    %v3177 = vld [vmem:[%s3171 + $0x28] sm:$0xff]
    %v3178 = vld [vmem:[%s3171 + $0x30] sm:$0xff]
    %v3179 = vld [vmem:[%s3171 + $0x38] sm:$0xff]
    %v3180 = vld [vmem:[%s3171 + $0x40] sm:$0xff]
    %v3181 = vld [vmem:[%s3171 + $0x48] sm:$0xff]
    %v3182 = vld [vmem:[%s3171 + $0x50] sm:$0xff]
    %v3183 = vld [vmem:[%s3171 + $0x58] sm:$0xff]
    %v3184 = vld [vmem:[%s3171 + $0x60] sm:$0xff]
    %v3185 = vld [vmem:[%s3171 + $0x68] sm:$0xff]
    %v3186 = vld [vmem:[%s3171 + $0x70] sm:$0xff]
    %v3187 = vld [vmem:[%s3171 + $0x78] sm:$0xff]
    %s3188 = scalar_lea.vmem %s20, 1
    %v3189 = vld [vmem:[%s3188] sm:$0x1]
    %v3191 = vlaneseq
    %v3192 = vshrl.u32 %v3191, 7
    %v3193 = vsub.s32 0, %v3192
    %v3194 = vrot.slane %v3189, %v3193
    %v3197 = vsel %vm208, %v3169, 0
    %v3200 = vsel %vm208, %v3170, 0
    %v3203 = vsel %vm208, %v3172, 0
    %v3206 = vsel %vm208, %v3173, 0
    %v3209 = vsel %vm208, %v3174, 0
    %v3212 = vsel %vm208, %v3175, 0
    %v3215 = vsel %vm208, %v3176, 0
    %v3218 = vsel %vm208, %v3177, 0
    %v3221 = vsel %vm208, %v3178, 0
    %v3224 = vsel %vm208, %v3179, 0
    %v3227 = vsel %vm208, %v3180, 0
    %v3230 = vsel %vm208, %v3181, 0
    %v3233 = vsel %vm208, %v3182, 0
    %v3236 = vsel %vm208, %v3183, 0
    %v3239 = vsel %vm208, %v3184, 0
    %v3242 = vsel %vm208, %v3185, 0
    %v3245 = vsel %vm208, %v3186, 0
    %v3248 = vsel %vm208, %v3187, 0
    %3250 = vmatprep.subr.mxu0 0.0
    %3251 = vmatpush1.xpose.msra.mxu0 %v3203
    %3252 = vmatprep.subr.mxu0 0.0
    %3253 = vmatpush1.xpose.msra.mxu0 %v3206
    %3254 = vmatprep.subr.mxu0 0.0
    %3255 = vmatpush1.xpose.msra.mxu0 %v3209
    %3256 = vmatprep.subr.mxu0 0.0
    %3257 = vmatpush1.xpose.msra.mxu0 %v3212
    %3258 = vmatprep.subr.mxu0 0.0
    %3259 = vmatpush1.xpose.msra.mxu0 %v3215
    %3260 = vmatprep.subr.mxu0 0.0
    %3261 = vmatpush1.xpose.msra.mxu0 %v3218
    %3262 = vmatprep.subr.mxu0 0.0
    %3263 = vmatpush1.xpose.msra.mxu0 %v3221
    %3264 = vmatprep.subr.mxu0 0.0
    %3265 = vmatpush1.xpose.msra.mxu0 %v3224
    %3266 = vmatprep.subr.mxu0 0.0
    %3267 = vmatpush1.xpose.msra.mxu0 %v3227
    %3268 = vmatprep.subr.mxu0 0.0
    %3269 = vmatpush1.xpose.msra.mxu0 %v3230
    %3270 = vmatprep.subr.mxu0 0.0
    %3271 = vmatpush1.xpose.msra.mxu0 %v3233
    %3272 = vmatprep.subr.mxu0 0.0
    %3273 = vmatpush1.xpose.msra.mxu0 %v3236
    %3274 = vmatprep.subr.mxu0 0.0
    %3275 = vmatpush1.xpose.msra.mxu0 %v3239
    %3276 = vmatprep.subr.mxu0 0.0
    %3277 = vmatpush1.xpose.msra.mxu0 %v3242
    %3278 = vmatprep.subr.mxu0 0.0
    %3279 = vmatpush1.xpose.msra.mxu0 %v3245
    %3280 = vmatprep.subr.mxu0 0.0
    %3281 = vmatpush1.xpose.msra.mxu0 %v3248
    %3282 = vmatprep.subr.mxu0 0.0
    %3283 = vmatpush1.xpose.msra.mxu0 0.0
    %3284 = vmatprep.subr.mxu0 0.0
    %3285 = vmatpush1.xpose.msra.mxu0 0.0
    %3286 = vmatprep.subr.mxu0 0.0
    %3287 = vmatpush1.xpose.msra.mxu0 0.0
    %3288 = vmatprep.subr.mxu0 0.0
    %3289 = vmatpush1.xpose.msra.mxu0 0.0
    %3290 = vmatprep.subr.mxu0 0.0
    %3291 = vmatpush1.xpose.msra.mxu0 0.0
    %3292 = vmatprep.subr.mxu0 0.0
    %3293 = vmatpush1.xpose.msra.mxu0 0.0
    %3294 = vmatprep.subr.mxu0 0.0
    %3295 = vmatpush1.xpose.msra.mxu0 0.0
    %3296 = vmatprep.subr.mxu0 0.0
    %3297 = vmatpush1.xpose.msra.mxu0 0.0
    %3298 = vmatprep.subr.mxu0 0.0
    %3299 = vmatpush1.xpose.msra.mxu0 0.0
    %3300 = vmatprep.subr.mxu0 0.0
    %3301 = vmatpush1.xpose.msra.mxu0 0.0
    %3302 = vmatprep.subr.mxu0 0.0
    %3303 = vmatpush1.xpose.msra.mxu0 0.0
    %3304 = vmatprep.subr.mxu0 0.0
    %3305 = vmatpush1.xpose.msra.mxu0 0.0
    %3306 = vmatprep.subr.mxu0 0.0
    %3307 = vmatpush1.xpose.msra.mxu0 0.0
    %3308 = vmatprep.subr.mxu0 0.0
    %3309 = vmatpush1.xpose.msra.mxu0 0.0
    %3310 = vmatprep.subr.mxu0 0.0
    %3311 = vmatpush1.xpose.msra.mxu0 0.0
    %3312 = vmatprep.subr.mxu0 0.0
    %3313 = vmatpush1.xpose.msra.mxu0 0.0
    %3314 = vmatprep.mubr.f32.mxu0 0.0
    %3315 = vmatmul.mubr.f32.gmra.mrb[0].mxu0 %v3197
    %v3316 = vpop.f32.mrb[0].mxu0
    %v3317 = vadd.f32 %v3194, %v3316
    %v3318 = vpop.f32.mrb[0].mxu0
    %3319 = vmatprep.mubr.f32.mxu0 0.0
    %3320 = vmatmul.mubr.f32.gmra.mrb[0].mxu0 %v3200
    %v3321 = vpop.f32.mrb[0].mxu0
    %v3322 = vadd.f32 %v3194, %v3321
    %v3323 = vpop.f32.mrb[0].mxu0
    %3324 = vdwg.mxu0
    %v3325 = vmul.f32 %v3317, 1.702
    %v3326 = vmul.f32 %v3322, 1.702
    %v3327 = vxor.u32 %v3325, 2147483648
    %v3328 = vxor.u32 %v3326, 2147483648
    %v3329 = vmul.f32 %v3327, 1.442695
    %v3330 = vpow.pop %v3329
    %v3331 = vmul.f32 %v3328, 1.442695
    %v3332 = vpow.pop %v3331
    %v3333 = vadd.f32 %v3330, 1.0
    %v3334 = vadd.f32 %v3332, 1.0
    %v3335 = vrcp.pop %v3333
    %v3336 = vmul.f32 1.0, %v3335
    %v3337 = vrcp.pop %v3334
    %v3338 = vmul.f32 1.0, %v3337
    %v3339 = vmul.f32 %v3317, %v3336
    %v3340 = vmul.f32 %v3322, %v3338
    %s3341 = scalar_lea.vmem %s21, 32
    %v3342 = vld [vmem:[%s3341] sm:$0xff]
    %v3343 = vld [vmem:[%s3341 + $0x8] sm:$0xff]
    %v3344 = vld [vmem:[%s3341 + $0x10] sm:$0xff]
    %v3345 = vld [vmem:[%s3341 + $0x18] sm:$0xff]
    %s3346 = scalar_lea.vmem %s22, 1
    %v3347 = vld [vmem:[%s3346] sm:$0x1]
    %v3349 = vlaneseq
    %v3350 = vshrl.u32 %v3349, 7
    %v3351 = vsub.s32 0, %v3350
    %v3352 = vrot.slane %v3347, %v3351
    %3354 = vmatprep.subr.mxu0 0.0
    %3355 = vmatpush1.xpose.msra.mxu0 %v3342
    %3356 = vmatprep.subr.mxu0 0.0
    %3357 = vmatpush1.xpose.msra.mxu0 %v3343
    %3358 = vmatprep.subr.mxu0 0.0
    %3359 = vmatpush1.xpose.msra.mxu0 %v3344
    %3360 = vmatprep.subr.mxu0 0.0
    %3361 = vmatpush1.xpose.msra.mxu0 %v3345
    %3362 = vmatprep.subr.mxu0 0.0
    %3363 = vmatpush1.xpose.msra.mxu0 0.0
    %3364 = vmatprep.subr.mxu0 0.0
    %3365 = vmatpush1.xpose.msra.mxu0 0.0
    %3366 = vmatprep.subr.mxu0 0.0
    %3367 = vmatpush1.xpose.msra.mxu0 0.0
    %3368 = vmatprep.subr.mxu0 0.0
    %3369 = vmatpush1.xpose.msra.mxu0 0.0
    %3370 = vmatprep.subr.mxu0 0.0
    %3371 = vmatpush1.xpose.msra.mxu0 0.0
    %3372 = vmatprep.subr.mxu0 0.0
    %3373 = vmatpush1.xpose.msra.mxu0 0.0
    %3374 = vmatprep.subr.mxu0 0.0
    %3375 = vmatpush1.xpose.msra.mxu0 0.0
    %3376 = vmatprep.subr.mxu0 0.0
    %3377 = vmatpush1.xpose.msra.mxu0 0.0
    %3378 = vmatprep.subr.mxu0 0.0
    %3379 = vmatpush1.xpose.msra.mxu0 0.0
    %3380 = vmatprep.subr.mxu0 0.0
    %3381 = vmatpush1.xpose.msra.mxu0 0.0
    %3382 = vmatprep.subr.mxu0 0.0
    %3383 = vmatpush1.xpose.msra.mxu0 0.0
    %3384 = vmatprep.subr.mxu0 0.0
    %3385 = vmatpush1.xpose.msra.mxu0 0.0
    %3386 = vmatprep.subr.mxu0 0.0
    %3387 = vmatpush1.xpose.msra.mxu0 0.0
    %3388 = vmatprep.subr.mxu0 0.0
    %3389 = vmatpush1.xpose.msra.mxu0 0.0
    %3390 = vmatprep.subr.mxu0 0.0
    %3391 = vmatpush1.xpose.msra.mxu0 0.0
    %3392 = vmatprep.subr.mxu0 0.0
    %3393 = vmatpush1.xpose.msra.mxu0 0.0
    %3394 = vmatprep.subr.mxu0 0.0
    %3395 = vmatpush1.xpose.msra.mxu0 0.0
    %3396 = vmatprep.subr.mxu0 0.0
    %3397 = vmatpush1.xpose.msra.mxu0 0.0
    %3398 = vmatprep.subr.mxu0 0.0
    %3399 = vmatpush1.xpose.msra.mxu0 0.0
    %3400 = vmatprep.subr.mxu0 0.0
    %3401 = vmatpush1.xpose.msra.mxu0 0.0
    %3402 = vmatprep.subr.mxu0 0.0
    %3403 = vmatpush1.xpose.msra.mxu0 0.0
    %3404 = vmatprep.subr.mxu0 0.0
    %3405 = vmatpush1.xpose.msra.mxu0 0.0
    %3406 = vmatprep.subr.mxu0 0.0
    %3407 = vmatpush1.xpose.msra.mxu0 0.0
    %3408 = vmatprep.subr.mxu0 0.0
    %3409 = vmatpush1.xpose.msra.mxu0 0.0
    %3410 = vmatprep.subr.mxu0 0.0
    %3411 = vmatpush1.xpose.msra.mxu0 0.0
    %3412 = vmatprep.subr.mxu0 0.0
    %3413 = vmatpush1.xpose.msra.mxu0 0.0
    %3414 = vmatprep.subr.mxu0 0.0
    %3415 = vmatpush1.xpose.msra.mxu0 0.0
    %3416 = vmatprep.subr.mxu0 0.0
    %3417 = vmatpush1.xpose.msra.mxu0 0.0
    %3418 = vmatprep.mubr.f32.mxu0 0.0
    %3419 = vmatmul.mubr.f32.gmra.mrb[0].mxu0 %v3339
    %v3420 = vpop.f32.mrb[0].mxu0
    %v3421 = vadd.f32 %v3352, %v3420
    %v3422 = vpop.f32.mrb[0].mxu0
    %3423 = vmatprep.mubr.f32.mxu0 0.0
    %3424 = vmatmul.mubr.f32.gmra.mrb[0].mxu0 %v3340
    %v3425 = vpop.f32.mrb[0].mxu0
    %v3426 = vpop.f32.mrb[0].mxu0
    %3427 = vdwg.mxu0
    %v3428 = vadd.f32 %v3123, %v3421
    %v3430 = vrot.slane %v3428, 4
    %v3432 = vsel %vm196, %v3428, %v3430
    %v3433 = vld [vmem:[%s23] sm:$0x1]
    %v3434 = vld [vmem:[%s24] sm:$0x1]
    %v3435 = vsel %vm212, %v3432, 0.0
    %3436 = vadd.xlane.f32.xlu0 %v3435
    %v3437 = vpop.xlane.xlu0 %3436
    %v3438 = vmul.f32 %v3437, %v216
    %v3439 = vsub.f32 %v3432, %v3438
    %v3440 = vmul.f32 %v3439, %v3439
    %v3441 = vsel %vm212, %v3440, 0.0
    %3442 = vadd.xlane.f32.xlu0 %v3441
    %v3443 = vpop.xlane.xlu0 %3442
    %v3444 = vmul.f32 %v3443, %v216
    %v3445 = vadd.f32 %v3444, 1e-05
    %v3446 = vrsqrt.pop %v3445
    %v3447 = vmul.f32 %v3439, %v3446
    %v3449 = vlaneseq
    %v3450 = vshrl.u32 %v3449, 7
    %v3451 = vsub.s32 0, %v3450
    %v3452 = vrot.slane %v3433, %v3451
    %v3454 = vmul.f32 %v3447, %v3452
    %v3456 = vlaneseq
    %v3457 = vshrl.u32 %v3456, 7
    %v3458 = vsub.s32 0, %v3457
    %v3459 = vrot.slane %v3434, %v3458
    %v3461 = vadd.f32 %v3454, %v3459
    %v3462 = vld [vmem:[%s25] sm:$0xff]
    %v3463 = vld [vmem:[%s25 + $0x8] sm:$0xff]
    %v3464 = vld [vmem:[%s25 + $0x10] sm:$0xff]
    %v3465 = vld [vmem:[%s25 + $0x18] sm:$0xff]
    %v3467 = vsel %vm208, %v3461, 0
    %3469 = vmatprep.subr.mxu0 0.0
    %3470 = vmatpush1.msra.mxu0 %v3462
    %3471 = vmatprep.subr.mxu0 0.0
    %3472 = vmatpush1.msra.mxu0 %v3463
    %3473 = vmatprep.subr.mxu0 0.0
    %3474 = vmatpush1.msra.mxu0 %v3464
    %3475 = vmatprep.subr.mxu0 0.0
    %3476 = vmatpush1.msra.mxu0 %v3465
    %3477 = vmatprep.subr.mxu0 0.0
    %3478 = vmatpush1.msra.mxu0 0.0
    %3479 = vmatprep.subr.mxu0 0.0
    %3480 = vmatpush1.msra.mxu0 0.0
    %3481 = vmatprep.subr.mxu0 0.0
    %3482 = vmatpush1.msra.mxu0 0.0
    %3483 = vmatprep.subr.mxu0 0.0
    %3484 = vmatpush1.msra.mxu0 0.0
    %3485 = vmatprep.subr.mxu0 0.0
    %3486 = vmatpush1.msra.mxu0 0.0
    %3487 = vmatprep.subr.mxu0 0.0
    %3488 = vmatpush1.msra.mxu0 0.0
    %3489 = vmatprep.subr.mxu0 0.0
    %3490 = vmatpush1.msra.mxu0 0.0
    %3491 = vmatprep.subr.mxu0 0.0
    %3492 = vmatpush1.msra.mxu0 0.0
    %3493 = vmatprep.subr.mxu0 0.0
    %3494 = vmatpush1.msra.mxu0 0.0
    %3495 = vmatprep.subr.mxu0 0.0
    %3496 = vmatpush1.msra.mxu0 0.0
    %3497 = vmatprep.subr.mxu0 0.0
    %3498 = vmatpush1.msra.mxu0 0.0
    %3499 = vmatprep.subr.mxu0 0.0
    %3500 = vmatpush1.msra.mxu0 0.0
    %3501 = vmatprep.subr.mxu0 0.0
    %3502 = vmatpush1.msra.mxu0 0.0
    %3503 = vmatprep.subr.mxu0 0.0
    %3504 = vmatpush1.msra.mxu0 0.0
    %3505 = vmatprep.subr.mxu0 0.0
    %3506 = vmatpush1.msra.mxu0 0.0
    %3507 = vmatprep.subr.mxu0 0.0
    %3508 = vmatpush1.msra.mxu0 0.0
    %3509 = vmatprep.subr.mxu0 0.0
    %3510 = vmatpush1.msra.mxu0 0.0
    %3511 = vmatprep.subr.mxu0 0.0
    %3512 = vmatpush1.msra.mxu0 0.0
    %3513 = vmatprep.subr.mxu0 0.0
    %3514 = vmatpush1.msra.mxu0 0.0
    %3515 = vmatprep.subr.mxu0 0.0
    %3516 = vmatpush1.msra.mxu0 0.0
    %3517 = vmatprep.subr.mxu0 0.0
    %3518 = vmatpush1.msra.mxu0 0.0
    %3519 = vmatprep.subr.mxu0 0.0
    %3520 = vmatpush1.msra.mxu0 0.0
    %3521 = vmatprep.subr.mxu0 0.0
    %3522 = vmatpush1.msra.mxu0 0.0
    %3523 = vmatprep.subr.mxu0 0.0
    %3524 = vmatpush1.msra.mxu0 0.0
    %3525 = vmatprep.subr.mxu0 0.0
    %3526 = vmatpush1.msra.mxu0 0.0
    %3527 = vmatprep.subr.mxu0 0.0
    %3528 = vmatpush1.msra.mxu0 0.0
    %3529 = vmatprep.subr.mxu0 0.0
    %3530 = vmatpush1.msra.mxu0 0.0
    %3531 = vmatprep.subr.mxu0 0.0
    %3532 = vmatpush1.msra.mxu0 0.0
    %3533 = vmatprep.mubr.f32.mxu0 0.0
    %3534 = vmatmul.mubr.f32.gmra.mrb[0].mxu0 %v3467
    %v3535 = vpop.f32.mrb[0].mxu0
    %v3536 = vadd.f32 0.0, %v3535
    %v3537 = vpop.f32.mrb[0].mxu0
    %3538 = vdwg.mxu0
    %vm3539 = vcmask 123904
    %3540 = vst.msk [vmem:[#allocation2] sm:$0x3] %vm3539, %v3536
    // Predicated region
    $region106: #{tpu_custom_call.1} parent=1 // pred_check
      _
    $region107: #{tpu_custom_call.1} parent=1 // pred_check_branch
      %3542 = sbr.rel (0) target = $region109
    $region108: #{tpu_custom_call.1} parent=1 // pred_region
      %s3544 = ssub.s32 32, 32
      %3545 = vsyncadd [#allocation3], %s3544
      %s3547 = sshll.u32 [#allocation2], 4
      %s3548 = int_to_ptr.vmem [resolvable:$true] %s3547
      %3550 = dma.vmem_to_hbm [thread:$0]  %s3548, 32, %s26, [#allocation3]
    $region109: #{tpu_custom_call.1} parent=1 // pred_fallthru
      _
    // Predicated region
    $region110: #{tpu_custom_call.1} parent=1 // pred_check
      _
    $region111: #{tpu_custom_call.1} parent=1 // pred_check_branch
      %3552 = sbr.rel (0) target = $region113
    $region112: #{tpu_custom_call.1} parent=1 // pred_region
      %3553 = dma.done [#allocation3], 32
    $region113: #{tpu_custom_call.1} parent=1 // pred_fallthru
      _
    %3554 = vsyncpa [#allocation3], 1

</llo_original>
